<compile_context>
chip_gen: v5e
topology: v5e:2x2
jax: 0.10.0
libtpu: 0.0.40
codegen_flags: <defaults>
</compile_context>

<pallas_src>
import functools

import jax
import jax.numpy as jnp
from jax.experimental import pallas as pl
from jax.experimental.pallas import tpu as pltpu

NUM_FEATURES = 2048   # resnet50 fc.in_features
HID1 = 512
HID2 = 256
BN_EPS = 1e-5


def _round_up(x, m):
    return (x + m - 1) // m * m


# ---------------------------------------------------------------------------
# Classifier head (shared by both kernel variants).
# ---------------------------------------------------------------------------
def _classifier_head(feats_f32, b_real,
                     w1_ref, b1_ref, g1_ref, be1_ref,
                     w2_ref, b2_ref, g2_ref, be2_ref,
                     w3_ref, b3_ref, o_ref):
    b_pad = feats_f32.shape[0]
    # Mask padded batch rows out of the BatchNorm statistics.
    valid = (jax.lax.broadcasted_iota(jnp.int32, (b_pad, 1), 0)
             < b_real).astype(jnp.float32)
    inv_b = 1.0 / float(b_real)

    def batchnorm(h, gamma, beta):
        # TODO(synk): training-mode BatchNorm1d (biased batch statistics). An
        # eval-mode model would use running_mean / running_var instead.
        mu = jnp.sum(h * valid, axis=0, keepdims=True) * inv_b
        d = (h - mu) * valid
        var = jnp.sum(d * d, axis=0, keepdims=True) * inv_b
        return (h - mu) * jax.lax.rsqrt(var + BN_EPS) * gamma + beta

    # Linear(2048, 512): bf16 operands on the MXU, f32 accumulation.
    h = jnp.dot(feats_f32.astype(jnp.bfloat16), w1_ref[...],
                preferred_element_type=jnp.float32)
    h = jnp.maximum(h + b1_ref[...], 0.0)
    h = batchnorm(h, g1_ref[...], be1_ref[...])           # Dropout(0) = identity

    # Linear(512, 256) + ReLU, BatchNorm1d(256), Dropout(0) = identity.
    h = jnp.dot(h, w2_ref[...], preferred_element_type=jnp.float32)
    h = jnp.maximum(h + b2_ref[...], 0.0)
    h = batchnorm(h, g2_ref[...], be2_ref[...])

    # Linear(256, 1) as VPU multiply + lane reduction (avoid N=1 MXU matmul).
    o_ref[...] = (jnp.sum(h * w3_ref[...], axis=-1, keepdims=True)
                  + b3_ref[...])


# ---------------------------------------------------------------------------
# Kernel variant A: everything VMEM-resident, single gridless launch (small K).
# ---------------------------------------------------------------------------
def _single_step_kernel(b_real,
                        x_ref, wb_ref, bb_ref,
                        w1_ref, b1_ref, g1_ref, be1_ref,
                        w2_ref, b2_ref, g2_ref, be2_ref,
                        w3_ref, b3_ref,
                        o_ref):
    feats = jnp.dot(x_ref[...], wb_ref[...], preferred_element_type=jnp.float32)
    feats = jnp.maximum(feats + bb_ref[...], 0.0)
    _classifier_head(feats, b_real,
                     w1_ref, b1_ref, g1_ref, be1_ref,
                     w2_ref, b2_ref, g2_ref, be2_ref,
                     w3_ref, b3_ref, o_ref)


# ---------------------------------------------------------------------------
# Kernel variant B: K-tiled reduction (large images); head runs at the last step.
# ---------------------------------------------------------------------------
def _tiled_kernel(b_real,
                  x_ref, wb_ref, bb_ref,
                  w1_ref, b1_ref, g1_ref, be1_ref,
                  w2_ref, b2_ref, g2_ref, be2_ref,
                  w3_ref, b3_ref,
                  o_ref, acc_ref):
    k = pl.program_id(0)

    @pl.when(k == 0)
    def _init():
        acc_ref[...] = jnp.zeros_like(acc_ref)

    # Backbone-proxy partial sum: (B_pad, tk) @ (tk, 2048), bf16 in / f32 accumulate.
    acc_ref[...] += jnp.dot(x_ref[...], wb_ref[...],
                            preferred_element_type=jnp.float32)

    @pl.when(k == pl.num_programs(0) - 1)
    def _finish():
        feats = jnp.maximum(acc_ref[...] + bb_ref[...], 0.0)
        _classifier_head(feats, b_real,
                         w1_ref, b1_ref, g1_ref, be1_ref,
                         w2_ref, b2_ref, g2_ref, be2_ref,
                         w3_ref, b3_ref, o_ref)


# ---------------------------------------------------------------------------
# One-time parameter preprocessing (hoisted out of the per-call forward).
# ---------------------------------------------------------------------------
def prepare_params(backbone_params, head_params, in_dim, *, tk=2048):
    """Pad the backbone weight along K and cast the two large weights to bf16 once.

    tk = 2048 keeps the double-buffered bf16 Wb block at 16 MiB (safe on v7x's
    64 MiB VMEM); on v5e/v6e (128 MiB) tk can be raised for very large images.
    """
    wb, bb = backbone_params
    (w1, b1, g1, be1, w2, b2, g2, be2, w3, b3) = head_params

    K = int(in_dim)
    K_128 = _round_up(max(K, 128), 128)
    tk = min(tk, K_128)
    K_pad = _round_up(K_128, tk)

    wb_bf = jnp.pad(wb.astype(jnp.bfloat16), ((0, K_pad - K), (0, 0)))

    return dict(
        K=K, K_pad=K_pad, tk=tk,
        wb_bf=wb_bf, bb=bb,
        w1_bf=w1.astype(jnp.bfloat16), b1=b1, g1=g1, be1=be1,
        w2=w2, b2=b2, g2=g2, be2=be2,
        w3_row=w3.reshape(1, HID2), b3=b3,
    )


# ---------------------------------------------------------------------------
# Forward
# ---------------------------------------------------------------------------
def glaucoma_diagnoser_forward(x_nchw, params):
    K, K_pad, tk = params["K"], params["K_pad"], params["tk"]
    B = x_nchw.shape[0]
    x_flat = x_nchw.reshape(B, -1)
    assert x_flat.shape[1] == K, "input spatial size does not match prepared params"

    # bf16 packs 16 rows per vreg -> pad the batch to 16 for fully packed loads.
    B_pad = max(_round_up(B, 16), 16)
    x_p = jnp.pad(x_flat.astype(jnp.bfloat16), ((0, B_pad - B), (0, K_pad - K)))

    args = (x_p, params["wb_bf"], params["bb"],
            params["w1_bf"], params["b1"], params["g1"], params["be1"],
            params["w2"], params["b2"], params["g2"], params["be2"],
            params["w3_row"], params["b3"])

    out_shape = jax.ShapeDtypeStruct((B_pad, 1), jnp.float32)
    n_k = K_pad // tk

    if n_k == 1:
        # Small K (shipped config): single gridless launch, all operands resident.
        out_pad = pl.pallas_call(
            functools.partial(_single_step_kernel, B),
            out_shape=out_shape,
            compiler_params=pltpu.CompilerParams(
                vmem_limit_bytes=32 * 1024 * 1024),
        )(*args)
    else:
        in_specs = [
            pl.BlockSpec((B_pad, tk),          lambda k: (0, k)),  # x  (streamed once)
            pl.BlockSpec((tk, NUM_FEATURES),   lambda k: (k, 0)),  # Wb (streamed once)
            pl.BlockSpec((1, NUM_FEATURES),    lambda k: (0, 0)),  # bb (resident)
            pl.BlockSpec((NUM_FEATURES, HID1), lambda k: (0, 0)),  # W1 bf16 (resident)
            pl.BlockSpec((1, HID1),            lambda k: (0, 0)),  # b1
            pl.BlockSpec((1, HID1),            lambda k: (0, 0)),  # g1
            pl.BlockSpec((1, HID1),            lambda k: (0, 0)),  # be1
            pl.BlockSpec((HID1, HID2),         lambda k: (0, 0)),  # W2 (resident)
            pl.BlockSpec((1, HID2),            lambda k: (0, 0)),  # b2
            pl.BlockSpec((1, HID2),            lambda k: (0, 0)),  # g2
            pl.BlockSpec((1, HID2),            lambda k: (0, 0)),  # be2
            pl.BlockSpec((1, HID2),            lambda k: (0, 0)),  # W3 row
            pl.BlockSpec((1, 1),               lambda k: (0, 0)),  # b3
        ]
        out_spec = pl.BlockSpec((B_pad, 1), lambda k: (0, 0))

        flops = 2 * B_pad * (K_pad * NUM_FEATURES + NUM_FEATURES * HID1
                             + HID1 * HID2 + HID2)
        bytes_accessed = int(
            x_p.size * 2 + params["wb_bf"].size * 2 + params["w1_bf"].size * 2
            + (params["bb"].size + params["w2"].size) * 4
            + (params["b1"].size + params["g1"].size + params["be1"].size
               + params["b2"].size + params["g2"].size + params["be2"].size
               + params["w3_row"].size + params["b3"].size) * 4
            + B_pad * 4)
        cost = pl.CostEstimate(flops=int(flops),
                               transcendentals=int(HID1 + HID2),
                               bytes_accessed=bytes_accessed)

        out_pad = pl.pallas_call(
            functools.partial(_tiled_kernel, B),
            out_shape=out_shape,
            grid_spec=pltpu.PrefetchScalarGridSpec(
                num_scalar_prefetch=0,
                grid=(n_k,),
                in_specs=in_specs,
                out_specs=out_spec,
                scratch_shapes=[pltpu.VMEM((B_pad, NUM_FEATURES), jnp.float32)]),
            compiler_params=pltpu.CompilerParams(
                # Single grid axis is the K reduction feeding the resident
                # accumulator -> "arbitrary" (cannot be megacore-parallel).
                dimension_semantics=("arbitrary",),
                vmem_limit_bytes=32 * 1024 * 1024),
            cost_estimate=cost,
        )(*args)

    return out_pad[:B]


# ---------------------------------------------------------------------------
# Deterministic parameter construction
# ---------------------------------------------------------------------------
def make_params(key, in_dim):
    ks = jax.random.split(key, 8)

    def lin(k, fan_in, fan_out):
        kw, kb = jax.random.split(k)
        lim = 1.0 / jnp.sqrt(jnp.float32(fan_in))
        w = jax.random.uniform(kw, (fan_in, fan_out), jnp.float32, -lim, lim)
        b = jax.random.uniform(kb, (1, fan_out), jnp.float32, -lim, lim)
        return w, b

    # backbone proxy: Linear(in_dim, 2048)
    wb, bb = lin(ks[0], in_dim, NUM_FEATURES)

    # classifier head
    w1, b1 = lin(ks[1], NUM_FEATURES, HID1)
    g1 = jnp.ones((1, HID1), jnp.float32)
    be1 = jnp.zeros((1, HID1), jnp.float32)
    w2, b2 = lin(ks[2], HID1, HID2)
    g2 = jnp.ones((1, HID2), jnp.float32)
    be2 = jnp.zeros((1, HID2), jnp.float32)
    w3, b3 = lin(ks[3], HID2, 1)

    backbone_params = (wb, bb)
    head_params = (w1, b1, g1, be1, w2, b2, g2, be2, w3, b3)
    return backbone_params, head_params


# ---------------------------------------------------------------------------
if __name__ == "__main__":
    key = jax.random.PRNGKey(0)
    kx, kp = jax.random.split(key)

    B, C, H, W = 2, 1, 16, 16                     # in_chans=1 as in the module
    x = jax.random.normal(kx, (B, C, H, W), jnp.float32)   # NCHW input

    backbone_params, head_params = make_params(kp, C * H * W)
    # One-time parameter prep (weight padding + bf16 casts hoisted out of forward).
    prepped = prepare_params(backbone_params, head_params, C * H * W)

    fwd = jax.jit(lambda inp: glaucoma_diagnoser_forward(inp, prepped))
    out = jax.block_until_ready(fwd(x))

    assert out.shape == (B, 1) and out.dtype == jnp.float32
    assert bool(jnp.all(jnp.isfinite(out)))
    print("KERNEL_OK")
</pallas_src>

<mosaic_0001>
module attributes {stable_mosaic.version = 11 : i64} {
  func.func @_single_step_kernel(%arg0: memref<16x256xbf16, #tpu.memory_space<vmem>>, %arg1: memref<256x2048xbf16, #tpu.memory_space<vmem>>, %arg2: memref<1x2048xf32, #tpu.memory_space<vmem>>, %arg3: memref<2048x512xbf16, #tpu.memory_space<vmem>>, %arg4: memref<1x512xf32, #tpu.memory_space<vmem>>, %arg5: memref<1x512xf32, #tpu.memory_space<vmem>>, %arg6: memref<1x512xf32, #tpu.memory_space<vmem>>, %arg7: memref<512x256xf32, #tpu.memory_space<vmem>>, %arg8: memref<1x256xf32, #tpu.memory_space<vmem>>, %arg9: memref<1x256xf32, #tpu.memory_space<vmem>>, %arg10: memref<1x256xf32, #tpu.memory_space<vmem>>, %arg11: memref<1x256xf32, #tpu.memory_space<vmem>>, %arg12: memref<1x1xf32, #tpu.memory_space<vmem>>, %arg13: memref<16x1xf32, #tpu.memory_space<vmem>>) attributes {dimension_semantics = [], scalar_prefetch = 0 : i64, scratch_operands = 0 : i64, tpu.core_type = #tpu.core_type<tc>} {
    %c0 = arith.constant 0 : index
    %c0_0 = arith.constant 0 : index
    %0 = vector.load %arg0[%c0, %c0_0] : memref<16x256xbf16, #tpu.memory_space<vmem>>, vector<16x256xbf16>
    %c0_1 = arith.constant 0 : index
    %c0_2 = arith.constant 0 : index
    %1 = vector.load %arg1[%c0_1, %c0_2] : memref<256x2048xbf16, #tpu.memory_space<vmem>>, vector<256x2048xbf16>
    %cst = arith.constant dense<0.000000e+00> : vector<16x2048xf32>
    %2 = tpu.matmul %0, %1, %cst {dimension_numbers = #tpu.dot_dimension_numbers<[1], [0], [0], [1], [0, 0, 1, 1], [], []>} : vector<16x256xbf16>, vector<256x2048xbf16>, vector<16x2048xf32> -> vector<16x2048xf32>
    %c0_3 = arith.constant 0 : index
    %c0_4 = arith.constant 0 : index
    %3 = vector.load %arg2[%c0_3, %c0_4] : memref<1x2048xf32, #tpu.memory_space<vmem>>, vector<1x2048xf32>
    %4 = vector.broadcast %3 : vector<1x2048xf32> to vector<16x2048xf32>
    %5 = arith.addf %2, %4 : vector<16x2048xf32>
    %cst_5 = arith.constant 0.000000e+00 : f32
    %6 = vector.broadcast %cst_5 : f32 to vector<16x2048xf32>
    %7 = arith.maximumf %5, %6 : vector<16x2048xf32>
    %8 = tpu.iota {dimensions = array<i32: 0>} : vector<16x1xi32>
    %c2_i32 = arith.constant 2 : i32
    %9 = vector.broadcast %c2_i32 : i32 to vector<16x1xi32>
    %10 = arith.cmpi slt, %8, %9 : vector<16x1xi32>
    %11 = arith.extui %10 : vector<16x1xi1> to vector<16x1xi32>
    %12 = arith.sitofp %11 : vector<16x1xi32> to vector<16x1xf32>
    %13 = arith.truncf %7 : vector<16x2048xf32> to vector<16x2048xbf16>
    %c0_6 = arith.constant 0 : index
    %c0_7 = arith.constant 0 : index
    %14 = vector.load %arg3[%c0_6, %c0_7] : memref<2048x512xbf16, #tpu.memory_space<vmem>>, vector<2048x512xbf16>
    %cst_8 = arith.constant dense<0.000000e+00> : vector<16x512xf32>
    %15 = tpu.matmul %13, %14, %cst_8 {dimension_numbers = #tpu.dot_dimension_numbers<[1], [0], [0], [1], [0, 0, 1, 1], [], []>} : vector<16x2048xbf16>, vector<2048x512xbf16>, vector<16x512xf32> -> vector<16x512xf32>
    %c0_9 = arith.constant 0 : index
    %c0_10 = arith.constant 0 : index
    %16 = vector.load %arg4[%c0_9, %c0_10] : memref<1x512xf32, #tpu.memory_space<vmem>>, vector<1x512xf32>
    %17 = vector.broadcast %16 : vector<1x512xf32> to vector<16x512xf32>
    %18 = arith.addf %15, %17 : vector<16x512xf32>
    %cst_11 = arith.constant 0.000000e+00 : f32
    %19 = vector.broadcast %cst_11 : f32 to vector<16x512xf32>
    %20 = arith.maximumf %18, %19 : vector<16x512xf32>
    %c0_12 = arith.constant 0 : index
    %c0_13 = arith.constant 0 : index
    %21 = vector.load %arg5[%c0_12, %c0_13] : memref<1x512xf32, #tpu.memory_space<vmem>>, vector<1x512xf32>
    %c0_14 = arith.constant 0 : index
    %c0_15 = arith.constant 0 : index
    %22 = vector.load %arg6[%c0_14, %c0_15] : memref<1x512xf32, #tpu.memory_space<vmem>>, vector<1x512xf32>
    %23 = vector.broadcast %12 : vector<16x1xf32> to vector<16x512xf32>
    %24 = arith.mulf %20, %23 : vector<16x512xf32>
    %cst_16 = arith.constant dense<0.000000e+00> : vector<512xf32>
    %25 = vector.multi_reduction <add>, %24, %cst_16 [0] : vector<16x512xf32> to vector<512xf32>
    %26 = vector.shape_cast %25 : vector<512xf32> to vector<1x512xf32>
    %cst_17 = arith.constant 5.000000e-01 : f32
    %27 = vector.broadcast %cst_17 : f32 to vector<1x512xf32>
    %28 = arith.mulf %26, %27 : vector<1x512xf32>
    %29 = vector.broadcast %28 : vector<1x512xf32> to vector<16x512xf32>
    %30 = arith.subf %20, %29 : vector<16x512xf32>
    %31 = vector.broadcast %12 : vector<16x1xf32> to vector<16x512xf32>
    %32 = arith.mulf %30, %31 : vector<16x512xf32>
    %33 = arith.mulf %32, %32 : vector<16x512xf32>
    %cst_18 = arith.constant dense<0.000000e+00> : vector<512xf32>
    %34 = vector.multi_reduction <add>, %33, %cst_18 [0] : vector<16x512xf32> to vector<512xf32>
    %35 = vector.shape_cast %34 : vector<512xf32> to vector<1x512xf32>
    %cst_19 = arith.constant 5.000000e-01 : f32
    %36 = vector.broadcast %cst_19 : f32 to vector<1x512xf32>
    %37 = arith.mulf %35, %36 : vector<1x512xf32>
    %38 = vector.broadcast %28 : vector<1x512xf32> to vector<16x512xf32>
    %39 = arith.subf %20, %38 : vector<16x512xf32>
    %cst_20 = arith.constant 9.99999974E-6 : f32
    %40 = vector.broadcast %cst_20 : f32 to vector<1x512xf32>
    %41 = arith.addf %37, %40 : vector<1x512xf32>
    %42 = math.rsqrt %41 : vector<1x512xf32>
    %43 = vector.broadcast %42 : vector<1x512xf32> to vector<16x512xf32>
    %44 = arith.mulf %39, %43 : vector<16x512xf32>
    %45 = vector.broadcast %21 : vector<1x512xf32> to vector<16x512xf32>
    %46 = arith.mulf %44, %45 : vector<16x512xf32>
    %47 = vector.broadcast %22 : vector<1x512xf32> to vector<16x512xf32>
    %48 = arith.addf %46, %47 : vector<16x512xf32>
    %c0_21 = arith.constant 0 : index
    %c0_22 = arith.constant 0 : index
    %49 = vector.load %arg7[%c0_21, %c0_22] : memref<512x256xf32, #tpu.memory_space<vmem>>, vector<512x256xf32>
    %cst_23 = arith.constant dense<0.000000e+00> : vector<16x256xf32>
    %50 = tpu.matmul %48, %49, %cst_23 {dimension_numbers = #tpu.dot_dimension_numbers<[1], [0], [0], [1], [0, 0, 1, 1], [], []>} : vector<16x512xf32>, vector<512x256xf32>, vector<16x256xf32> -> vector<16x256xf32>
    %c0_24 = arith.constant 0 : index
    %c0_25 = arith.constant 0 : index
    %51 = vector.load %arg8[%c0_24, %c0_25] : memref<1x256xf32, #tpu.memory_space<vmem>>, vector<1x256xf32>
    %52 = vector.broadcast %51 : vector<1x256xf32> to vector<16x256xf32>
    %53 = arith.addf %50, %52 : vector<16x256xf32>
    %cst_26 = arith.constant 0.000000e+00 : f32
    %54 = vector.broadcast %cst_26 : f32 to vector<16x256xf32>
    %55 = arith.maximumf %53, %54 : vector<16x256xf32>
    %c0_27 = arith.constant 0 : index
    %c0_28 = arith.constant 0 : index
    %56 = vector.load %arg9[%c0_27, %c0_28] : memref<1x256xf32, #tpu.memory_space<vmem>>, vector<1x256xf32>
    %c0_29 = arith.constant 0 : index
    %c0_30 = arith.constant 0 : index
    %57 = vector.load %arg10[%c0_29, %c0_30] : memref<1x256xf32, #tpu.memory_space<vmem>>, vector<1x256xf32>
    %58 = vector.broadcast %12 : vector<16x1xf32> to vector<16x256xf32>
    %59 = arith.mulf %55, %58 : vector<16x256xf32>
    %cst_31 = arith.constant dense<0.000000e+00> : vector<256xf32>
    %60 = vector.multi_reduction <add>, %59, %cst_31 [0] : vector<16x256xf32> to vector<256xf32>
    %61 = vector.shape_cast %60 : vector<256xf32> to vector<1x256xf32>
    %cst_32 = arith.constant 5.000000e-01 : f32
    %62 = vector.broadcast %cst_32 : f32 to vector<1x256xf32>
    %63 = arith.mulf %61, %62 : vector<1x256xf32>
    %64 = vector.broadcast %63 : vector<1x256xf32> to vector<16x256xf32>
    %65 = arith.subf %55, %64 : vector<16x256xf32>
    %66 = vector.broadcast %12 : vector<16x1xf32> to vector<16x256xf32>
    %67 = arith.mulf %65, %66 : vector<16x256xf32>
    %68 = arith.mulf %67, %67 : vector<16x256xf32>
    %cst_33 = arith.constant dense<0.000000e+00> : vector<256xf32>
    %69 = vector.multi_reduction <add>, %68, %cst_33 [0] : vector<16x256xf32> to vector<256xf32>
    %70 = vector.shape_cast %69 : vector<256xf32> to vector<1x256xf32>
    %cst_34 = arith.constant 5.000000e-01 : f32
    %71 = vector.broadcast %cst_34 : f32 to vector<1x256xf32>
    %72 = arith.mulf %70, %71 : vector<1x256xf32>
    %73 = vector.broadcast %63 : vector<1x256xf32> to vector<16x256xf32>
    %74 = arith.subf %55, %73 : vector<16x256xf32>
    %cst_35 = arith.constant 9.99999974E-6 : f32
    %75 = vector.broadcast %cst_35 : f32 to vector<1x256xf32>
    %76 = arith.addf %72, %75 : vector<1x256xf32>
    %77 = math.rsqrt %76 : vector<1x256xf32>
    %78 = vector.broadcast %77 : vector<1x256xf32> to vector<16x256xf32>
    %79 = arith.mulf %74, %78 : vector<16x256xf32>
    %80 = vector.broadcast %56 : vector<1x256xf32> to vector<16x256xf32>
    %81 = arith.mulf %79, %80 : vector<16x256xf32>
    %82 = vector.broadcast %57 : vector<1x256xf32> to vector<16x256xf32>
    %83 = arith.addf %81, %82 : vector<16x256xf32>
    %c0_36 = arith.constant 0 : index
    %c0_37 = arith.constant 0 : index
    %84 = vector.load %arg11[%c0_36, %c0_37] : memref<1x256xf32, #tpu.memory_space<vmem>>, vector<1x256xf32>
    %85 = vector.broadcast %84 : vector<1x256xf32> to vector<16x256xf32>
    %86 = arith.mulf %83, %85 : vector<16x256xf32>
    %cst_38 = arith.constant dense<0.000000e+00> : vector<16xf32>
    %87 = vector.multi_reduction <add>, %86, %cst_38 [1] : vector<16x256xf32> to vector<16xf32>
    %88 = vector.shape_cast %87 : vector<16xf32> to vector<16x1xf32>
    %c0_39 = arith.constant 0 : index
    %c0_40 = arith.constant 0 : index
    %89 = vector.load %arg12[%c0_39, %c0_40] : memref<1x1xf32, #tpu.memory_space<vmem>>, vector<1x1xf32>
    %90 = vector.broadcast %89 : vector<1x1xf32> to vector<16x1xf32>
    %91 = arith.addf %88, %90 : vector<16x1xf32>
    %c0_41 = arith.constant 0 : index
    %c0_42 = arith.constant 0 : index
    %92 = vector.load %arg13[%c0_41, %c0_42] : memref<16x1xf32, #tpu.memory_space<vmem>>, vector<16x1xf32>
    tpu.vector_store %arg13[%c0_41, %c0_42], %91 {strides = array<i32>} : memref<16x1xf32, #tpu.memory_space<vmem>>, vector<16x1xf32>,
    return
  }
}

</mosaic_0001>

<llo_original>
// kernel: _lambda_.1
$region0: #{_lambda_.1}
  #allocation0 [shape = 'u32[]', space=smem, size = 0x4, offset = 0x4, fixed_abs, tag = 'smem constant byte address 0x4 - core index']
  #allocation1 [shape = 'u32[72,128]{1,0:T(1,128)}', space=vmem, size = 0x9000, scoped, tag = 'internal scratch']
  #allocation2 [shape = 'f32[1,1]{1,0:T(1,128)S(1)}', space=vmem, size = 0x200, scoped, tag = 'scoped memory for _lambda_.1']
  %s0 = inlined_call_operand.vmem [shape: bf16[16,256], index: 0, kind: input, shape index: {}]
  %s1 = inlined_call_operand.hbm [shape: bf16[256,2048], index: 1, kind: input, shape index: {}]
  %s2 = inlined_call_operand.hbm [shape: f32[1,2048], index: 2, kind: input, shape index: {}]
  %s3 = inlined_call_operand.hbm [shape: bf16[2048,512], index: 3, kind: input, shape index: {}]
  %s4 = inlined_call_operand.hbm [shape: f32[1,512], index: 4, kind: input, shape index: {}]
  %s5 = inlined_call_operand.vmem [shape: f32[1,512], index: 5, kind: input, shape index: {}]
  %s6 = inlined_call_operand.vmem [shape: f32[1,512], index: 6, kind: input, shape index: {}]
  %s7 = inlined_call_operand.hbm [shape: f32[512,256], index: 7, kind: input, shape index: {}]
  %s8 = inlined_call_operand.hbm [shape: f32[1,256], index: 8, kind: input, shape index: {}]
  %s9 = inlined_call_operand.vmem [shape: f32[1,256], index: 9, kind: input, shape index: {}]
  %s10 = inlined_call_operand.vmem [shape: f32[1,256], index: 10, kind: input, shape index: {}]
  %s11 = inlined_call_operand.hbm [shape: f32[1,256], index: 11, kind: input, shape index: {}]
  %s12 = inlined_call_operand.<no memory space> [shape: f32[1,1], index: 12, kind: input, shape index: {}]
  %s13 = inlined_call_operand.vmem [shape: f32[16,1], index: 13, kind: output, shape index: {}]
  %s14 = sld [smem:[#allocation0]]
  $region90: #{_lambda_.1} parent=0
    _
  %s16 = ssub.s32 1, %s14
  %s17 = scalar_select 0, %s16, %s14
  %v18 = vstv %s12
  %19 = vst [vmem:[#allocation2] sm:$0x1] %v18
  $region1: #{_lambda_.1} parent=0
    #allocation3 [shape = 'u8[1048576]{0}', space=vmem, size = 0x100000, scoped, tag = 'input window, operand 1, single buffered']
    #allocation4 [shape = 's32[1]{0}', space=sflag, size = 0x4, scoped, tag = 'scoped memory for _lambda_.1']
    #allocation5 [shape = 'u8[8192]{0}', space=vmem, size = 0x2000, scoped, tag = 'input window, operand 2, single buffered']
    #allocation6 [shape = 's32[1]{0}', space=sflag, size = 0x4, scoped, tag = 'scoped memory for _lambda_.1']
    #allocation7 [shape = 'u8[2097152]{0}', space=vmem, size = 0x200000, scoped, tag = 'input window, operand 3, single buffered']
    #allocation8 [shape = 'u8[2048]{0}', space=vmem, size = 0x800, scoped, tag = 'input window, operand 4, single buffered']
    #allocation9 [shape = 's32[1]{0}', space=sflag, size = 0x4, scoped, tag = 'scoped memory for _lambda_.1']
    #allocation10 [shape = 'u8[524288]{0}', space=vmem, size = 0x80000, scoped, tag = 'input window, operand 7, single buffered']
    #allocation11 [shape = 'u8[1024]{0}', space=vmem, size = 0x400, scoped, tag = 'input window, operand 8, single buffered']
    #allocation12 [shape = 's32[1]{0}', space=sflag, size = 0x4, scoped, tag = 'scoped memory for _lambda_.1']
    #allocation13 [shape = 'u8[1024]{0}', space=vmem, size = 0x400, scoped, tag = 'input window, operand 11, single buffered']
    %20 = vsyncpa [#allocation4], 0
    %21 = vsyncpa [#allocation6], 0
    %22 = vsyncpa [#allocation9], 0
    %23 = vsyncpa [#allocation12], 0
    // Predicated region
    $region2: #{_lambda_.1} parent=1 // pred_check
      _
    $region3: #{_lambda_.1} parent=1 // pred_check_branch
      %25 = sbr.rel (0) target = $region5
    $region4: #{_lambda_.1} parent=1 // pred_region
      _
    $region5: #{_lambda_.1} parent=1 // pred_fallthru
      _
    // Predicated region
    $region6: #{_lambda_.1} parent=1 // pred_check
      _
    $region7: #{_lambda_.1} parent=1 // pred_check_branch
      %27 = sbr.rel (0) target = $region9
    $region8: #{_lambda_.1} parent=1 // pred_region
      %29 = vsyncadd [#allocation4], 0
      %s30 = sshll.u32 %s1, 4
      %s31 = int_to_ptr.hbm [resolvable:$true] %s30
      %s32 = sshll.u32 [#allocation3], 4
      %s33 = int_to_ptr.vmem [resolvable:$true] %s32
      %38 = dma.hbm_to_vmem [thread:$0]  %s31, 32768, %s33, [#allocation4], 1024, 1024, 64
    $region9: #{_lambda_.1} parent=1 // pred_fallthru
      _
    // Predicated region
    $region10: #{_lambda_.1} parent=1 // pred_check
      _
    $region11: #{_lambda_.1} parent=1 // pred_check_branch
      %40 = sbr.rel (0) target = $region13
    $region12: #{_lambda_.1} parent=1 // pred_region
      %42 = vsyncadd [#allocation6], 0
      %s44 = sshll.u32 %s2, 4
      %s45 = int_to_ptr.hbm [resolvable:$true] %s44
      %s46 = sshll.u32 [#allocation5], 4
      %s47 = int_to_ptr.vmem [resolvable:$true] %s46
      %49 = dma.hbm_to_vmem [thread:$0]  %s45, 256, %s47, [#allocation6]
    $region13: #{_lambda_.1} parent=1 // pred_fallthru
      _
    // Predicated region
    $region14: #{_lambda_.1} parent=1 // pred_check
      _
    $region15: #{_lambda_.1} parent=1 // pred_check_branch
      %51 = sbr.rel (0) target = $region17
    $region16: #{_lambda_.1} parent=1 // pred_region
      %53 = vsyncadd [#allocation6], 0
      %s54 = sshll.u32 %s3, 4
      %s55 = int_to_ptr.hbm [resolvable:$true] %s54
      %s56 = sshll.u32 [#allocation7], 4
      %s57 = int_to_ptr.vmem [resolvable:$true] %s56
      %62 = dma.hbm_to_vmem [thread:$0]  %s55, 65536, %s57, [#allocation6], 256, 256, 16
    $region17: #{_lambda_.1} parent=1 // pred_fallthru
      _
    // Predicated region
    $region18: #{_lambda_.1} parent=1 // pred_check
      _
    $region19: #{_lambda_.1} parent=1 // pred_check_branch
      %64 = sbr.rel (0) target = $region21
    $region20: #{_lambda_.1} parent=1 // pred_region
      %66 = vsyncadd [#allocation9], 0
      %s68 = sshll.u32 %s4, 4
      %s69 = int_to_ptr.hbm [resolvable:$true] %s68
      %s70 = sshll.u32 [#allocation8], 4
      %s71 = int_to_ptr.vmem [resolvable:$true] %s70
      %73 = dma.hbm_to_vmem [thread:$0]  %s69, 64, %s71, [#allocation9]
    $region21: #{_lambda_.1} parent=1 // pred_fallthru
      _
    // Predicated region
    $region22: #{_lambda_.1} parent=1 // pred_check
      _
    $region23: #{_lambda_.1} parent=1 // pred_check_branch
      %75 = sbr.rel (0) target = $region25
    $region24: #{_lambda_.1} parent=1 // pred_region
      _
    $region25: #{_lambda_.1} parent=1 // pred_fallthru
      _
    // Predicated region
    $region26: #{_lambda_.1} parent=1 // pred_check
      _
    $region27: #{_lambda_.1} parent=1 // pred_check_branch
      %77 = sbr.rel (0) target = $region29
    $region28: #{_lambda_.1} parent=1 // pred_region
      _
    $region29: #{_lambda_.1} parent=1 // pred_fallthru
      _
    // Predicated region
    $region30: #{_lambda_.1} parent=1 // pred_check
      _
    $region31: #{_lambda_.1} parent=1 // pred_check_branch
      %79 = sbr.rel (0) target = $region33
    $region32: #{_lambda_.1} parent=1 // pred_region
      %81 = vsyncadd [#allocation9], 0
      %s82 = sshll.u32 %s7, 4
      %s83 = int_to_ptr.hbm [resolvable:$true] %s82
      %s84 = sshll.u32 [#allocation10], 4
      %s85 = int_to_ptr.vmem [resolvable:$true] %s84
      %90 = dma.hbm_to_vmem [thread:$0]  %s83, 16384, %s85, [#allocation9], 256, 256, 16
    $region33: #{_lambda_.1} parent=1 // pred_fallthru
      _
    // Predicated region
    $region34: #{_lambda_.1} parent=1 // pred_check
      _
    $region35: #{_lambda_.1} parent=1 // pred_check_branch
      %92 = sbr.rel (0) target = $region37
    $region36: #{_lambda_.1} parent=1 // pred_region
      %94 = vsyncadd [#allocation12], 0
      %s96 = sshll.u32 %s8, 4
      %s97 = int_to_ptr.hbm [resolvable:$true] %s96
      %s98 = sshll.u32 [#allocation11], 4
      %s99 = int_to_ptr.vmem [resolvable:$true] %s98
      %101 = dma.hbm_to_vmem [thread:$0]  %s97, 32, %s99, [#allocation12]
    $region37: #{_lambda_.1} parent=1 // pred_fallthru
      _
    // Predicated region
    $region38: #{_lambda_.1} parent=1 // pred_check
      _
    $region39: #{_lambda_.1} parent=1 // pred_check_branch
      %103 = sbr.rel (0) target = $region41
    $region40: #{_lambda_.1} parent=1 // pred_region
      _
    $region41: #{_lambda_.1} parent=1 // pred_fallthru
      _
    // Predicated region
    $region42: #{_lambda_.1} parent=1 // pred_check
      _
    $region43: #{_lambda_.1} parent=1 // pred_check_branch
      %105 = sbr.rel (0) target = $region45
    $region44: #{_lambda_.1} parent=1 // pred_region
      _
    $region45: #{_lambda_.1} parent=1 // pred_fallthru
      _
    // Predicated region
    $region46: #{_lambda_.1} parent=1 // pred_check
      _
    $region47: #{_lambda_.1} parent=1 // pred_check_branch
      %107 = sbr.rel (0) target = $region49
    $region48: #{_lambda_.1} parent=1 // pred_region
      %109 = vsyncadd [#allocation12], 0
      %s111 = sshll.u32 %s11, 4
      %s112 = int_to_ptr.hbm [resolvable:$true] %s111
      %s113 = sshll.u32 [#allocation13], 4
      %s114 = int_to_ptr.vmem [resolvable:$true] %s113
      %116 = dma.hbm_to_vmem [thread:$0]  %s112, 32, %s114, [#allocation12]
    $region49: #{_lambda_.1} parent=1 // pred_fallthru
      _
    // Predicated region
    $region50: #{_lambda_.1} parent=1 // pred_check
      _
    $region51: #{_lambda_.1} parent=1 // pred_check_branch
      %118 = sbr.rel (0) target = $region53
    $region52: #{_lambda_.1} parent=1 // pred_region
      _
    $region53: #{_lambda_.1} parent=1 // pred_fallthru
      _
    // Predicated region
    $region54: #{_lambda_.1} parent=1 // pred_check
      _
    $region55: #{_lambda_.1} parent=1 // pred_check_branch
      %120 = sbr.rel (0) target = $region57
    $region56: #{_lambda_.1} parent=1 // pred_region
      %122 = dma.done [#allocation4], 32768
    $region57: #{_lambda_.1} parent=1 // pred_fallthru
      _
    // Predicated region
    $region58: #{_lambda_.1} parent=1 // pred_check
      _
    $region59: #{_lambda_.1} parent=1 // pred_check_branch
      %124 = sbr.rel (0) target = $region61
    $region60: #{_lambda_.1} parent=1 // pred_region
      %126 = dma.done [#allocation6], 256
    $region61: #{_lambda_.1} parent=1 // pred_fallthru
      _
    // Predicated region
    $region62: #{_lambda_.1} parent=1 // pred_check
      _
    $region63: #{_lambda_.1} parent=1 // pred_check_branch
      %128 = sbr.rel (0) target = $region65
    $region64: #{_lambda_.1} parent=1 // pred_region
      %130 = dma.done [#allocation6], 65536
    $region65: #{_lambda_.1} parent=1 // pred_fallthru
      _
    // Predicated region
    $region66: #{_lambda_.1} parent=1 // pred_check
      _
    $region67: #{_lambda_.1} parent=1 // pred_check_branch
      %132 = sbr.rel (0) target = $region69
    $region68: #{_lambda_.1} parent=1 // pred_region
      %134 = dma.done [#allocation9], 64
    $region69: #{_lambda_.1} parent=1 // pred_fallthru
      _
    // Predicated region
    $region70: #{_lambda_.1} parent=1 // pred_check
      _
    $region71: #{_lambda_.1} parent=1 // pred_check_branch
      %136 = sbr.rel (0) target = $region73
    $region72: #{_lambda_.1} parent=1 // pred_region
      %138 = dma.done [#allocation9], 16384
    $region73: #{_lambda_.1} parent=1 // pred_fallthru
      _
    // Predicated region
    $region74: #{_lambda_.1} parent=1 // pred_check
      _
    $region75: #{_lambda_.1} parent=1 // pred_check_branch
      %140 = sbr.rel (0) target = $region77
    $region76: #{_lambda_.1} parent=1 // pred_region
      %142 = dma.done [#allocation12], 32
    $region77: #{_lambda_.1} parent=1 // pred_fallthru
      _
    // Predicated region
    $region78: #{_lambda_.1} parent=1 // pred_check
      _
    $region79: #{_lambda_.1} parent=1 // pred_check_branch
      %144 = sbr.rel (0) target = $region81
    $region80: #{_lambda_.1} parent=1 // pred_region
      %146 = dma.done [#allocation12], 32
    $region81: #{_lambda_.1} parent=1 // pred_fallthru
      _
    %v147 = vld [vmem:[%s0] sm:$0xff]
    %v148 = vld [vmem:[%s0 + $0x8] sm:$0xff]
    %v149 = vld [vmem:[#allocation3] sm:$0xff]
    %v150 = vld [vmem:[#allocation3 + $0x8] sm:$0xff]
    %v151 = vld [vmem:[#allocation3 + $0x10] sm:$0xff]
    %v152 = vld [vmem:[#allocation3 + $0x18] sm:$0xff]
    %v153 = vld [vmem:[#allocation3 + $0x20] sm:$0xff]
    %v154 = vld [vmem:[#allocation3 + $0x28] sm:$0xff]
    %v155 = vld [vmem:[#allocation3 + $0x30] sm:$0xff]
    %v156 = vld [vmem:[#allocation3 + $0x38] sm:$0xff]
    %v157 = vld [vmem:[#allocation3 + $0x40] sm:$0xff]
    %v158 = vld [vmem:[#allocation3 + $0x48] sm:$0xff]
    %v159 = vld [vmem:[#allocation3 + $0x50] sm:$0xff]
    %v160 = vld [vmem:[#allocation3 + $0x58] sm:$0xff]
    %v161 = vld [vmem:[#allocation3 + $0x60] sm:$0xff]
    %v162 = vld [vmem:[#allocation3 + $0x68] sm:$0xff]
    %v163 = vld [vmem:[#allocation3 + $0x70] sm:$0xff]
    %v164 = vld [vmem:[#allocation3 + $0x78] sm:$0xff]
    %v165 = vld [vmem:[#allocation3 + $0x80] sm:$0xff]
    %v166 = vld [vmem:[#allocation3 + $0x88] sm:$0xff]
    %v167 = vld [vmem:[#allocation3 + $0x90] sm:$0xff]
    %v168 = vld [vmem:[#allocation3 + $0x98] sm:$0xff]
    %v169 = vld [vmem:[#allocation3 + $0xa0] sm:$0xff]
    %v170 = vld [vmem:[#allocation3 + $0xa8] sm:$0xff]
    %v171 = vld [vmem:[#allocation3 + $0xb0] sm:$0xff]
    %v172 = vld [vmem:[#allocation3 + $0xb8] sm:$0xff]
    %v173 = vld [vmem:[#allocation3 + $0xc0] sm:$0xff]
    %v174 = vld [vmem:[#allocation3 + $0xc8] sm:$0xff]
    %v175 = vld [vmem:[#allocation3 + $0xd0] sm:$0xff]
    %v176 = vld [vmem:[#allocation3 + $0xd8] sm:$0xff]
    %v177 = vld [vmem:[#allocation3 + $0xe0] sm:$0xff]
    %v178 = vld [vmem:[#allocation3 + $0xe8] sm:$0xff]
    %v179 = vld [vmem:[#allocation3 + $0xf0] sm:$0xff]
    %v180 = vld [vmem:[#allocation3 + $0xf8] sm:$0xff]
    %v181 = vld [vmem:[#allocation3 + $0x100] sm:$0xff]
    %v182 = vld [vmem:[#allocation3 + $0x108] sm:$0xff]
    %v183 = vld [vmem:[#allocation3 + $0x110] sm:$0xff]
    %v184 = vld [vmem:[#allocation3 + $0x118] sm:$0xff]
    %v185 = vld [vmem:[#allocation3 + $0x120] sm:$0xff]
    %v186 = vld [vmem:[#allocation3 + $0x128] sm:$0xff]
    %v187 = vld [vmem:[#allocation3 + $0x130] sm:$0xff]
    %v188 = vld [vmem:[#allocation3 + $0x138] sm:$0xff]
    %v189 = vld [vmem:[#allocation3 + $0x140] sm:$0xff]
    %v190 = vld [vmem:[#allocation3 + $0x148] sm:$0xff]
    %v191 = vld [vmem:[#allocation3 + $0x150] sm:$0xff]
    %v192 = vld [vmem:[#allocation3 + $0x158] sm:$0xff]
    %v193 = vld [vmem:[#allocation3 + $0x160] sm:$0xff]
    %v194 = vld [vmem:[#allocation3 + $0x168] sm:$0xff]
    %v195 = vld [vmem:[#allocation3 + $0x170] sm:$0xff]
    %v196 = vld [vmem:[#allocation3 + $0x178] sm:$0xff]
    %v197 = vld [vmem:[#allocation3 + $0x180] sm:$0xff]
    %v198 = vld [vmem:[#allocation3 + $0x188] sm:$0xff]
    %v199 = vld [vmem:[#allocation3 + $0x190] sm:$0xff]
    %v200 = vld [vmem:[#allocation3 + $0x198] sm:$0xff]
    %v201 = vld [vmem:[#allocation3 + $0x1a0] sm:$0xff]
    %v202 = vld [vmem:[#allocation3 + $0x1a8] sm:$0xff]
    %v203 = vld [vmem:[#allocation3 + $0x1b0] sm:$0xff]
    %v204 = vld [vmem:[#allocation3 + $0x1b8] sm:$0xff]
    %v205 = vld [vmem:[#allocation3 + $0x1c0] sm:$0xff]
    %v206 = vld [vmem:[#allocation3 + $0x1c8] sm:$0xff]
    %v207 = vld [vmem:[#allocation3 + $0x1d0] sm:$0xff]
    %v208 = vld [vmem:[#allocation3 + $0x1d8] sm:$0xff]
    %v209 = vld [vmem:[#allocation3 + $0x1e0] sm:$0xff]
    %v210 = vld [vmem:[#allocation3 + $0x1e8] sm:$0xff]
    %v211 = vld [vmem:[#allocation3 + $0x1f0] sm:$0xff]
    %v212 = vld [vmem:[#allocation3 + $0x1f8] sm:$0xff]
    %v213 = vld [vmem:[#allocation3 + $0x200] sm:$0xff]
    %v214 = vld [vmem:[#allocation3 + $0x208] sm:$0xff]
    %v215 = vld [vmem:[#allocation3 + $0x210] sm:$0xff]
    %v216 = vld [vmem:[#allocation3 + $0x218] sm:$0xff]
    %v217 = vld [vmem:[#allocation3 + $0x220] sm:$0xff]
    %v218 = vld [vmem:[#allocation3 + $0x228] sm:$0xff]
    %v219 = vld [vmem:[#allocation3 + $0x230] sm:$0xff]
    %v220 = vld [vmem:[#allocation3 + $0x238] sm:$0xff]
    %v221 = vld [vmem:[#allocation3 + $0x240] sm:$0xff]
    %v222 = vld [vmem:[#allocation3 + $0x248] sm:$0xff]
    %v223 = vld [vmem:[#allocation3 + $0x250] sm:$0xff]
    %v224 = vld [vmem:[#allocation3 + $0x258] sm:$0xff]
    %v225 = vld [vmem:[#allocation3 + $0x260] sm:$0xff]
    %v226 = vld [vmem:[#allocation3 + $0x268] sm:$0xff]
    %v227 = vld [vmem:[#allocation3 + $0x270] sm:$0xff]
    %v228 = vld [vmem:[#allocation3 + $0x278] sm:$0xff]
    %v229 = vld [vmem:[#allocation3 + $0x280] sm:$0xff]
    %v230 = vld [vmem:[#allocation3 + $0x288] sm:$0xff]
    %v231 = vld [vmem:[#allocation3 + $0x290] sm:$0xff]
    %v232 = vld [vmem:[#allocation3 + $0x298] sm:$0xff]
    %v233 = vld [vmem:[#allocation3 + $0x2a0] sm:$0xff]
    %v234 = vld [vmem:[#allocation3 + $0x2a8] sm:$0xff]
    %v235 = vld [vmem:[#allocation3 + $0x2b0] sm:$0xff]
    %v236 = vld [vmem:[#allocation3 + $0x2b8] sm:$0xff]
    %v237 = vld [vmem:[#allocation3 + $0x2c0] sm:$0xff]
    %v238 = vld [vmem:[#allocation3 + $0x2c8] sm:$0xff]
    %v239 = vld [vmem:[#allocation3 + $0x2d0] sm:$0xff]
    %v240 = vld [vmem:[#allocation3 + $0x2d8] sm:$0xff]
    %v241 = vld [vmem:[#allocation3 + $0x2e0] sm:$0xff]
    %v242 = vld [vmem:[#allocation3 + $0x2e8] sm:$0xff]
    %v243 = vld [vmem:[#allocation3 + $0x2f0] sm:$0xff]
    %v244 = vld [vmem:[#allocation3 + $0x2f8] sm:$0xff]
    %v245 = vld [vmem:[#allocation3 + $0x300] sm:$0xff]
    %v246 = vld [vmem:[#allocation3 + $0x308] sm:$0xff]
    %v247 = vld [vmem:[#allocation3 + $0x310] sm:$0xff]
    %v248 = vld [vmem:[#allocation3 + $0x318] sm:$0xff]
    %v249 = vld [vmem:[#allocation3 + $0x320] sm:$0xff]
    %v250 = vld [vmem:[#allocation3 + $0x328] sm:$0xff]
    %v251 = vld [vmem:[#allocation3 + $0x330] sm:$0xff]
    %v252 = vld [vmem:[#allocation3 + $0x338] sm:$0xff]
    %v253 = vld [vmem:[#allocation3 + $0x340] sm:$0xff]
    %v254 = vld [vmem:[#allocation3 + $0x348] sm:$0xff]
    %v255 = vld [vmem:[#allocation3 + $0x350] sm:$0xff]
    %v256 = vld [vmem:[#allocation3 + $0x358] sm:$0xff]
    %v257 = vld [vmem:[#allocation3 + $0x360] sm:$0xff]
    %v258 = vld [vmem:[#allocation3 + $0x368] sm:$0xff]
    %v259 = vld [vmem:[#allocation3 + $0x370] sm:$0xff]
    %v260 = vld [vmem:[#allocation3 + $0x378] sm:$0xff]
    %v261 = vld [vmem:[#allocation3 + $0x380] sm:$0xff]
    %v262 = vld [vmem:[#allocation3 + $0x388] sm:$0xff]
    %v263 = vld [vmem:[#allocation3 + $0x390] sm:$0xff]
    %v264 = vld [vmem:[#allocation3 + $0x398] sm:$0xff]
    %v265 = vld [vmem:[#allocation3 + $0x3a0] sm:$0xff]
    %v266 = vld [vmem:[#allocation3 + $0x3a8] sm:$0xff]
    %v267 = vld [vmem:[#allocation3 + $0x3b0] sm:$0xff]
    %v268 = vld [vmem:[#allocation3 + $0x3b8] sm:$0xff]
    %v269 = vld [vmem:[#allocation3 + $0x3c0] sm:$0xff]
    %v270 = vld [vmem:[#allocation3 + $0x3c8] sm:$0xff]
    %v271 = vld [vmem:[#allocation3 + $0x3d0] sm:$0xff]
    %v272 = vld [vmem:[#allocation3 + $0x3d8] sm:$0xff]
    %v273 = vld [vmem:[#allocation3 + $0x3e0] sm:$0xff]
    %v274 = vld [vmem:[#allocation3 + $0x3e8] sm:$0xff]
    %v275 = vld [vmem:[#allocation3 + $0x3f0] sm:$0xff]
    %v276 = vld [vmem:[#allocation3 + $0x3f8] sm:$0xff]
    %v277 = vld [vmem:[#allocation3 + $0x400] sm:$0xff]
    %v278 = vld [vmem:[#allocation3 + $0x408] sm:$0xff]
    %v279 = vld [vmem:[#allocation3 + $0x410] sm:$0xff]
    %v280 = vld [vmem:[#allocation3 + $0x418] sm:$0xff]
    %v281 = vld [vmem:[#allocation3 + $0x420] sm:$0xff]
    %v282 = vld [vmem:[#allocation3 + $0x428] sm:$0xff]
    %v283 = vld [vmem:[#allocation3 + $0x430] sm:$0xff]
    %v284 = vld [vmem:[#allocation3 + $0x438] sm:$0xff]
    %v285 = vld [vmem:[#allocation3 + $0x440] sm:$0xff]
    %v286 = vld [vmem:[#allocation3 + $0x448] sm:$0xff]
    %v287 = vld [vmem:[#allocation3 + $0x450] sm:$0xff]
    %v288 = vld [vmem:[#allocation3 + $0x458] sm:$0xff]
    %v289 = vld [vmem:[#allocation3 + $0x460] sm:$0xff]
    %v290 = vld [vmem:[#allocation3 + $0x468] sm:$0xff]
    %v291 = vld [vmem:[#allocation3 + $0x470] sm:$0xff]
    %v292 = vld [vmem:[#allocation3 + $0x478] sm:$0xff]
    %v293 = vld [vmem:[#allocation3 + $0x480] sm:$0xff]
    %v294 = vld [vmem:[#allocation3 + $0x488] sm:$0xff]
    %v295 = vld [vmem:[#allocation3 + $0x490] sm:$0xff]
    %v296 = vld [vmem:[#allocation3 + $0x498] sm:$0xff]
    %v297 = vld [vmem:[#allocation3 + $0x4a0] sm:$0xff]
    %v298 = vld [vmem:[#allocation3 + $0x4a8] sm:$0xff]
    %v299 = vld [vmem:[#allocation3 + $0x4b0] sm:$0xff]
    %v300 = vld [vmem:[#allocation3 + $0x4b8] sm:$0xff]
    %v301 = vld [vmem:[#allocation3 + $0x4c0] sm:$0xff]
    %v302 = vld [vmem:[#allocation3 + $0x4c8] sm:$0xff]
    %v303 = vld [vmem:[#allocation3 + $0x4d0] sm:$0xff]
    %v304 = vld [vmem:[#allocation3 + $0x4d8] sm:$0xff]
    %v305 = vld [vmem:[#allocation3 + $0x4e0] sm:$0xff]
    %v306 = vld [vmem:[#allocation3 + $0x4e8] sm:$0xff]
    %v307 = vld [vmem:[#allocation3 + $0x4f0] sm:$0xff]
    %v308 = vld [vmem:[#allocation3 + $0x4f8] sm:$0xff]
    %v309 = vld [vmem:[#allocation3 + $0x500] sm:$0xff]
    %v310 = vld [vmem:[#allocation3 + $0x508] sm:$0xff]
    %v311 = vld [vmem:[#allocation3 + $0x510] sm:$0xff]
    %v312 = vld [vmem:[#allocation3 + $0x518] sm:$0xff]
    %v313 = vld [vmem:[#allocation3 + $0x520] sm:$0xff]
    %v314 = vld [vmem:[#allocation3 + $0x528] sm:$0xff]
    %v315 = vld [vmem:[#allocation3 + $0x530] sm:$0xff]
    %v316 = vld [vmem:[#allocation3 + $0x538] sm:$0xff]
    %v317 = vld [vmem:[#allocation3 + $0x540] sm:$0xff]
    %v318 = vld [vmem:[#allocation3 + $0x548] sm:$0xff]
    %v319 = vld [vmem:[#allocation3 + $0x550] sm:$0xff]
    %v320 = vld [vmem:[#allocation3 + $0x558] sm:$0xff]
    %v321 = vld [vmem:[#allocation3 + $0x560] sm:$0xff]
    %v322 = vld [vmem:[#allocation3 + $0x568] sm:$0xff]
    %v323 = vld [vmem:[#allocation3 + $0x570] sm:$0xff]
    %v324 = vld [vmem:[#allocation3 + $0x578] sm:$0xff]
    %v325 = vld [vmem:[#allocation3 + $0x580] sm:$0xff]
    %v326 = vld [vmem:[#allocation3 + $0x588] sm:$0xff]
    %v327 = vld [vmem:[#allocation3 + $0x590] sm:$0xff]
    %v328 = vld [vmem:[#allocation3 + $0x598] sm:$0xff]
    %v329 = vld [vmem:[#allocation3 + $0x5a0] sm:$0xff]
    %v330 = vld [vmem:[#allocation3 + $0x5a8] sm:$0xff]
    %v331 = vld [vmem:[#allocation3 + $0x5b0] sm:$0xff]
    %v332 = vld [vmem:[#allocation3 + $0x5b8] sm:$0xff]
    %v333 = vld [vmem:[#allocation3 + $0x5c0] sm:$0xff]
    %v334 = vld [vmem:[#allocation3 + $0x5c8] sm:$0xff]
    %v335 = vld [vmem:[#allocation3 + $0x5d0] sm:$0xff]
    %v336 = vld [vmem:[#allocation3 + $0x5d8] sm:$0xff]
    %v337 = vld [vmem:[#allocation3 + $0x5e0] sm:$0xff]
    %v338 = vld [vmem:[#allocation3 + $0x5e8] sm:$0xff]
    %v339 = vld [vmem:[#allocation3 + $0x5f0] sm:$0xff]
    %v340 = vld [vmem:[#allocation3 + $0x5f8] sm:$0xff]
    %v341 = vld [vmem:[#allocation3 + $0x600] sm:$0xff]
    %v342 = vld [vmem:[#allocation3 + $0x608] sm:$0xff]
    %v343 = vld [vmem:[#allocation3 + $0x610] sm:$0xff]
    %v344 = vld [vmem:[#allocation3 + $0x618] sm:$0xff]
    %v345 = vld [vmem:[#allocation3 + $0x620] sm:$0xff]
    %v346 = vld [vmem:[#allocation3 + $0x628] sm:$0xff]
    %v347 = vld [vmem:[#allocation3 + $0x630] sm:$0xff]
    %v348 = vld [vmem:[#allocation3 + $0x638] sm:$0xff]
    %v349 = vld [vmem:[#allocation3 + $0x640] sm:$0xff]
    %v350 = vld [vmem:[#allocation3 + $0x648] sm:$0xff]
    %v351 = vld [vmem:[#allocation3 + $0x650] sm:$0xff]
    %v352 = vld [vmem:[#allocation3 + $0x658] sm:$0xff]
    %v353 = vld [vmem:[#allocation3 + $0x660] sm:$0xff]
    %v354 = vld [vmem:[#allocation3 + $0x668] sm:$0xff]
    %v355 = vld [vmem:[#allocation3 + $0x670] sm:$0xff]
    %v356 = vld [vmem:[#allocation3 + $0x678] sm:$0xff]
    %v357 = vld [vmem:[#allocation3 + $0x680] sm:$0xff]
    %v358 = vld [vmem:[#allocation3 + $0x688] sm:$0xff]
    %v359 = vld [vmem:[#allocation3 + $0x690] sm:$0xff]
    %v360 = vld [vmem:[#allocation3 + $0x698] sm:$0xff]
    %v361 = vld [vmem:[#allocation3 + $0x6a0] sm:$0xff]
    %v362 = vld [vmem:[#allocation3 + $0x6a8] sm:$0xff]
    %v363 = vld [vmem:[#allocation3 + $0x6b0] sm:$0xff]
    %v364 = vld [vmem:[#allocation3 + $0x6b8] sm:$0xff]
    %v365 = vld [vmem:[#allocation3 + $0x6c0] sm:$0xff]
    %v366 = vld [vmem:[#allocation3 + $0x6c8] sm:$0xff]
    %v367 = vld [vmem:[#allocation3 + $0x6d0] sm:$0xff]
    %v368 = vld [vmem:[#allocation3 + $0x6d8] sm:$0xff]
    %v369 = vld [vmem:[#allocation3 + $0x6e0] sm:$0xff]
    %v370 = vld [vmem:[#allocation3 + $0x6e8] sm:$0xff]
    %v371 = vld [vmem:[#allocation3 + $0x6f0] sm:$0xff]
    %v372 = vld [vmem:[#allocation3 + $0x6f8] sm:$0xff]
    %v373 = vld [vmem:[#allocation3 + $0x700] sm:$0xff]
    %v374 = vld [vmem:[#allocation3 + $0x708] sm:$0xff]
    %v375 = vld [vmem:[#allocation3 + $0x710] sm:$0xff]
    %v376 = vld [vmem:[#allocation3 + $0x718] sm:$0xff]
    %v377 = vld [vmem:[#allocation3 + $0x720] sm:$0xff]
    %v378 = vld [vmem:[#allocation3 + $0x728] sm:$0xff]
    %v379 = vld [vmem:[#allocation3 + $0x730] sm:$0xff]
    %v380 = vld [vmem:[#allocation3 + $0x738] sm:$0xff]
    %v381 = vld [vmem:[#allocation3 + $0x740] sm:$0xff]
    %v382 = vld [vmem:[#allocation3 + $0x748] sm:$0xff]
    %v383 = vld [vmem:[#allocation3 + $0x750] sm:$0xff]
    %v384 = vld [vmem:[#allocation3 + $0x758] sm:$0xff]
    %v385 = vld [vmem:[#allocation3 + $0x760] sm:$0xff]
    %v386 = vld [vmem:[#allocation3 + $0x768] sm:$0xff]
    %v387 = vld [vmem:[#allocation3 + $0x770] sm:$0xff]
    %v388 = vld [vmem:[#allocation3 + $0x778] sm:$0xff]
    %v389 = vld [vmem:[#allocation3 + $0x780] sm:$0xff]
    %v390 = vld [vmem:[#allocation3 + $0x788] sm:$0xff]
    %v391 = vld [vmem:[#allocation3 + $0x790] sm:$0xff]
    %v392 = vld [vmem:[#allocation3 + $0x798] sm:$0xff]
    %v393 = vld [vmem:[#allocation3 + $0x7a0] sm:$0xff]
    %v394 = vld [vmem:[#allocation3 + $0x7a8] sm:$0xff]
    %v395 = vld [vmem:[#allocation3 + $0x7b0] sm:$0xff]
    %v396 = vld [vmem:[#allocation3 + $0x7b8] sm:$0xff]
    %v397 = vld [vmem:[#allocation3 + $0x7c0] sm:$0xff]
    %v398 = vld [vmem:[#allocation3 + $0x7c8] sm:$0xff]
    %v399 = vld [vmem:[#allocation3 + $0x7d0] sm:$0xff]
    %v400 = vld [vmem:[#allocation3 + $0x7d8] sm:$0xff]
    %v401 = vld [vmem:[#allocation3 + $0x7e0] sm:$0xff]
    %v402 = vld [vmem:[#allocation3 + $0x7e8] sm:$0xff]
    %v403 = vld [vmem:[#allocation3 + $0x7f0] sm:$0xff]
    %v404 = vld [vmem:[#allocation3 + $0x7f8] sm:$0xff]
    %v405 = vld [vmem:[#allocation5] sm:$0xff]
    %v406 = vld [vmem:[#allocation5 + $0x8] sm:$0xff]
    %v409 = vperm.slane %v405, 0
    %v410 = vperm.slane %v405, 1
    %v411 = vperm.slane %v405, 2
    %v412 = vperm.slane %v405, 3
    %v413 = vperm.slane %v405, 4
    %v414 = vperm.slane %v405, 5
    %v415 = vperm.slane %v405, 6
    %v416 = vperm.slane %v405, 7
    %v417 = vperm.slane %v406, 0
    %v418 = vperm.slane %v406, 1
    %v419 = vperm.slane %v406, 2
    %v420 = vperm.slane %v406, 3
    %v421 = vperm.slane %v406, 4
    %v422 = vperm.slane %v406, 5
    %v423 = vperm.slane %v406, 6
    %v424 = vperm.slane %v406, 7
    %v443 = vunpack.c.l.b16 %v147
    %v444 = vunpack.c.h.b16 %v147
    %v445 = vunpack.c.l.b16 %v148
    %v446 = vunpack.c.h.b16 %v148
    %v447 = vpack.c.b16 %v445, %v443
    %v448 = vpack.c.b16 %v446, %v444
    %v707 = vunpack.c.l.b16 %v149
    %v708 = vunpack.c.h.b16 %v149
    %v709 = vunpack.c.l.b16 %v150
    %v710 = vunpack.c.h.b16 %v150
    %v711 = vunpack.c.l.b16 %v151
    %v712 = vunpack.c.h.b16 %v151
    %v713 = vunpack.c.l.b16 %v152
    %v714 = vunpack.c.h.b16 %v152
    %v715 = vunpack.c.l.b16 %v153
    %v716 = vunpack.c.h.b16 %v153
    %v717 = vunpack.c.l.b16 %v154
    %v718 = vunpack.c.h.b16 %v154
    %v719 = vunpack.c.l.b16 %v155
    %v720 = vunpack.c.h.b16 %v155
    %v721 = vunpack.c.l.b16 %v156
    %v722 = vunpack.c.h.b16 %v156
    %v723 = vunpack.c.l.b16 %v157
    %v724 = vunpack.c.h.b16 %v157
    %v725 = vunpack.c.l.b16 %v158
    %v726 = vunpack.c.h.b16 %v158
    %v727 = vunpack.c.l.b16 %v159
    %v728 = vunpack.c.h.b16 %v159
    %v729 = vunpack.c.l.b16 %v160
    %v730 = vunpack.c.h.b16 %v160
    %v731 = vunpack.c.l.b16 %v161
    %v732 = vunpack.c.h.b16 %v161
    %v733 = vunpack.c.l.b16 %v162
    %v734 = vunpack.c.h.b16 %v162
    %v735 = vunpack.c.l.b16 %v163
    %v736 = vunpack.c.h.b16 %v163
    %v737 = vunpack.c.l.b16 %v164
    %v738 = vunpack.c.h.b16 %v164
    %v739 = vunpack.c.l.b16 %v165
    %v740 = vunpack.c.h.b16 %v165
    %v741 = vunpack.c.l.b16 %v166
    %v742 = vunpack.c.h.b16 %v166
    %v743 = vunpack.c.l.b16 %v167
    %v744 = vunpack.c.h.b16 %v167
    %v745 = vunpack.c.l.b16 %v168
    %v746 = vunpack.c.h.b16 %v168
    %v747 = vunpack.c.l.b16 %v169
    %v748 = vunpack.c.h.b16 %v169
    %v749 = vunpack.c.l.b16 %v170
    %v750 = vunpack.c.h.b16 %v170
    %v751 = vunpack.c.l.b16 %v171
    %v752 = vunpack.c.h.b16 %v171
    %v753 = vunpack.c.l.b16 %v172
    %v754 = vunpack.c.h.b16 %v172
    %v755 = vunpack.c.l.b16 %v173
    %v756 = vunpack.c.h.b16 %v173
    %v757 = vunpack.c.l.b16 %v174
    %v758 = vunpack.c.h.b16 %v174
    %v759 = vunpack.c.l.b16 %v175
    %v760 = vunpack.c.h.b16 %v175
    %v761 = vunpack.c.l.b16 %v176
    %v762 = vunpack.c.h.b16 %v176
    %v763 = vunpack.c.l.b16 %v177
    %v764 = vunpack.c.h.b16 %v177
    %v765 = vunpack.c.l.b16 %v178
    %v766 = vunpack.c.h.b16 %v178
    %v767 = vunpack.c.l.b16 %v179
    %v768 = vunpack.c.h.b16 %v179
    %v769 = vunpack.c.l.b16 %v180
    %v770 = vunpack.c.h.b16 %v180
    %v771 = vunpack.c.l.b16 %v181
    %v772 = vunpack.c.h.b16 %v181
    %v773 = vunpack.c.l.b16 %v182
    %v774 = vunpack.c.h.b16 %v182
    %v775 = vunpack.c.l.b16 %v183
    %v776 = vunpack.c.h.b16 %v183
    %v777 = vunpack.c.l.b16 %v184
    %v778 = vunpack.c.h.b16 %v184
    %v779 = vunpack.c.l.b16 %v185
    %v780 = vunpack.c.h.b16 %v185
    %v781 = vunpack.c.l.b16 %v186
    %v782 = vunpack.c.h.b16 %v186
    %v783 = vunpack.c.l.b16 %v187
    %v784 = vunpack.c.h.b16 %v187
    %v785 = vunpack.c.l.b16 %v188
    %v786 = vunpack.c.h.b16 %v188
    %v787 = vunpack.c.l.b16 %v189
    %v788 = vunpack.c.h.b16 %v189
    %v789 = vunpack.c.l.b16 %v190
    %v790 = vunpack.c.h.b16 %v190
    %v791 = vunpack.c.l.b16 %v191
    %v792 = vunpack.c.h.b16 %v191
    %v793 = vunpack.c.l.b16 %v192
    %v794 = vunpack.c.h.b16 %v192
    %v795 = vunpack.c.l.b16 %v193
    %v796 = vunpack.c.h.b16 %v193
    %v797 = vunpack.c.l.b16 %v194
    %v798 = vunpack.c.h.b16 %v194
    %v799 = vunpack.c.l.b16 %v195
    %v800 = vunpack.c.h.b16 %v195
    %v801 = vunpack.c.l.b16 %v196
    %v802 = vunpack.c.h.b16 %v196
    %v803 = vunpack.c.l.b16 %v197
    %v804 = vunpack.c.h.b16 %v197
    %v805 = vunpack.c.l.b16 %v198
    %v806 = vunpack.c.h.b16 %v198
    %v807 = vunpack.c.l.b16 %v199
    %v808 = vunpack.c.h.b16 %v199
    %v809 = vunpack.c.l.b16 %v200
    %v810 = vunpack.c.h.b16 %v200
    %v811 = vunpack.c.l.b16 %v201
    %v812 = vunpack.c.h.b16 %v201
    %v813 = vunpack.c.l.b16 %v202
    %v814 = vunpack.c.h.b16 %v202
    %v815 = vunpack.c.l.b16 %v203
    %v816 = vunpack.c.h.b16 %v203
    %v817 = vunpack.c.l.b16 %v204
    %v818 = vunpack.c.h.b16 %v204
    %v819 = vunpack.c.l.b16 %v205
    %v820 = vunpack.c.h.b16 %v205
    %v821 = vunpack.c.l.b16 %v206
    %v822 = vunpack.c.h.b16 %v206
    %v823 = vunpack.c.l.b16 %v207
    %v824 = vunpack.c.h.b16 %v207
    %v825 = vunpack.c.l.b16 %v208
    %v826 = vunpack.c.h.b16 %v208
    %v827 = vunpack.c.l.b16 %v209
    %v828 = vunpack.c.h.b16 %v209
    %v829 = vunpack.c.l.b16 %v210
    %v830 = vunpack.c.h.b16 %v210
    %v831 = vunpack.c.l.b16 %v211
    %v832 = vunpack.c.h.b16 %v211
    %v833 = vunpack.c.l.b16 %v212
    %v834 = vunpack.c.h.b16 %v212
    %v835 = vunpack.c.l.b16 %v213
    %v836 = vunpack.c.h.b16 %v213
    %v837 = vunpack.c.l.b16 %v214
    %v838 = vunpack.c.h.b16 %v214
    %v839 = vunpack.c.l.b16 %v215
    %v840 = vunpack.c.h.b16 %v215
    %v841 = vunpack.c.l.b16 %v216
    %v842 = vunpack.c.h.b16 %v216
    %v843 = vunpack.c.l.b16 %v217
    %v844 = vunpack.c.h.b16 %v217
    %v845 = vunpack.c.l.b16 %v218
    %v846 = vunpack.c.h.b16 %v218
    %v847 = vunpack.c.l.b16 %v219
    %v848 = vunpack.c.h.b16 %v219
    %v849 = vunpack.c.l.b16 %v220
    %v850 = vunpack.c.h.b16 %v220
    %v851 = vunpack.c.l.b16 %v221
    %v852 = vunpack.c.h.b16 %v221
    %v853 = vunpack.c.l.b16 %v222
    %v854 = vunpack.c.h.b16 %v222
    %v855 = vunpack.c.l.b16 %v223
    %v856 = vunpack.c.h.b16 %v223
    %v857 = vunpack.c.l.b16 %v224
    %v858 = vunpack.c.h.b16 %v224
    %v859 = vunpack.c.l.b16 %v225
    %v860 = vunpack.c.h.b16 %v225
    %v861 = vunpack.c.l.b16 %v226
    %v862 = vunpack.c.h.b16 %v226
    %v863 = vunpack.c.l.b16 %v227
    %v864 = vunpack.c.h.b16 %v227
    %v865 = vunpack.c.l.b16 %v228
    %v866 = vunpack.c.h.b16 %v228
    %v867 = vunpack.c.l.b16 %v229
    %v868 = vunpack.c.h.b16 %v229
    %v869 = vunpack.c.l.b16 %v230
    %v870 = vunpack.c.h.b16 %v230
    %v871 = vunpack.c.l.b16 %v231
    %v872 = vunpack.c.h.b16 %v231
    %v873 = vunpack.c.l.b16 %v232
    %v874 = vunpack.c.h.b16 %v232
    %v875 = vunpack.c.l.b16 %v233
    %v876 = vunpack.c.h.b16 %v233
    %v877 = vunpack.c.l.b16 %v234
    %v878 = vunpack.c.h.b16 %v234
    %v879 = vunpack.c.l.b16 %v235
    %v880 = vunpack.c.h.b16 %v235
    %v881 = vunpack.c.l.b16 %v236
    %v882 = vunpack.c.h.b16 %v236
    %v883 = vunpack.c.l.b16 %v237
    %v884 = vunpack.c.h.b16 %v237
    %v885 = vunpack.c.l.b16 %v238
    %v886 = vunpack.c.h.b16 %v238
    %v887 = vunpack.c.l.b16 %v239
    %v888 = vunpack.c.h.b16 %v239
    %v889 = vunpack.c.l.b16 %v240
    %v890 = vunpack.c.h.b16 %v240
    %v891 = vunpack.c.l.b16 %v241
    %v892 = vunpack.c.h.b16 %v241
    %v893 = vunpack.c.l.b16 %v242
    %v894 = vunpack.c.h.b16 %v242
    %v895 = vunpack.c.l.b16 %v243
    %v896 = vunpack.c.h.b16 %v243
    %v897 = vunpack.c.l.b16 %v244
    %v898 = vunpack.c.h.b16 %v244
    %v899 = vunpack.c.l.b16 %v245
    %v900 = vunpack.c.h.b16 %v245
    %v901 = vunpack.c.l.b16 %v246
    %v902 = vunpack.c.h.b16 %v246
    %v903 = vunpack.c.l.b16 %v247
    %v904 = vunpack.c.h.b16 %v247
    %v905 = vunpack.c.l.b16 %v248
    %v906 = vunpack.c.h.b16 %v248
    %v907 = vunpack.c.l.b16 %v249
    %v908 = vunpack.c.h.b16 %v249
    %v909 = vunpack.c.l.b16 %v250
    %v910 = vunpack.c.h.b16 %v250
    %v911 = vunpack.c.l.b16 %v251
    %v912 = vunpack.c.h.b16 %v251
    %v913 = vunpack.c.l.b16 %v252
    %v914 = vunpack.c.h.b16 %v252
    %v915 = vunpack.c.l.b16 %v253
    %v916 = vunpack.c.h.b16 %v253
    %v917 = vunpack.c.l.b16 %v254
    %v918 = vunpack.c.h.b16 %v254
    %v919 = vunpack.c.l.b16 %v255
    %v920 = vunpack.c.h.b16 %v255
    %v921 = vunpack.c.l.b16 %v256
    %v922 = vunpack.c.h.b16 %v256
    %v923 = vunpack.c.l.b16 %v257
    %v924 = vunpack.c.h.b16 %v257
    %v925 = vunpack.c.l.b16 %v258
    %v926 = vunpack.c.h.b16 %v258
    %v927 = vunpack.c.l.b16 %v259
    %v928 = vunpack.c.h.b16 %v259
    %v929 = vunpack.c.l.b16 %v260
    %v930 = vunpack.c.h.b16 %v260
    %v931 = vunpack.c.l.b16 %v261
    %v932 = vunpack.c.h.b16 %v261
    %v933 = vunpack.c.l.b16 %v262
    %v934 = vunpack.c.h.b16 %v262
    %v935 = vunpack.c.l.b16 %v263
    %v936 = vunpack.c.h.b16 %v263
    %v937 = vunpack.c.l.b16 %v264
    %v938 = vunpack.c.h.b16 %v264
    %v939 = vunpack.c.l.b16 %v265
    %v940 = vunpack.c.h.b16 %v265
    %v941 = vunpack.c.l.b16 %v266
    %v942 = vunpack.c.h.b16 %v266
    %v943 = vunpack.c.l.b16 %v267
    %v944 = vunpack.c.h.b16 %v267
    %v945 = vunpack.c.l.b16 %v268
    %v946 = vunpack.c.h.b16 %v268
    %v947 = vunpack.c.l.b16 %v269
    %v948 = vunpack.c.h.b16 %v269
    %v949 = vunpack.c.l.b16 %v270
    %v950 = vunpack.c.h.b16 %v270
    %v951 = vunpack.c.l.b16 %v271
    %v952 = vunpack.c.h.b16 %v271
    %v953 = vunpack.c.l.b16 %v272
    %v954 = vunpack.c.h.b16 %v272
    %v955 = vunpack.c.l.b16 %v273
    %v956 = vunpack.c.h.b16 %v273
    %v957 = vunpack.c.l.b16 %v274
    %v958 = vunpack.c.h.b16 %v274
    %v959 = vunpack.c.l.b16 %v275
    %v960 = vunpack.c.h.b16 %v275
    %v961 = vunpack.c.l.b16 %v276
    %v962 = vunpack.c.h.b16 %v276
    %v963 = vunpack.c.l.b16 %v277
    %v964 = vunpack.c.h.b16 %v277
    %v965 = vunpack.c.l.b16 %v278
    %v966 = vunpack.c.h.b16 %v278
    %v967 = vunpack.c.l.b16 %v279
    %v968 = vunpack.c.h.b16 %v279
    %v969 = vunpack.c.l.b16 %v280
    %v970 = vunpack.c.h.b16 %v280
    %v971 = vunpack.c.l.b16 %v281
    %v972 = vunpack.c.h.b16 %v281
    %v973 = vunpack.c.l.b16 %v282
    %v974 = vunpack.c.h.b16 %v282
    %v975 = vunpack.c.l.b16 %v283
    %v976 = vunpack.c.h.b16 %v283
    %v977 = vunpack.c.l.b16 %v284
    %v978 = vunpack.c.h.b16 %v284
    %v979 = vunpack.c.l.b16 %v285
    %v980 = vunpack.c.h.b16 %v285
    %v981 = vunpack.c.l.b16 %v286
    %v982 = vunpack.c.h.b16 %v286
    %v983 = vunpack.c.l.b16 %v287
    %v984 = vunpack.c.h.b16 %v287
    %v985 = vunpack.c.l.b16 %v288
    %v986 = vunpack.c.h.b16 %v288
    %v987 = vunpack.c.l.b16 %v289
    %v988 = vunpack.c.h.b16 %v289
    %v989 = vunpack.c.l.b16 %v290
    %v990 = vunpack.c.h.b16 %v290
    %v991 = vunpack.c.l.b16 %v291
    %v992 = vunpack.c.h.b16 %v291
    %v993 = vunpack.c.l.b16 %v292
    %v994 = vunpack.c.h.b16 %v292
    %v995 = vunpack.c.l.b16 %v293
    %v996 = vunpack.c.h.b16 %v293
    %v997 = vunpack.c.l.b16 %v294
    %v998 = vunpack.c.h.b16 %v294
    %v999 = vunpack.c.l.b16 %v295
    %v1000 = vunpack.c.h.b16 %v295
    %v1001 = vunpack.c.l.b16 %v296
    %v1002 = vunpack.c.h.b16 %v296
    %v1003 = vunpack.c.l.b16 %v297
    %v1004 = vunpack.c.h.b16 %v297
    %v1005 = vunpack.c.l.b16 %v298
    %v1006 = vunpack.c.h.b16 %v298
    %v1007 = vunpack.c.l.b16 %v299
    %v1008 = vunpack.c.h.b16 %v299
    %v1009 = vunpack.c.l.b16 %v300
    %v1010 = vunpack.c.h.b16 %v300
    %v1011 = vunpack.c.l.b16 %v301
    %v1012 = vunpack.c.h.b16 %v301
    %v1013 = vunpack.c.l.b16 %v302
    %v1014 = vunpack.c.h.b16 %v302
    %v1015 = vunpack.c.l.b16 %v303
    %v1016 = vunpack.c.h.b16 %v303
    %v1017 = vunpack.c.l.b16 %v304
    %v1018 = vunpack.c.h.b16 %v304
    %v1019 = vunpack.c.l.b16 %v305
    %v1020 = vunpack.c.h.b16 %v305
    %v1021 = vunpack.c.l.b16 %v306
    %v1022 = vunpack.c.h.b16 %v306
    %v1023 = vunpack.c.l.b16 %v307
    %v1024 = vunpack.c.h.b16 %v307
    %v1025 = vunpack.c.l.b16 %v308
    %v1026 = vunpack.c.h.b16 %v308
    %v1027 = vunpack.c.l.b16 %v309
    %v1028 = vunpack.c.h.b16 %v309
    %v1029 = vunpack.c.l.b16 %v310
    %v1030 = vunpack.c.h.b16 %v310
    %v1031 = vunpack.c.l.b16 %v311
    %v1032 = vunpack.c.h.b16 %v311
    %v1033 = vunpack.c.l.b16 %v312
    %v1034 = vunpack.c.h.b16 %v312
    %v1035 = vunpack.c.l.b16 %v313
    %v1036 = vunpack.c.h.b16 %v313
    %v1037 = vunpack.c.l.b16 %v314
    %v1038 = vunpack.c.h.b16 %v314
    %v1039 = vunpack.c.l.b16 %v315
    %v1040 = vunpack.c.h.b16 %v315
    %v1041 = vunpack.c.l.b16 %v316
    %v1042 = vunpack.c.h.b16 %v316
    %v1043 = vunpack.c.l.b16 %v317
    %v1044 = vunpack.c.h.b16 %v317
    %v1045 = vunpack.c.l.b16 %v318
    %v1046 = vunpack.c.h.b16 %v318
    %v1047 = vunpack.c.l.b16 %v319
    %v1048 = vunpack.c.h.b16 %v319
    %v1049 = vunpack.c.l.b16 %v320
    %v1050 = vunpack.c.h.b16 %v320
    %v1051 = vunpack.c.l.b16 %v321
    %v1052 = vunpack.c.h.b16 %v321
    %v1053 = vunpack.c.l.b16 %v322
    %v1054 = vunpack.c.h.b16 %v322
    %v1055 = vunpack.c.l.b16 %v323
    %v1056 = vunpack.c.h.b16 %v323
    %v1057 = vunpack.c.l.b16 %v324
    %v1058 = vunpack.c.h.b16 %v324
    %v1059 = vunpack.c.l.b16 %v325
    %v1060 = vunpack.c.h.b16 %v325
    %v1061 = vunpack.c.l.b16 %v326
    %v1062 = vunpack.c.h.b16 %v326
    %v1063 = vunpack.c.l.b16 %v327
    %v1064 = vunpack.c.h.b16 %v327
    %v1065 = vunpack.c.l.b16 %v328
    %v1066 = vunpack.c.h.b16 %v328
    %v1067 = vunpack.c.l.b16 %v329
    %v1068 = vunpack.c.h.b16 %v329
    %v1069 = vunpack.c.l.b16 %v330
    %v1070 = vunpack.c.h.b16 %v330
    %v1071 = vunpack.c.l.b16 %v331
    %v1072 = vunpack.c.h.b16 %v331
    %v1073 = vunpack.c.l.b16 %v332
    %v1074 = vunpack.c.h.b16 %v332
    %v1075 = vunpack.c.l.b16 %v333
    %v1076 = vunpack.c.h.b16 %v333
    %v1077 = vunpack.c.l.b16 %v334
    %v1078 = vunpack.c.h.b16 %v334
    %v1079 = vunpack.c.l.b16 %v335
    %v1080 = vunpack.c.h.b16 %v335
    %v1081 = vunpack.c.l.b16 %v336
    %v1082 = vunpack.c.h.b16 %v336
    %v1083 = vunpack.c.l.b16 %v337
    %v1084 = vunpack.c.h.b16 %v337
    %v1085 = vunpack.c.l.b16 %v338
    %v1086 = vunpack.c.h.b16 %v338
    %v1087 = vunpack.c.l.b16 %v339
    %v1088 = vunpack.c.h.b16 %v339
    %v1089 = vunpack.c.l.b16 %v340
    %v1090 = vunpack.c.h.b16 %v340
    %v1091 = vunpack.c.l.b16 %v341
    %v1092 = vunpack.c.h.b16 %v341
    %v1093 = vunpack.c.l.b16 %v342
    %v1094 = vunpack.c.h.b16 %v342
    %v1095 = vunpack.c.l.b16 %v343
    %v1096 = vunpack.c.h.b16 %v343
    %v1097 = vunpack.c.l.b16 %v344
    %v1098 = vunpack.c.h.b16 %v344
    %v1099 = vunpack.c.l.b16 %v345
    %v1100 = vunpack.c.h.b16 %v345
    %v1101 = vunpack.c.l.b16 %v346
    %v1102 = vunpack.c.h.b16 %v346
    %v1103 = vunpack.c.l.b16 %v347
    %v1104 = vunpack.c.h.b16 %v347
    %v1105 = vunpack.c.l.b16 %v348
    %v1106 = vunpack.c.h.b16 %v348
    %v1107 = vunpack.c.l.b16 %v349
    %v1108 = vunpack.c.h.b16 %v349
    %v1109 = vunpack.c.l.b16 %v350
    %v1110 = vunpack.c.h.b16 %v350
    %v1111 = vunpack.c.l.b16 %v351
    %v1112 = vunpack.c.h.b16 %v351
    %v1113 = vunpack.c.l.b16 %v352
    %v1114 = vunpack.c.h.b16 %v352
    %v1115 = vunpack.c.l.b16 %v353
    %v1116 = vunpack.c.h.b16 %v353
    %v1117 = vunpack.c.l.b16 %v354
    %v1118 = vunpack.c.h.b16 %v354
    %v1119 = vunpack.c.l.b16 %v355
    %v1120 = vunpack.c.h.b16 %v355
    %v1121 = vunpack.c.l.b16 %v356
    %v1122 = vunpack.c.h.b16 %v356
    %v1123 = vunpack.c.l.b16 %v357
    %v1124 = vunpack.c.h.b16 %v357
    %v1125 = vunpack.c.l.b16 %v358
    %v1126 = vunpack.c.h.b16 %v358
    %v1127 = vunpack.c.l.b16 %v359
    %v1128 = vunpack.c.h.b16 %v359
    %v1129 = vunpack.c.l.b16 %v360
    %v1130 = vunpack.c.h.b16 %v360
    %v1131 = vunpack.c.l.b16 %v361
    %v1132 = vunpack.c.h.b16 %v361
    %v1133 = vunpack.c.l.b16 %v362
    %v1134 = vunpack.c.h.b16 %v362
    %v1135 = vunpack.c.l.b16 %v363
    %v1136 = vunpack.c.h.b16 %v363
    %v1137 = vunpack.c.l.b16 %v364
    %v1138 = vunpack.c.h.b16 %v364
    %v1139 = vunpack.c.l.b16 %v365
    %v1140 = vunpack.c.h.b16 %v365
    %v1141 = vunpack.c.l.b16 %v366
    %v1142 = vunpack.c.h.b16 %v366
    %v1143 = vunpack.c.l.b16 %v367
    %v1144 = vunpack.c.h.b16 %v367
    %v1145 = vunpack.c.l.b16 %v368
    %v1146 = vunpack.c.h.b16 %v368
    %v1147 = vunpack.c.l.b16 %v369
    %v1148 = vunpack.c.h.b16 %v369
    %v1149 = vunpack.c.l.b16 %v370
    %v1150 = vunpack.c.h.b16 %v370
    %v1151 = vunpack.c.l.b16 %v371
    %v1152 = vunpack.c.h.b16 %v371
    %v1153 = vunpack.c.l.b16 %v372
    %v1154 = vunpack.c.h.b16 %v372
    %v1155 = vunpack.c.l.b16 %v373
    %v1156 = vunpack.c.h.b16 %v373
    %v1157 = vunpack.c.l.b16 %v374
    %v1158 = vunpack.c.h.b16 %v374
    %v1159 = vunpack.c.l.b16 %v375
    %v1160 = vunpack.c.h.b16 %v375
    %v1161 = vunpack.c.l.b16 %v376
    %v1162 = vunpack.c.h.b16 %v376
    %v1163 = vunpack.c.l.b16 %v377
    %v1164 = vunpack.c.h.b16 %v377
    %v1165 = vunpack.c.l.b16 %v378
    %v1166 = vunpack.c.h.b16 %v378
    %v1167 = vunpack.c.l.b16 %v379
    %v1168 = vunpack.c.h.b16 %v379
    %v1169 = vunpack.c.l.b16 %v380
    %v1170 = vunpack.c.h.b16 %v380
    %v1171 = vunpack.c.l.b16 %v381
    %v1172 = vunpack.c.h.b16 %v381
    %v1173 = vunpack.c.l.b16 %v382
    %v1174 = vunpack.c.h.b16 %v382
    %v1175 = vunpack.c.l.b16 %v383
    %v1176 = vunpack.c.h.b16 %v383
    %v1177 = vunpack.c.l.b16 %v384
    %v1178 = vunpack.c.h.b16 %v384
    %v1179 = vunpack.c.l.b16 %v385
    %v1180 = vunpack.c.h.b16 %v385
    %v1181 = vunpack.c.l.b16 %v386
    %v1182 = vunpack.c.h.b16 %v386
    %v1183 = vunpack.c.l.b16 %v387
    %v1184 = vunpack.c.h.b16 %v387
    %v1185 = vunpack.c.l.b16 %v388
    %v1186 = vunpack.c.h.b16 %v388
    %v1187 = vunpack.c.l.b16 %v389
    %v1188 = vunpack.c.h.b16 %v389
    %v1189 = vunpack.c.l.b16 %v390
    %v1190 = vunpack.c.h.b16 %v390
    %v1191 = vunpack.c.l.b16 %v391
    %v1192 = vunpack.c.h.b16 %v391
    %v1193 = vunpack.c.l.b16 %v392
    %v1194 = vunpack.c.h.b16 %v392
    %v1195 = vunpack.c.l.b16 %v393
    %v1196 = vunpack.c.h.b16 %v393
    %v1197 = vunpack.c.l.b16 %v394
    %v1198 = vunpack.c.h.b16 %v394
    %v1199 = vunpack.c.l.b16 %v395
    %v1200 = vunpack.c.h.b16 %v395
    %v1201 = vunpack.c.l.b16 %v396
    %v1202 = vunpack.c.h.b16 %v396
    %v1203 = vunpack.c.l.b16 %v397
    %v1204 = vunpack.c.h.b16 %v397
    %v1205 = vunpack.c.l.b16 %v398
    %v1206 = vunpack.c.h.b16 %v398
    %v1207 = vunpack.c.l.b16 %v399
    %v1208 = vunpack.c.h.b16 %v399
    %v1209 = vunpack.c.l.b16 %v400
    %v1210 = vunpack.c.h.b16 %v400
    %v1211 = vunpack.c.l.b16 %v401
    %v1212 = vunpack.c.h.b16 %v401
    %v1213 = vunpack.c.l.b16 %v402
    %v1214 = vunpack.c.h.b16 %v402
    %v1215 = vunpack.c.l.b16 %v403
    %v1216 = vunpack.c.h.b16 %v403
    %v1217 = vunpack.c.l.b16 %v404
    %v1218 = vunpack.c.h.b16 %v404
    %v1219 = vpack.c.b16 %v723, %v707
    %v1220 = vpack.c.b16 %v724, %v708
    %v1221 = vpack.c.b16 %v725, %v709
    %v1222 = vpack.c.b16 %v726, %v710
    %v1223 = vpack.c.b16 %v727, %v711
    %v1224 = vpack.c.b16 %v728, %v712
    %v1225 = vpack.c.b16 %v729, %v713
    %v1226 = vpack.c.b16 %v730, %v714
    %v1227 = vpack.c.b16 %v731, %v715
    %v1228 = vpack.c.b16 %v732, %v716
    %v1229 = vpack.c.b16 %v733, %v717
    %v1230 = vpack.c.b16 %v734, %v718
    %v1231 = vpack.c.b16 %v735, %v719
    %v1232 = vpack.c.b16 %v736, %v720
    %v1233 = vpack.c.b16 %v737, %v721
    %v1234 = vpack.c.b16 %v738, %v722
    %v1235 = vpack.c.b16 %v755, %v739
    %v1236 = vpack.c.b16 %v756, %v740
    %v1237 = vpack.c.b16 %v757, %v741
    %v1238 = vpack.c.b16 %v758, %v742
    %v1239 = vpack.c.b16 %v759, %v743
    %v1240 = vpack.c.b16 %v760, %v744
    %v1241 = vpack.c.b16 %v761, %v745
    %v1242 = vpack.c.b16 %v762, %v746
    %v1243 = vpack.c.b16 %v763, %v747
    %v1244 = vpack.c.b16 %v764, %v748
    %v1245 = vpack.c.b16 %v765, %v749
    %v1246 = vpack.c.b16 %v766, %v750
    %v1247 = vpack.c.b16 %v767, %v751
    %v1248 = vpack.c.b16 %v768, %v752
    %v1249 = vpack.c.b16 %v769, %v753
    %v1250 = vpack.c.b16 %v770, %v754
    %v1251 = vpack.c.b16 %v787, %v771
    %v1252 = vpack.c.b16 %v788, %v772
    %v1253 = vpack.c.b16 %v789, %v773
    %v1254 = vpack.c.b16 %v790, %v774
    %v1255 = vpack.c.b16 %v791, %v775
    %v1256 = vpack.c.b16 %v792, %v776
    %v1257 = vpack.c.b16 %v793, %v777
    %v1258 = vpack.c.b16 %v794, %v778
    %v1259 = vpack.c.b16 %v795, %v779
    %v1260 = vpack.c.b16 %v796, %v780
    %v1261 = vpack.c.b16 %v797, %v781
    %v1262 = vpack.c.b16 %v798, %v782
    %v1263 = vpack.c.b16 %v799, %v783
    %v1264 = vpack.c.b16 %v800, %v784
    %v1265 = vpack.c.b16 %v801, %v785
    %v1266 = vpack.c.b16 %v802, %v786
    %v1267 = vpack.c.b16 %v819, %v803
    %v1268 = vpack.c.b16 %v820, %v804
    %v1269 = vpack.c.b16 %v821, %v805
    %v1270 = vpack.c.b16 %v822, %v806
    %v1271 = vpack.c.b16 %v823, %v807
    %v1272 = vpack.c.b16 %v824, %v808
    %v1273 = vpack.c.b16 %v825, %v809
    %v1274 = vpack.c.b16 %v826, %v810
    %v1275 = vpack.c.b16 %v827, %v811
    %v1276 = vpack.c.b16 %v828, %v812
    %v1277 = vpack.c.b16 %v829, %v813
    %v1278 = vpack.c.b16 %v830, %v814
    %v1279 = vpack.c.b16 %v831, %v815
    %v1280 = vpack.c.b16 %v832, %v816
    %v1281 = vpack.c.b16 %v833, %v817
    %v1282 = vpack.c.b16 %v834, %v818
    %v1283 = vpack.c.b16 %v851, %v835
    %v1284 = vpack.c.b16 %v852, %v836
    %v1285 = vpack.c.b16 %v853, %v837
    %v1286 = vpack.c.b16 %v854, %v838
    %v1287 = vpack.c.b16 %v855, %v839
    %v1288 = vpack.c.b16 %v856, %v840
    %v1289 = vpack.c.b16 %v857, %v841
    %v1290 = vpack.c.b16 %v858, %v842
    %v1291 = vpack.c.b16 %v859, %v843
    %v1292 = vpack.c.b16 %v860, %v844
    %v1293 = vpack.c.b16 %v861, %v845
    %v1294 = vpack.c.b16 %v862, %v846
    %v1295 = vpack.c.b16 %v863, %v847
    %v1296 = vpack.c.b16 %v864, %v848
    %v1297 = vpack.c.b16 %v865, %v849
    %v1298 = vpack.c.b16 %v866, %v850
    %v1299 = vpack.c.b16 %v883, %v867
    %v1300 = vpack.c.b16 %v884, %v868
    %v1301 = vpack.c.b16 %v885, %v869
    %v1302 = vpack.c.b16 %v886, %v870
    %v1303 = vpack.c.b16 %v887, %v871
    %v1304 = vpack.c.b16 %v888, %v872
    %v1305 = vpack.c.b16 %v889, %v873
    %v1306 = vpack.c.b16 %v890, %v874
    %v1307 = vpack.c.b16 %v891, %v875
    %v1308 = vpack.c.b16 %v892, %v876
    %v1309 = vpack.c.b16 %v893, %v877
    %v1310 = vpack.c.b16 %v894, %v878
    %v1311 = vpack.c.b16 %v895, %v879
    %v1312 = vpack.c.b16 %v896, %v880
    %v1313 = vpack.c.b16 %v897, %v881
    %v1314 = vpack.c.b16 %v898, %v882
    %v1315 = vpack.c.b16 %v915, %v899
    %v1316 = vpack.c.b16 %v916, %v900
    %v1317 = vpack.c.b16 %v917, %v901
    %v1318 = vpack.c.b16 %v918, %v902
    %v1319 = vpack.c.b16 %v919, %v903
    %v1320 = vpack.c.b16 %v920, %v904
    %v1321 = vpack.c.b16 %v921, %v905
    %v1322 = vpack.c.b16 %v922, %v906
    %v1323 = vpack.c.b16 %v923, %v907
    %v1324 = vpack.c.b16 %v924, %v908
    %v1325 = vpack.c.b16 %v925, %v909
    %v1326 = vpack.c.b16 %v926, %v910
    %v1327 = vpack.c.b16 %v927, %v911
    %v1328 = vpack.c.b16 %v928, %v912
    %v1329 = vpack.c.b16 %v929, %v913
    %v1330 = vpack.c.b16 %v930, %v914
    %v1331 = vpack.c.b16 %v947, %v931
    %v1332 = vpack.c.b16 %v948, %v932
    %v1333 = vpack.c.b16 %v949, %v933
    %v1334 = vpack.c.b16 %v950, %v934
    %v1335 = vpack.c.b16 %v951, %v935
    %v1336 = vpack.c.b16 %v952, %v936
    %v1337 = vpack.c.b16 %v953, %v937
    %v1338 = vpack.c.b16 %v954, %v938
    %v1339 = vpack.c.b16 %v955, %v939
    %v1340 = vpack.c.b16 %v956, %v940
    %v1341 = vpack.c.b16 %v957, %v941
    %v1342 = vpack.c.b16 %v958, %v942
    %v1343 = vpack.c.b16 %v959, %v943
    %v1344 = vpack.c.b16 %v960, %v944
    %v1345 = vpack.c.b16 %v961, %v945
    %v1346 = vpack.c.b16 %v962, %v946
    %v1347 = vpack.c.b16 %v979, %v963
    %v1348 = vpack.c.b16 %v980, %v964
    %v1349 = vpack.c.b16 %v981, %v965
    %v1350 = vpack.c.b16 %v982, %v966
    %v1351 = vpack.c.b16 %v983, %v967
    %v1352 = vpack.c.b16 %v984, %v968
    %v1353 = vpack.c.b16 %v985, %v969
    %v1354 = vpack.c.b16 %v986, %v970
    %v1355 = vpack.c.b16 %v987, %v971
    %v1356 = vpack.c.b16 %v988, %v972
    %v1357 = vpack.c.b16 %v989, %v973
    %v1358 = vpack.c.b16 %v990, %v974
    %v1359 = vpack.c.b16 %v991, %v975
    %v1360 = vpack.c.b16 %v992, %v976
    %v1361 = vpack.c.b16 %v993, %v977
    %v1362 = vpack.c.b16 %v994, %v978
    %v1363 = vpack.c.b16 %v1011, %v995
    %v1364 = vpack.c.b16 %v1012, %v996
    %v1365 = vpack.c.b16 %v1013, %v997
    %v1366 = vpack.c.b16 %v1014, %v998
    %v1367 = vpack.c.b16 %v1015, %v999
    %v1368 = vpack.c.b16 %v1016, %v1000
    %v1369 = vpack.c.b16 %v1017, %v1001
    %v1370 = vpack.c.b16 %v1018, %v1002
    %v1371 = vpack.c.b16 %v1019, %v1003
    %v1372 = vpack.c.b16 %v1020, %v1004
    %v1373 = vpack.c.b16 %v1021, %v1005
    %v1374 = vpack.c.b16 %v1022, %v1006
    %v1375 = vpack.c.b16 %v1023, %v1007
    %v1376 = vpack.c.b16 %v1024, %v1008
    %v1377 = vpack.c.b16 %v1025, %v1009
    %v1378 = vpack.c.b16 %v1026, %v1010
    %v1379 = vpack.c.b16 %v1043, %v1027
    %v1380 = vpack.c.b16 %v1044, %v1028
    %v1381 = vpack.c.b16 %v1045, %v1029
    %v1382 = vpack.c.b16 %v1046, %v1030
    %v1383 = vpack.c.b16 %v1047, %v1031
    %v1384 = vpack.c.b16 %v1048, %v1032
    %v1385 = vpack.c.b16 %v1049, %v1033
    %v1386 = vpack.c.b16 %v1050, %v1034
    %v1387 = vpack.c.b16 %v1051, %v1035
    %v1388 = vpack.c.b16 %v1052, %v1036
    %v1389 = vpack.c.b16 %v1053, %v1037
    %v1390 = vpack.c.b16 %v1054, %v1038
    %v1391 = vpack.c.b16 %v1055, %v1039
    %v1392 = vpack.c.b16 %v1056, %v1040
    %v1393 = vpack.c.b16 %v1057, %v1041
    %v1394 = vpack.c.b16 %v1058, %v1042
    %v1395 = vpack.c.b16 %v1075, %v1059
    %v1396 = vpack.c.b16 %v1076, %v1060
    %v1397 = vpack.c.b16 %v1077, %v1061
    %v1398 = vpack.c.b16 %v1078, %v1062
    %v1399 = vpack.c.b16 %v1079, %v1063
    %v1400 = vpack.c.b16 %v1080, %v1064
    %v1401 = vpack.c.b16 %v1081, %v1065
    %v1402 = vpack.c.b16 %v1082, %v1066
    %v1403 = vpack.c.b16 %v1083, %v1067
    %v1404 = vpack.c.b16 %v1084, %v1068
    %v1405 = vpack.c.b16 %v1085, %v1069
    %v1406 = vpack.c.b16 %v1086, %v1070
    %v1407 = vpack.c.b16 %v1087, %v1071
    %v1408 = vpack.c.b16 %v1088, %v1072
    %v1409 = vpack.c.b16 %v1089, %v1073
    %v1410 = vpack.c.b16 %v1090, %v1074
    %v1411 = vpack.c.b16 %v1107, %v1091
    %v1412 = vpack.c.b16 %v1108, %v1092
    %v1413 = vpack.c.b16 %v1109, %v1093
    %v1414 = vpack.c.b16 %v1110, %v1094
    %v1415 = vpack.c.b16 %v1111, %v1095
    %v1416 = vpack.c.b16 %v1112, %v1096
    %v1417 = vpack.c.b16 %v1113, %v1097
    %v1418 = vpack.c.b16 %v1114, %v1098
    %v1419 = vpack.c.b16 %v1115, %v1099
    %v1420 = vpack.c.b16 %v1116, %v1100
    %v1421 = vpack.c.b16 %v1117, %v1101
    %v1422 = vpack.c.b16 %v1118, %v1102
    %v1423 = vpack.c.b16 %v1119, %v1103
    %v1424 = vpack.c.b16 %v1120, %v1104
    %v1425 = vpack.c.b16 %v1121, %v1105
    %v1426 = vpack.c.b16 %v1122, %v1106
    %v1427 = vpack.c.b16 %v1139, %v1123
    %v1428 = vpack.c.b16 %v1140, %v1124
    %v1429 = vpack.c.b16 %v1141, %v1125
    %v1430 = vpack.c.b16 %v1142, %v1126
    %v1431 = vpack.c.b16 %v1143, %v1127
    %v1432 = vpack.c.b16 %v1144, %v1128
    %v1433 = vpack.c.b16 %v1145, %v1129
    %v1434 = vpack.c.b16 %v1146, %v1130
    %v1435 = vpack.c.b16 %v1147, %v1131
    %v1436 = vpack.c.b16 %v1148, %v1132
    %v1437 = vpack.c.b16 %v1149, %v1133
    %v1438 = vpack.c.b16 %v1150, %v1134
    %v1439 = vpack.c.b16 %v1151, %v1135
    %v1440 = vpack.c.b16 %v1152, %v1136
    %v1441 = vpack.c.b16 %v1153, %v1137
    %v1442 = vpack.c.b16 %v1154, %v1138
    %v1443 = vpack.c.b16 %v1171, %v1155
    %v1444 = vpack.c.b16 %v1172, %v1156
    %v1445 = vpack.c.b16 %v1173, %v1157
    %v1446 = vpack.c.b16 %v1174, %v1158
    %v1447 = vpack.c.b16 %v1175, %v1159
    %v1448 = vpack.c.b16 %v1176, %v1160
    %v1449 = vpack.c.b16 %v1177, %v1161
    %v1450 = vpack.c.b16 %v1178, %v1162
    %v1451 = vpack.c.b16 %v1179, %v1163
    %v1452 = vpack.c.b16 %v1180, %v1164
    %v1453 = vpack.c.b16 %v1181, %v1165
    %v1454 = vpack.c.b16 %v1182, %v1166
    %v1455 = vpack.c.b16 %v1183, %v1167
    %v1456 = vpack.c.b16 %v1184, %v1168
    %v1457 = vpack.c.b16 %v1185, %v1169
    %v1458 = vpack.c.b16 %v1186, %v1170
    %v1459 = vpack.c.b16 %v1203, %v1187
    %v1460 = vpack.c.b16 %v1204, %v1188
    %v1461 = vpack.c.b16 %v1205, %v1189
    %v1462 = vpack.c.b16 %v1206, %v1190
    %v1463 = vpack.c.b16 %v1207, %v1191
    %v1464 = vpack.c.b16 %v1208, %v1192
    %v1465 = vpack.c.b16 %v1209, %v1193
    %v1466 = vpack.c.b16 %v1210, %v1194
    %v1467 = vpack.c.b16 %v1211, %v1195
    %v1468 = vpack.c.b16 %v1212, %v1196
    %v1469 = vpack.c.b16 %v1213, %v1197
    %v1470 = vpack.c.b16 %v1214, %v1198
    %v1471 = vpack.c.b16 %v1215, %v1199
    %v1472 = vpack.c.b16 %v1216, %v1200
    %v1473 = vpack.c.b16 %v1217, %v1201
    %v1474 = vpack.c.b16 %v1218, %v1202
    %1731 = vmatpush.bf16.msra.mxu0 %v1331
    %1732 = vmatpush.bf16.msra.mxu0 %v1315
    %1733 = vmatpush.bf16.msra.mxu0 %v1299
    %1734 = vmatpush.bf16.msra.mxu0 %v1283
    %1735 = vmatpush.bf16.msra.mxu0 %v1267
    %1736 = vmatpush.bf16.msra.mxu0 %v1251
    %1737 = vmatpush.bf16.msra.mxu0 %v1235
    %1738 = vmatpush.bf16.msra.mxu0 %v1219
    %1739 = vmatmul.bf16.gmra.mxu0 %v447
    %v1740 = vpop.f32.mrf.mxu0
    %v1741 = vadd.f32 %v409, %v1740
    %v1742 = vpop.f32.mrf.mxu0
    %v1743 = vadd.f32 %v409, %v1742
    %1744 = vdwg.mxu0
    %1745 = vmatpush.bf16.msra.mxu0 %v1459
    %1746 = vmatpush.bf16.msra.mxu0 %v1443
    %1747 = vmatpush.bf16.msra.mxu0 %v1427
    %1748 = vmatpush.bf16.msra.mxu0 %v1411
    %1749 = vmatpush.bf16.msra.mxu0 %v1395
    %1750 = vmatpush.bf16.msra.mxu0 %v1379
    %1751 = vmatpush.bf16.msra.mxu0 %v1363
    %1752 = vmatpush.bf16.msra.mxu0 %v1347
    %1753 = vmatmul.bf16.gmra.mxu0 %v448
    %v1754 = vpop.f32.mrf.mxu0
    %v1755 = vadd.f32 %v1741, %v1754
    %v1756 = vpop.f32.mrf.mxu0
    %v1757 = vadd.f32 %v1743, %v1756
    %1758 = vdwg.mxu0
    %1759 = vmatpush.bf16.msra.mxu0 %v1332
    %1760 = vmatpush.bf16.msra.mxu0 %v1316
    %1761 = vmatpush.bf16.msra.mxu0 %v1300
    %1762 = vmatpush.bf16.msra.mxu0 %v1284
    %1763 = vmatpush.bf16.msra.mxu0 %v1268
    %1764 = vmatpush.bf16.msra.mxu0 %v1252
    %1765 = vmatpush.bf16.msra.mxu0 %v1236
    %1766 = vmatpush.bf16.msra.mxu0 %v1220
    %1767 = vmatmul.bf16.gmra.mxu0 %v447
    %v1768 = vpop.f32.mrf.mxu0
    %v1769 = vadd.f32 %v410, %v1768
    %v1770 = vpop.f32.mrf.mxu0
    %v1771 = vadd.f32 %v410, %v1770
    %1772 = vdwg.mxu0
    %1773 = vmatpush.bf16.msra.mxu0 %v1460
    %1774 = vmatpush.bf16.msra.mxu0 %v1444
    %1775 = vmatpush.bf16.msra.mxu0 %v1428
    %1776 = vmatpush.bf16.msra.mxu0 %v1412
    %1777 = vmatpush.bf16.msra.mxu0 %v1396
    %1778 = vmatpush.bf16.msra.mxu0 %v1380
    %1779 = vmatpush.bf16.msra.mxu0 %v1364
    %1780 = vmatpush.bf16.msra.mxu0 %v1348
    %1781 = vmatmul.bf16.gmra.mxu0 %v448
    %v1782 = vpop.f32.mrf.mxu0
    %v1783 = vadd.f32 %v1769, %v1782
    %v1784 = vpop.f32.mrf.mxu0
    %v1785 = vadd.f32 %v1771, %v1784
    %1786 = vdwg.mxu0
    %1787 = vmatpush.bf16.msra.mxu0 %v1333
    %1788 = vmatpush.bf16.msra.mxu0 %v1317
    %1789 = vmatpush.bf16.msra.mxu0 %v1301
    %1790 = vmatpush.bf16.msra.mxu0 %v1285
    %1791 = vmatpush.bf16.msra.mxu0 %v1269
    %1792 = vmatpush.bf16.msra.mxu0 %v1253
    %1793 = vmatpush.bf16.msra.mxu0 %v1237
    %1794 = vmatpush.bf16.msra.mxu0 %v1221
    %1795 = vmatmul.bf16.gmra.mxu0 %v447
    %v1796 = vpop.f32.mrf.mxu0
    %v1797 = vadd.f32 %v411, %v1796
    %v1798 = vpop.f32.mrf.mxu0
    %v1799 = vadd.f32 %v411, %v1798
    %1800 = vdwg.mxu0
    %1801 = vmatpush.bf16.msra.mxu0 %v1461
    %1802 = vmatpush.bf16.msra.mxu0 %v1445
    %1803 = vmatpush.bf16.msra.mxu0 %v1429
    %1804 = vmatpush.bf16.msra.mxu0 %v1413
    %1805 = vmatpush.bf16.msra.mxu0 %v1397
    %1806 = vmatpush.bf16.msra.mxu0 %v1381
    %1807 = vmatpush.bf16.msra.mxu0 %v1365
    %1808 = vmatpush.bf16.msra.mxu0 %v1349
    %1809 = vmatmul.bf16.gmra.mxu0 %v448
    %v1810 = vpop.f32.mrf.mxu0
    %v1811 = vadd.f32 %v1797, %v1810
    %v1812 = vpop.f32.mrf.mxu0
    %v1813 = vadd.f32 %v1799, %v1812
    %1814 = vdwg.mxu0
    %1815 = vmatpush.bf16.msra.mxu0 %v1334
    %1816 = vmatpush.bf16.msra.mxu0 %v1318
    %1817 = vmatpush.bf16.msra.mxu0 %v1302
    %1818 = vmatpush.bf16.msra.mxu0 %v1286
    %1819 = vmatpush.bf16.msra.mxu0 %v1270
    %1820 = vmatpush.bf16.msra.mxu0 %v1254
    %1821 = vmatpush.bf16.msra.mxu0 %v1238
    %1822 = vmatpush.bf16.msra.mxu0 %v1222
    %1823 = vmatmul.bf16.gmra.mxu0 %v447
    %v1824 = vpop.f32.mrf.mxu0
    %v1825 = vadd.f32 %v412, %v1824
    %v1826 = vpop.f32.mrf.mxu0
    %v1827 = vadd.f32 %v412, %v1826
    %1828 = vdwg.mxu0
    %1829 = vmatpush.bf16.msra.mxu0 %v1462
    %1830 = vmatpush.bf16.msra.mxu0 %v1446
    %1831 = vmatpush.bf16.msra.mxu0 %v1430
    %1832 = vmatpush.bf16.msra.mxu0 %v1414
    %1833 = vmatpush.bf16.msra.mxu0 %v1398
    %1834 = vmatpush.bf16.msra.mxu0 %v1382
    %1835 = vmatpush.bf16.msra.mxu0 %v1366
    %1836 = vmatpush.bf16.msra.mxu0 %v1350
    %1837 = vmatmul.bf16.gmra.mxu0 %v448
    %v1838 = vpop.f32.mrf.mxu0
    %v1839 = vadd.f32 %v1825, %v1838
    %v1840 = vpop.f32.mrf.mxu0
    %v1841 = vadd.f32 %v1827, %v1840
    %1842 = vdwg.mxu0
    %1843 = vmatpush.bf16.msra.mxu0 %v1335
    %1844 = vmatpush.bf16.msra.mxu0 %v1319
    %1845 = vmatpush.bf16.msra.mxu0 %v1303
    %1846 = vmatpush.bf16.msra.mxu0 %v1287
    %1847 = vmatpush.bf16.msra.mxu0 %v1271
    %1848 = vmatpush.bf16.msra.mxu0 %v1255
    %1849 = vmatpush.bf16.msra.mxu0 %v1239
    %1850 = vmatpush.bf16.msra.mxu0 %v1223
    %1851 = vmatmul.bf16.gmra.mxu0 %v447
    %v1852 = vpop.f32.mrf.mxu0
    %v1853 = vadd.f32 %v413, %v1852
    %v1854 = vpop.f32.mrf.mxu0
    %v1855 = vadd.f32 %v413, %v1854
    %1856 = vdwg.mxu0
    %1857 = vmatpush.bf16.msra.mxu0 %v1463
    %1858 = vmatpush.bf16.msra.mxu0 %v1447
    %1859 = vmatpush.bf16.msra.mxu0 %v1431
    %1860 = vmatpush.bf16.msra.mxu0 %v1415
    %1861 = vmatpush.bf16.msra.mxu0 %v1399
    %1862 = vmatpush.bf16.msra.mxu0 %v1383
    %1863 = vmatpush.bf16.msra.mxu0 %v1367
    %1864 = vmatpush.bf16.msra.mxu0 %v1351
    %1865 = vmatmul.bf16.gmra.mxu0 %v448
    %v1866 = vpop.f32.mrf.mxu0
    %v1867 = vadd.f32 %v1853, %v1866
    %v1868 = vpop.f32.mrf.mxu0
    %v1869 = vadd.f32 %v1855, %v1868
    %1870 = vdwg.mxu0
    %1871 = vmatpush.bf16.msra.mxu0 %v1336
    %1872 = vmatpush.bf16.msra.mxu0 %v1320
    %1873 = vmatpush.bf16.msra.mxu0 %v1304
    %1874 = vmatpush.bf16.msra.mxu0 %v1288
    %1875 = vmatpush.bf16.msra.mxu0 %v1272
    %1876 = vmatpush.bf16.msra.mxu0 %v1256
    %1877 = vmatpush.bf16.msra.mxu0 %v1240
    %1878 = vmatpush.bf16.msra.mxu0 %v1224
    %1879 = vmatmul.bf16.gmra.mxu0 %v447
    %v1880 = vpop.f32.mrf.mxu0
    %v1881 = vadd.f32 %v414, %v1880
    %v1882 = vpop.f32.mrf.mxu0
    %v1883 = vadd.f32 %v414, %v1882
    %1884 = vdwg.mxu0
    %1885 = vmatpush.bf16.msra.mxu0 %v1464
    %1886 = vmatpush.bf16.msra.mxu0 %v1448
    %1887 = vmatpush.bf16.msra.mxu0 %v1432
    %1888 = vmatpush.bf16.msra.mxu0 %v1416
    %1889 = vmatpush.bf16.msra.mxu0 %v1400
    %1890 = vmatpush.bf16.msra.mxu0 %v1384
    %1891 = vmatpush.bf16.msra.mxu0 %v1368
    %1892 = vmatpush.bf16.msra.mxu0 %v1352
    %1893 = vmatmul.bf16.gmra.mxu0 %v448
    %v1894 = vpop.f32.mrf.mxu0
    %v1895 = vadd.f32 %v1881, %v1894
    %v1896 = vpop.f32.mrf.mxu0
    %v1897 = vadd.f32 %v1883, %v1896
    %1898 = vdwg.mxu0
    %1899 = vmatpush.bf16.msra.mxu0 %v1337
    %1900 = vmatpush.bf16.msra.mxu0 %v1321
    %1901 = vmatpush.bf16.msra.mxu0 %v1305
    %1902 = vmatpush.bf16.msra.mxu0 %v1289
    %1903 = vmatpush.bf16.msra.mxu0 %v1273
    %1904 = vmatpush.bf16.msra.mxu0 %v1257
    %1905 = vmatpush.bf16.msra.mxu0 %v1241
    %1906 = vmatpush.bf16.msra.mxu0 %v1225
    %1907 = vmatmul.bf16.gmra.mxu0 %v447
    %v1908 = vpop.f32.mrf.mxu0
    %v1909 = vadd.f32 %v415, %v1908
    %v1910 = vpop.f32.mrf.mxu0
    %v1911 = vadd.f32 %v415, %v1910
    %1912 = vdwg.mxu0
    %1913 = vmatpush.bf16.msra.mxu0 %v1465
    %1914 = vmatpush.bf16.msra.mxu0 %v1449
    %1915 = vmatpush.bf16.msra.mxu0 %v1433
    %1916 = vmatpush.bf16.msra.mxu0 %v1417
    %1917 = vmatpush.bf16.msra.mxu0 %v1401
    %1918 = vmatpush.bf16.msra.mxu0 %v1385
    %1919 = vmatpush.bf16.msra.mxu0 %v1369
    %1920 = vmatpush.bf16.msra.mxu0 %v1353
    %1921 = vmatmul.bf16.gmra.mxu0 %v448
    %v1922 = vpop.f32.mrf.mxu0
    %v1923 = vadd.f32 %v1909, %v1922
    %v1924 = vpop.f32.mrf.mxu0
    %v1925 = vadd.f32 %v1911, %v1924
    %1926 = vdwg.mxu0
    %1927 = vmatpush.bf16.msra.mxu0 %v1338
    %1928 = vmatpush.bf16.msra.mxu0 %v1322
    %1929 = vmatpush.bf16.msra.mxu0 %v1306
    %1930 = vmatpush.bf16.msra.mxu0 %v1290
    %1931 = vmatpush.bf16.msra.mxu0 %v1274
    %1932 = vmatpush.bf16.msra.mxu0 %v1258
    %1933 = vmatpush.bf16.msra.mxu0 %v1242
    %1934 = vmatpush.bf16.msra.mxu0 %v1226
    %1935 = vmatmul.bf16.gmra.mxu0 %v447
    %v1936 = vpop.f32.mrf.mxu0
    %v1937 = vadd.f32 %v416, %v1936
    %v1938 = vpop.f32.mrf.mxu0
    %v1939 = vadd.f32 %v416, %v1938
    %1940 = vdwg.mxu0
    %1941 = vmatpush.bf16.msra.mxu0 %v1466
    %1942 = vmatpush.bf16.msra.mxu0 %v1450
    %1943 = vmatpush.bf16.msra.mxu0 %v1434
    %1944 = vmatpush.bf16.msra.mxu0 %v1418
    %1945 = vmatpush.bf16.msra.mxu0 %v1402
    %1946 = vmatpush.bf16.msra.mxu0 %v1386
    %1947 = vmatpush.bf16.msra.mxu0 %v1370
    %1948 = vmatpush.bf16.msra.mxu0 %v1354
    %1949 = vmatmul.bf16.gmra.mxu0 %v448
    %v1950 = vpop.f32.mrf.mxu0
    %v1951 = vadd.f32 %v1937, %v1950
    %v1952 = vpop.f32.mrf.mxu0
    %v1953 = vadd.f32 %v1939, %v1952
    %1954 = vdwg.mxu0
    %1955 = vmatpush.bf16.msra.mxu0 %v1339
    %1956 = vmatpush.bf16.msra.mxu0 %v1323
    %1957 = vmatpush.bf16.msra.mxu0 %v1307
    %1958 = vmatpush.bf16.msra.mxu0 %v1291
    %1959 = vmatpush.bf16.msra.mxu0 %v1275
    %1960 = vmatpush.bf16.msra.mxu0 %v1259
    %1961 = vmatpush.bf16.msra.mxu0 %v1243
    %1962 = vmatpush.bf16.msra.mxu0 %v1227
    %1963 = vmatmul.bf16.gmra.mxu0 %v447
    %v1964 = vpop.f32.mrf.mxu0
    %v1965 = vadd.f32 %v417, %v1964
    %v1966 = vpop.f32.mrf.mxu0
    %v1967 = vadd.f32 %v417, %v1966
    %1968 = vdwg.mxu0
    %1969 = vmatpush.bf16.msra.mxu0 %v1467
    %1970 = vmatpush.bf16.msra.mxu0 %v1451
    %1971 = vmatpush.bf16.msra.mxu0 %v1435
    %1972 = vmatpush.bf16.msra.mxu0 %v1419
    %1973 = vmatpush.bf16.msra.mxu0 %v1403
    %1974 = vmatpush.bf16.msra.mxu0 %v1387
    %1975 = vmatpush.bf16.msra.mxu0 %v1371
    %1976 = vmatpush.bf16.msra.mxu0 %v1355
    %1977 = vmatmul.bf16.gmra.mxu0 %v448
    %v1978 = vpop.f32.mrf.mxu0
    %v1979 = vadd.f32 %v1965, %v1978
    %v1980 = vpop.f32.mrf.mxu0
    %v1981 = vadd.f32 %v1967, %v1980
    %1982 = vdwg.mxu0
    %1983 = vmatpush.bf16.msra.mxu0 %v1340
    %1984 = vmatpush.bf16.msra.mxu0 %v1324
    %1985 = vmatpush.bf16.msra.mxu0 %v1308
    %1986 = vmatpush.bf16.msra.mxu0 %v1292
    %1987 = vmatpush.bf16.msra.mxu0 %v1276
    %1988 = vmatpush.bf16.msra.mxu0 %v1260
    %1989 = vmatpush.bf16.msra.mxu0 %v1244
    %1990 = vmatpush.bf16.msra.mxu0 %v1228
    %1991 = vmatmul.bf16.gmra.mxu0 %v447
    %v1992 = vpop.f32.mrf.mxu0
    %v1993 = vadd.f32 %v418, %v1992
    %v1994 = vpop.f32.mrf.mxu0
    %v1995 = vadd.f32 %v418, %v1994
    %1996 = vdwg.mxu0
    %1997 = vmatpush.bf16.msra.mxu0 %v1468
    %1998 = vmatpush.bf16.msra.mxu0 %v1452
    %1999 = vmatpush.bf16.msra.mxu0 %v1436
    %2000 = vmatpush.bf16.msra.mxu0 %v1420
    %2001 = vmatpush.bf16.msra.mxu0 %v1404
    %2002 = vmatpush.bf16.msra.mxu0 %v1388
    %2003 = vmatpush.bf16.msra.mxu0 %v1372
    %2004 = vmatpush.bf16.msra.mxu0 %v1356
    %2005 = vmatmul.bf16.gmra.mxu0 %v448
    %v2006 = vpop.f32.mrf.mxu0
    %v2007 = vadd.f32 %v1993, %v2006
    %v2008 = vpop.f32.mrf.mxu0
    %v2009 = vadd.f32 %v1995, %v2008
    %2010 = vdwg.mxu0
    %2011 = vmatpush.bf16.msra.mxu0 %v1341
    %2012 = vmatpush.bf16.msra.mxu0 %v1325
    %2013 = vmatpush.bf16.msra.mxu0 %v1309
    %2014 = vmatpush.bf16.msra.mxu0 %v1293
    %2015 = vmatpush.bf16.msra.mxu0 %v1277
    %2016 = vmatpush.bf16.msra.mxu0 %v1261
    %2017 = vmatpush.bf16.msra.mxu0 %v1245
    %2018 = vmatpush.bf16.msra.mxu0 %v1229
    %2019 = vmatmul.bf16.gmra.mxu0 %v447
    %v2020 = vpop.f32.mrf.mxu0
    %v2021 = vadd.f32 %v419, %v2020
    %v2022 = vpop.f32.mrf.mxu0
    %v2023 = vadd.f32 %v419, %v2022
    %2024 = vdwg.mxu0
    %2025 = vmatpush.bf16.msra.mxu0 %v1469
    %2026 = vmatpush.bf16.msra.mxu0 %v1453
    %2027 = vmatpush.bf16.msra.mxu0 %v1437
    %2028 = vmatpush.bf16.msra.mxu0 %v1421
    %2029 = vmatpush.bf16.msra.mxu0 %v1405
    %2030 = vmatpush.bf16.msra.mxu0 %v1389
    %2031 = vmatpush.bf16.msra.mxu0 %v1373
    %2032 = vmatpush.bf16.msra.mxu0 %v1357
    %2033 = vmatmul.bf16.gmra.mxu0 %v448
    %v2034 = vpop.f32.mrf.mxu0
    %v2035 = vadd.f32 %v2021, %v2034
    %v2036 = vpop.f32.mrf.mxu0
    %v2037 = vadd.f32 %v2023, %v2036
    %2038 = vdwg.mxu0
    %2039 = vmatpush.bf16.msra.mxu0 %v1342
    %2040 = vmatpush.bf16.msra.mxu0 %v1326
    %2041 = vmatpush.bf16.msra.mxu0 %v1310
    %2042 = vmatpush.bf16.msra.mxu0 %v1294
    %2043 = vmatpush.bf16.msra.mxu0 %v1278
    %2044 = vmatpush.bf16.msra.mxu0 %v1262
    %2045 = vmatpush.bf16.msra.mxu0 %v1246
    %2046 = vmatpush.bf16.msra.mxu0 %v1230
    %2047 = vmatmul.bf16.gmra.mxu0 %v447
    %v2048 = vpop.f32.mrf.mxu0
    %v2049 = vadd.f32 %v420, %v2048
    %v2050 = vpop.f32.mrf.mxu0
    %v2051 = vadd.f32 %v420, %v2050
    %2052 = vdwg.mxu0
    %2053 = vmatpush.bf16.msra.mxu0 %v1470
    %2054 = vmatpush.bf16.msra.mxu0 %v1454
    %2055 = vmatpush.bf16.msra.mxu0 %v1438
    %2056 = vmatpush.bf16.msra.mxu0 %v1422
    %2057 = vmatpush.bf16.msra.mxu0 %v1406
    %2058 = vmatpush.bf16.msra.mxu0 %v1390
    %2059 = vmatpush.bf16.msra.mxu0 %v1374
    %2060 = vmatpush.bf16.msra.mxu0 %v1358
    %2061 = vmatmul.bf16.gmra.mxu0 %v448
    %v2062 = vpop.f32.mrf.mxu0
    %v2063 = vadd.f32 %v2049, %v2062
    %v2064 = vpop.f32.mrf.mxu0
    %v2065 = vadd.f32 %v2051, %v2064
    %2066 = vdwg.mxu0
    %2067 = vmatpush.bf16.msra.mxu0 %v1343
    %2068 = vmatpush.bf16.msra.mxu0 %v1327
    %2069 = vmatpush.bf16.msra.mxu0 %v1311
    %2070 = vmatpush.bf16.msra.mxu0 %v1295
    %2071 = vmatpush.bf16.msra.mxu0 %v1279
    %2072 = vmatpush.bf16.msra.mxu0 %v1263
    %2073 = vmatpush.bf16.msra.mxu0 %v1247
    %2074 = vmatpush.bf16.msra.mxu0 %v1231
    %2075 = vmatmul.bf16.gmra.mxu0 %v447
    %v2076 = vpop.f32.mrf.mxu0
    %v2077 = vadd.f32 %v421, %v2076
    %v2078 = vpop.f32.mrf.mxu0
    %v2079 = vadd.f32 %v421, %v2078
    %2080 = vdwg.mxu0
    %2081 = vmatpush.bf16.msra.mxu0 %v1471
    %2082 = vmatpush.bf16.msra.mxu0 %v1455
    %2083 = vmatpush.bf16.msra.mxu0 %v1439
    %2084 = vmatpush.bf16.msra.mxu0 %v1423
    %2085 = vmatpush.bf16.msra.mxu0 %v1407
    %2086 = vmatpush.bf16.msra.mxu0 %v1391
    %2087 = vmatpush.bf16.msra.mxu0 %v1375
    %2088 = vmatpush.bf16.msra.mxu0 %v1359
    %2089 = vmatmul.bf16.gmra.mxu0 %v448
    %v2090 = vpop.f32.mrf.mxu0
    %v2091 = vadd.f32 %v2077, %v2090
    %v2092 = vpop.f32.mrf.mxu0
    %v2093 = vadd.f32 %v2079, %v2092
    %2094 = vdwg.mxu0
    %2095 = vmatpush.bf16.msra.mxu0 %v1344
    %2096 = vmatpush.bf16.msra.mxu0 %v1328
    %2097 = vmatpush.bf16.msra.mxu0 %v1312
    %2098 = vmatpush.bf16.msra.mxu0 %v1296
    %2099 = vmatpush.bf16.msra.mxu0 %v1280
    %2100 = vmatpush.bf16.msra.mxu0 %v1264
    %2101 = vmatpush.bf16.msra.mxu0 %v1248
    %2102 = vmatpush.bf16.msra.mxu0 %v1232
    %2103 = vmatmul.bf16.gmra.mxu0 %v447
    %v2104 = vpop.f32.mrf.mxu0
    %v2105 = vadd.f32 %v422, %v2104
    %v2106 = vpop.f32.mrf.mxu0
    %v2107 = vadd.f32 %v422, %v2106
    %2108 = vdwg.mxu0
    %2109 = vmatpush.bf16.msra.mxu0 %v1472
    %2110 = vmatpush.bf16.msra.mxu0 %v1456
    %2111 = vmatpush.bf16.msra.mxu0 %v1440
    %2112 = vmatpush.bf16.msra.mxu0 %v1424
    %2113 = vmatpush.bf16.msra.mxu0 %v1408
    %2114 = vmatpush.bf16.msra.mxu0 %v1392
    %2115 = vmatpush.bf16.msra.mxu0 %v1376
    %2116 = vmatpush.bf16.msra.mxu0 %v1360
    %2117 = vmatmul.bf16.gmra.mxu0 %v448
    %v2118 = vpop.f32.mrf.mxu0
    %v2119 = vadd.f32 %v2105, %v2118
    %v2120 = vpop.f32.mrf.mxu0
    %v2121 = vadd.f32 %v2107, %v2120
    %2122 = vdwg.mxu0
    %2123 = vmatpush.bf16.msra.mxu0 %v1345
    %2124 = vmatpush.bf16.msra.mxu0 %v1329
    %2125 = vmatpush.bf16.msra.mxu0 %v1313
    %2126 = vmatpush.bf16.msra.mxu0 %v1297
    %2127 = vmatpush.bf16.msra.mxu0 %v1281
    %2128 = vmatpush.bf16.msra.mxu0 %v1265
    %2129 = vmatpush.bf16.msra.mxu0 %v1249
    %2130 = vmatpush.bf16.msra.mxu0 %v1233
    %2131 = vmatmul.bf16.gmra.mxu0 %v447
    %v2132 = vpop.f32.mrf.mxu0
    %v2133 = vadd.f32 %v423, %v2132
    %v2134 = vpop.f32.mrf.mxu0
    %v2135 = vadd.f32 %v423, %v2134
    %2136 = vdwg.mxu0
    %2137 = vmatpush.bf16.msra.mxu0 %v1473
    %2138 = vmatpush.bf16.msra.mxu0 %v1457
    %2139 = vmatpush.bf16.msra.mxu0 %v1441
    %2140 = vmatpush.bf16.msra.mxu0 %v1425
    %2141 = vmatpush.bf16.msra.mxu0 %v1409
    %2142 = vmatpush.bf16.msra.mxu0 %v1393
    %2143 = vmatpush.bf16.msra.mxu0 %v1377
    %2144 = vmatpush.bf16.msra.mxu0 %v1361
    %2145 = vmatmul.bf16.gmra.mxu0 %v448
    %v2146 = vpop.f32.mrf.mxu0
    %v2147 = vadd.f32 %v2133, %v2146
    %v2148 = vpop.f32.mrf.mxu0
    %v2149 = vadd.f32 %v2135, %v2148
    %2150 = vdwg.mxu0
    %2151 = vmatpush.bf16.msra.mxu0 %v1346
    %2152 = vmatpush.bf16.msra.mxu0 %v1330
    %2153 = vmatpush.bf16.msra.mxu0 %v1314
    %2154 = vmatpush.bf16.msra.mxu0 %v1298
    %2155 = vmatpush.bf16.msra.mxu0 %v1282
    %2156 = vmatpush.bf16.msra.mxu0 %v1266
    %2157 = vmatpush.bf16.msra.mxu0 %v1250
    %2158 = vmatpush.bf16.msra.mxu0 %v1234
    %2159 = vmatmul.bf16.gmra.mxu0 %v447
    %v2160 = vpop.f32.mrf.mxu0
    %v2161 = vadd.f32 %v424, %v2160
    %v2162 = vpop.f32.mrf.mxu0
    %v2163 = vadd.f32 %v424, %v2162
    %2164 = vdwg.mxu0
    %2165 = vmatpush.bf16.msra.mxu0 %v1474
    %2166 = vmatpush.bf16.msra.mxu0 %v1458
    %2167 = vmatpush.bf16.msra.mxu0 %v1442
    %2168 = vmatpush.bf16.msra.mxu0 %v1426
    %2169 = vmatpush.bf16.msra.mxu0 %v1410
    %2170 = vmatpush.bf16.msra.mxu0 %v1394
    %2171 = vmatpush.bf16.msra.mxu0 %v1378
    %2172 = vmatpush.bf16.msra.mxu0 %v1362
    %2173 = vmatmul.bf16.gmra.mxu0 %v448
    %v2174 = vpop.f32.mrf.mxu0
    %v2175 = vadd.f32 %v2161, %v2174
    %v2176 = vpop.f32.mrf.mxu0
    %v2177 = vadd.f32 %v2163, %v2176
    %2178 = vdwg.mxu0
    %v2179 = vmax.f32 %v1755, 0.0
    %v2180 = vmax.f32 %v1783, 0.0
    %v2181 = vmax.f32 %v1811, 0.0
    %v2182 = vmax.f32 %v1839, 0.0
    %v2183 = vmax.f32 %v1867, 0.0
    %v2184 = vmax.f32 %v1895, 0.0
    %v2185 = vmax.f32 %v1923, 0.0
    %v2186 = vmax.f32 %v1951, 0.0
    %v2187 = vmax.f32 %v1979, 0.0
    %v2188 = vmax.f32 %v2007, 0.0
    %v2189 = vmax.f32 %v2035, 0.0
    %v2190 = vmax.f32 %v2063, 0.0
    %v2191 = vmax.f32 %v2091, 0.0
    %v2192 = vmax.f32 %v2119, 0.0
    %v2193 = vmax.f32 %v2147, 0.0
    %v2194 = vmax.f32 %v2175, 0.0
    %v2195 = vmax.f32 %v1757, 0.0
    %v2196 = vmax.f32 %v1785, 0.0
    %v2197 = vmax.f32 %v1813, 0.0
    %v2198 = vmax.f32 %v1841, 0.0
    %v2199 = vmax.f32 %v1869, 0.0
    %v2200 = vmax.f32 %v1897, 0.0
    %v2201 = vmax.f32 %v1925, 0.0
    %v2202 = vmax.f32 %v1953, 0.0
    %v2203 = vmax.f32 %v1981, 0.0
    %v2204 = vmax.f32 %v2009, 0.0
    %v2205 = vmax.f32 %v2037, 0.0
    %v2206 = vmax.f32 %v2065, 0.0
    %v2207 = vmax.f32 %v2093, 0.0
    %v2208 = vmax.f32 %v2121, 0.0
    %v2209 = vmax.f32 %v2149, 0.0
    %v2210 = vmax.f32 %v2177, 0.0
    %v2211 = vlaneseq
    %v2212 = vshrl.u32 %v2211, 7
    %v2213 = vadd.s32 %v2212, 8
    %vm2214 = vcmp.lt.s32.totalorder %v2212, 2
    %vm2215 = vcmp.lt.s32.totalorder %v2213, 2
    %v2216 = vsel %vm2214, 1, 0
    %v2217 = vsel %vm2215, 1, 0
    %v2218 = vcvt.s32.f32 %v2216
    %v2219 = vcvt.s32.f32 %v2217
    %v2220 = vpack.c.bf16 %v2195, %v2179
    %v2221 = vpack.c.bf16 %v2196, %v2180
    %v2222 = vpack.c.bf16 %v2197, %v2181
    %v2223 = vpack.c.bf16 %v2198, %v2182
    %v2224 = vpack.c.bf16 %v2199, %v2183
    %v2225 = vpack.c.bf16 %v2200, %v2184
    %v2226 = vpack.c.bf16 %v2201, %v2185
    %v2227 = vpack.c.bf16 %v2202, %v2186
    %v2228 = vpack.c.bf16 %v2203, %v2187
    %v2229 = vpack.c.bf16 %v2204, %v2188
    %v2230 = vpack.c.bf16 %v2205, %v2189
    %v2231 = vpack.c.bf16 %v2206, %v2190
    %v2232 = vpack.c.bf16 %v2207, %v2191
    %v2233 = vpack.c.bf16 %v2208, %v2192
    %v2234 = vpack.c.bf16 %v2209, %v2193
    %v2235 = vpack.c.bf16 %v2210, %v2194
    %v2236 = vld [vmem:[#allocation7] sm:$0xff]
    %v2237 = vld [vmem:[#allocation7 + $0x8] sm:$0xff]
    %v2238 = vld [vmem:[#allocation7 + $0x10] sm:$0xff]
    %v2239 = vld [vmem:[#allocation7 + $0x18] sm:$0xff]
    %v2240 = vld [vmem:[#allocation7 + $0x20] sm:$0xff]
    %v2241 = vld [vmem:[#allocation7 + $0x28] sm:$0xff]
    %v2242 = vld [vmem:[#allocation7 + $0x30] sm:$0xff]
    %v2243 = vld [vmem:[#allocation7 + $0x38] sm:$0xff]
    %v2244 = vld [vmem:[#allocation7 + $0x40] sm:$0xff]
    %v2245 = vld [vmem:[#allocation7 + $0x48] sm:$0xff]
    %v2246 = vld [vmem:[#allocation7 + $0x50] sm:$0xff]
    %v2247 = vld [vmem:[#allocation7 + $0x58] sm:$0xff]
    %v2248 = vld [vmem:[#allocation7 + $0x60] sm:$0xff]
    %v2249 = vld [vmem:[#allocation7 + $0x68] sm:$0xff]
    %v2250 = vld [vmem:[#allocation7 + $0x70] sm:$0xff]
    %v2251 = vld [vmem:[#allocation7 + $0x78] sm:$0xff]
    %v2252 = vld [vmem:[#allocation7 + $0x80] sm:$0xff]
    %v2253 = vld [vmem:[#allocation7 + $0x88] sm:$0xff]
    %v2254 = vld [vmem:[#allocation7 + $0x90] sm:$0xff]
    %v2255 = vld [vmem:[#allocation7 + $0x98] sm:$0xff]
    %v2256 = vld [vmem:[#allocation7 + $0xa0] sm:$0xff]
    %v2257 = vld [vmem:[#allocation7 + $0xa8] sm:$0xff]
    %v2258 = vld [vmem:[#allocation7 + $0xb0] sm:$0xff]
    %v2259 = vld [vmem:[#allocation7 + $0xb8] sm:$0xff]
    %v2260 = vld [vmem:[#allocation7 + $0xc0] sm:$0xff]
    %v2261 = vld [vmem:[#allocation7 + $0xc8] sm:$0xff]
    %v2262 = vld [vmem:[#allocation7 + $0xd0] sm:$0xff]
    %v2263 = vld [vmem:[#allocation7 + $0xd8] sm:$0xff]
    %v2264 = vld [vmem:[#allocation7 + $0xe0] sm:$0xff]
    %v2265 = vld [vmem:[#allocation7 + $0xe8] sm:$0xff]
    %v2266 = vld [vmem:[#allocation7 + $0xf0] sm:$0xff]
    %v2267 = vld [vmem:[#allocation7 + $0xf8] sm:$0xff]
    %v2268 = vld [vmem:[#allocation7 + $0x100] sm:$0xff]
    %v2269 = vld [vmem:[#allocation7 + $0x108] sm:$0xff]
    %v2270 = vld [vmem:[#allocation7 + $0x110] sm:$0xff]
    %v2271 = vld [vmem:[#allocation7 + $0x118] sm:$0xff]
    %v2272 = vld [vmem:[#allocation7 + $0x120] sm:$0xff]
    %v2273 = vld [vmem:[#allocation7 + $0x128] sm:$0xff]
    %v2274 = vld [vmem:[#allocation7 + $0x130] sm:$0xff]
    %v2275 = vld [vmem:[#allocation7 + $0x138] sm:$0xff]
    %v2276 = vld [vmem:[#allocation7 + $0x140] sm:$0xff]
    %v2277 = vld [vmem:[#allocation7 + $0x148] sm:$0xff]
    %v2278 = vld [vmem:[#allocation7 + $0x150] sm:$0xff]
    %v2279 = vld [vmem:[#allocation7 + $0x158] sm:$0xff]
    %v2280 = vld [vmem:[#allocation7 + $0x160] sm:$0xff]
    %v2281 = vld [vmem:[#allocation7 + $0x168] sm:$0xff]
    %v2282 = vld [vmem:[#allocation7 + $0x170] sm:$0xff]
    %v2283 = vld [vmem:[#allocation7 + $0x178] sm:$0xff]
    %v2284 = vld [vmem:[#allocation7 + $0x180] sm:$0xff]
    %v2285 = vld [vmem:[#allocation7 + $0x188] sm:$0xff]
    %v2286 = vld [vmem:[#allocation7 + $0x190] sm:$0xff]
    %v2287 = vld [vmem:[#allocation7 + $0x198] sm:$0xff]
    %v2288 = vld [vmem:[#allocation7 + $0x1a0] sm:$0xff]
    %v2289 = vld [vmem:[#allocation7 + $0x1a8] sm:$0xff]
    %v2290 = vld [vmem:[#allocation7 + $0x1b0] sm:$0xff]
    %v2291 = vld [vmem:[#allocation7 + $0x1b8] sm:$0xff]
    %v2292 = vld [vmem:[#allocation7 + $0x1c0] sm:$0xff]
    %v2293 = vld [vmem:[#allocation7 + $0x1c8] sm:$0xff]
    %v2294 = vld [vmem:[#allocation7 + $0x1d0] sm:$0xff]
    %v2295 = vld [vmem:[#allocation7 + $0x1d8] sm:$0xff]
    %v2296 = vld [vmem:[#allocation7 + $0x1e0] sm:$0xff]
    %v2297 = vld [vmem:[#allocation7 + $0x1e8] sm:$0xff]
    %v2298 = vld [vmem:[#allocation7 + $0x1f0] sm:$0xff]
    %v2299 = vld [vmem:[#allocation7 + $0x1f8] sm:$0xff]
    %v2300 = vld [vmem:[#allocation7 + $0x200] sm:$0xff]
    %v2301 = vld [vmem:[#allocation7 + $0x208] sm:$0xff]
    %v2302 = vld [vmem:[#allocation7 + $0x210] sm:$0xff]
    %v2303 = vld [vmem:[#allocation7 + $0x218] sm:$0xff]
    %v2304 = vld [vmem:[#allocation7 + $0x220] sm:$0xff]
    %v2305 = vld [vmem:[#allocation7 + $0x228] sm:$0xff]
    %v2306 = vld [vmem:[#allocation7 + $0x230] sm:$0xff]
    %v2307 = vld [vmem:[#allocation7 + $0x238] sm:$0xff]
    %v2308 = vld [vmem:[#allocation7 + $0x240] sm:$0xff]
    %v2309 = vld [vmem:[#allocation7 + $0x248] sm:$0xff]
    %v2310 = vld [vmem:[#allocation7 + $0x250] sm:$0xff]
    %v2311 = vld [vmem:[#allocation7 + $0x258] sm:$0xff]
    %v2312 = vld [vmem:[#allocation7 + $0x260] sm:$0xff]
    %v2313 = vld [vmem:[#allocation7 + $0x268] sm:$0xff]
    %v2314 = vld [vmem:[#allocation7 + $0x270] sm:$0xff]
    %v2315 = vld [vmem:[#allocation7 + $0x278] sm:$0xff]
    %v2316 = vld [vmem:[#allocation7 + $0x280] sm:$0xff]
    %v2317 = vld [vmem:[#allocation7 + $0x288] sm:$0xff]
    %v2318 = vld [vmem:[#allocation7 + $0x290] sm:$0xff]
    %v2319 = vld [vmem:[#allocation7 + $0x298] sm:$0xff]
    %v2320 = vld [vmem:[#allocation7 + $0x2a0] sm:$0xff]
    %v2321 = vld [vmem:[#allocation7 + $0x2a8] sm:$0xff]
    %v2322 = vld [vmem:[#allocation7 + $0x2b0] sm:$0xff]
    %v2323 = vld [vmem:[#allocation7 + $0x2b8] sm:$0xff]
    %v2324 = vld [vmem:[#allocation7 + $0x2c0] sm:$0xff]
    %v2325 = vld [vmem:[#allocation7 + $0x2c8] sm:$0xff]
    %v2326 = vld [vmem:[#allocation7 + $0x2d0] sm:$0xff]
    %v2327 = vld [vmem:[#allocation7 + $0x2d8] sm:$0xff]
    %v2328 = vld [vmem:[#allocation7 + $0x2e0] sm:$0xff]
    %v2329 = vld [vmem:[#allocation7 + $0x2e8] sm:$0xff]
    %v2330 = vld [vmem:[#allocation7 + $0x2f0] sm:$0xff]
    %v2331 = vld [vmem:[#allocation7 + $0x2f8] sm:$0xff]
    %v2332 = vld [vmem:[#allocation7 + $0x300] sm:$0xff]
    %v2333 = vld [vmem:[#allocation7 + $0x308] sm:$0xff]
    %v2334 = vld [vmem:[#allocation7 + $0x310] sm:$0xff]
    %v2335 = vld [vmem:[#allocation7 + $0x318] sm:$0xff]
    %v2336 = vld [vmem:[#allocation7 + $0x320] sm:$0xff]
    %v2337 = vld [vmem:[#allocation7 + $0x328] sm:$0xff]
    %v2338 = vld [vmem:[#allocation7 + $0x330] sm:$0xff]
    %v2339 = vld [vmem:[#allocation7 + $0x338] sm:$0xff]
    %v2340 = vld [vmem:[#allocation7 + $0x340] sm:$0xff]
    %v2341 = vld [vmem:[#allocation7 + $0x348] sm:$0xff]
    %v2342 = vld [vmem:[#allocation7 + $0x350] sm:$0xff]
    %v2343 = vld [vmem:[#allocation7 + $0x358] sm:$0xff]
    %v2344 = vld [vmem:[#allocation7 + $0x360] sm:$0xff]
    %v2345 = vld [vmem:[#allocation7 + $0x368] sm:$0xff]
    %v2346 = vld [vmem:[#allocation7 + $0x370] sm:$0xff]
    %v2347 = vld [vmem:[#allocation7 + $0x378] sm:$0xff]
    %v2348 = vld [vmem:[#allocation7 + $0x380] sm:$0xff]
    %v2349 = vld [vmem:[#allocation7 + $0x388] sm:$0xff]
    %v2350 = vld [vmem:[#allocation7 + $0x390] sm:$0xff]
    %v2351 = vld [vmem:[#allocation7 + $0x398] sm:$0xff]
    %v2352 = vld [vmem:[#allocation7 + $0x3a0] sm:$0xff]
    %v2353 = vld [vmem:[#allocation7 + $0x3a8] sm:$0xff]
    %v2354 = vld [vmem:[#allocation7 + $0x3b0] sm:$0xff]
    %v2355 = vld [vmem:[#allocation7 + $0x3b8] sm:$0xff]
    %v2356 = vld [vmem:[#allocation7 + $0x3c0] sm:$0xff]
    %v2357 = vld [vmem:[#allocation7 + $0x3c8] sm:$0xff]
    %v2358 = vld [vmem:[#allocation7 + $0x3d0] sm:$0xff]
    %v2359 = vld [vmem:[#allocation7 + $0x3d8] sm:$0xff]
    %v2360 = vld [vmem:[#allocation7 + $0x3e0] sm:$0xff]
    %v2361 = vld [vmem:[#allocation7 + $0x3e8] sm:$0xff]
    %v2362 = vld [vmem:[#allocation7 + $0x3f0] sm:$0xff]
    %v2363 = vld [vmem:[#allocation7 + $0x3f8] sm:$0xff]
    %v2364 = vld [vmem:[#allocation7 + $0x400] sm:$0xff]
    %v2365 = vld [vmem:[#allocation7 + $0x408] sm:$0xff]
    %v2366 = vld [vmem:[#allocation7 + $0x410] sm:$0xff]
    %v2367 = vld [vmem:[#allocation7 + $0x418] sm:$0xff]
    %v2368 = vld [vmem:[#allocation7 + $0x420] sm:$0xff]
    %v2369 = vld [vmem:[#allocation7 + $0x428] sm:$0xff]
    %v2370 = vld [vmem:[#allocation7 + $0x430] sm:$0xff]
    %v2371 = vld [vmem:[#allocation7 + $0x438] sm:$0xff]
    %v2372 = vld [vmem:[#allocation7 + $0x440] sm:$0xff]
    %v2373 = vld [vmem:[#allocation7 + $0x448] sm:$0xff]
    %v2374 = vld [vmem:[#allocation7 + $0x450] sm:$0xff]
    %v2375 = vld [vmem:[#allocation7 + $0x458] sm:$0xff]
    %v2376 = vld [vmem:[#allocation7 + $0x460] sm:$0xff]
    %v2377 = vld [vmem:[#allocation7 + $0x468] sm:$0xff]
    %v2378 = vld [vmem:[#allocation7 + $0x470] sm:$0xff]
    %v2379 = vld [vmem:[#allocation7 + $0x478] sm:$0xff]
    %v2380 = vld [vmem:[#allocation7 + $0x480] sm:$0xff]
    %v2381 = vld [vmem:[#allocation7 + $0x488] sm:$0xff]
    %v2382 = vld [vmem:[#allocation7 + $0x490] sm:$0xff]
    %v2383 = vld [vmem:[#allocation7 + $0x498] sm:$0xff]
    %v2384 = vld [vmem:[#allocation7 + $0x4a0] sm:$0xff]
    %v2385 = vld [vmem:[#allocation7 + $0x4a8] sm:$0xff]
    %v2386 = vld [vmem:[#allocation7 + $0x4b0] sm:$0xff]
    %v2387 = vld [vmem:[#allocation7 + $0x4b8] sm:$0xff]
    %v2388 = vld [vmem:[#allocation7 + $0x4c0] sm:$0xff]
    %v2389 = vld [vmem:[#allocation7 + $0x4c8] sm:$0xff]
    %v2390 = vld [vmem:[#allocation7 + $0x4d0] sm:$0xff]
    %v2391 = vld [vmem:[#allocation7 + $0x4d8] sm:$0xff]
    %v2392 = vld [vmem:[#allocation7 + $0x4e0] sm:$0xff]
    %v2393 = vld [vmem:[#allocation7 + $0x4e8] sm:$0xff]
    %v2394 = vld [vmem:[#allocation7 + $0x4f0] sm:$0xff]
    %v2395 = vld [vmem:[#allocation7 + $0x4f8] sm:$0xff]
    %v2396 = vld [vmem:[#allocation7 + $0x500] sm:$0xff]
    %v2397 = vld [vmem:[#allocation7 + $0x508] sm:$0xff]
    %v2398 = vld [vmem:[#allocation7 + $0x510] sm:$0xff]
    %v2399 = vld [vmem:[#allocation7 + $0x518] sm:$0xff]
    %v2400 = vld [vmem:[#allocation7 + $0x520] sm:$0xff]
    %v2401 = vld [vmem:[#allocation7 + $0x528] sm:$0xff]
    %v2402 = vld [vmem:[#allocation7 + $0x530] sm:$0xff]
    %v2403 = vld [vmem:[#allocation7 + $0x538] sm:$0xff]
    %v2404 = vld [vmem:[#allocation7 + $0x540] sm:$0xff]
    %v2405 = vld [vmem:[#allocation7 + $0x548] sm:$0xff]
    %v2406 = vld [vmem:[#allocation7 + $0x550] sm:$0xff]
    %v2407 = vld [vmem:[#allocation7 + $0x558] sm:$0xff]
    %v2408 = vld [vmem:[#allocation7 + $0x560] sm:$0xff]
    %v2409 = vld [vmem:[#allocation7 + $0x568] sm:$0xff]
    %v2410 = vld [vmem:[#allocation7 + $0x570] sm:$0xff]
    %v2411 = vld [vmem:[#allocation7 + $0x578] sm:$0xff]
    %v2412 = vld [vmem:[#allocation7 + $0x580] sm:$0xff]
    %v2413 = vld [vmem:[#allocation7 + $0x588] sm:$0xff]
    %v2414 = vld [vmem:[#allocation7 + $0x590] sm:$0xff]
    %v2415 = vld [vmem:[#allocation7 + $0x598] sm:$0xff]
    %v2416 = vld [vmem:[#allocation7 + $0x5a0] sm:$0xff]
    %v2417 = vld [vmem:[#allocation7 + $0x5a8] sm:$0xff]
    %v2418 = vld [vmem:[#allocation7 + $0x5b0] sm:$0xff]
    %v2419 = vld [vmem:[#allocation7 + $0x5b8] sm:$0xff]
    %v2420 = vld [vmem:[#allocation7 + $0x5c0] sm:$0xff]
    %v2421 = vld [vmem:[#allocation7 + $0x5c8] sm:$0xff]
    %v2422 = vld [vmem:[#allocation7 + $0x5d0] sm:$0xff]
    %v2423 = vld [vmem:[#allocation7 + $0x5d8] sm:$0xff]
    %v2424 = vld [vmem:[#allocation7 + $0x5e0] sm:$0xff]
    %v2425 = vld [vmem:[#allocation7 + $0x5e8] sm:$0xff]
    %v2426 = vld [vmem:[#allocation7 + $0x5f0] sm:$0xff]
    %v2427 = vld [vmem:[#allocation7 + $0x5f8] sm:$0xff]
    %v2428 = vld [vmem:[#allocation7 + $0x600] sm:$0xff]
    %v2429 = vld [vmem:[#allocation7 + $0x608] sm:$0xff]
    %v2430 = vld [vmem:[#allocation7 + $0x610] sm:$0xff]
    %v2431 = vld [vmem:[#allocation7 + $0x618] sm:$0xff]
    %v2432 = vld [vmem:[#allocation7 + $0x620] sm:$0xff]
    %v2433 = vld [vmem:[#allocation7 + $0x628] sm:$0xff]
    %v2434 = vld [vmem:[#allocation7 + $0x630] sm:$0xff]
    %v2435 = vld [vmem:[#allocation7 + $0x638] sm:$0xff]
    %v2436 = vld [vmem:[#allocation7 + $0x640] sm:$0xff]
    %v2437 = vld [vmem:[#allocation7 + $0x648] sm:$0xff]
    %v2438 = vld [vmem:[#allocation7 + $0x650] sm:$0xff]
    %v2439 = vld [vmem:[#allocation7 + $0x658] sm:$0xff]
    %v2440 = vld [vmem:[#allocation7 + $0x660] sm:$0xff]
    %v2441 = vld [vmem:[#allocation7 + $0x668] sm:$0xff]
    %v2442 = vld [vmem:[#allocation7 + $0x670] sm:$0xff]
    %v2443 = vld [vmem:[#allocation7 + $0x678] sm:$0xff]
    %v2444 = vld [vmem:[#allocation7 + $0x680] sm:$0xff]
    %v2445 = vld [vmem:[#allocation7 + $0x688] sm:$0xff]
    %v2446 = vld [vmem:[#allocation7 + $0x690] sm:$0xff]
    %v2447 = vld [vmem:[#allocation7 + $0x698] sm:$0xff]
    %v2448 = vld [vmem:[#allocation7 + $0x6a0] sm:$0xff]
    %v2449 = vld [vmem:[#allocation7 + $0x6a8] sm:$0xff]
    %v2450 = vld [vmem:[#allocation7 + $0x6b0] sm:$0xff]
    %v2451 = vld [vmem:[#allocation7 + $0x6b8] sm:$0xff]
    %v2452 = vld [vmem:[#allocation7 + $0x6c0] sm:$0xff]
    %v2453 = vld [vmem:[#allocation7 + $0x6c8] sm:$0xff]
    %v2454 = vld [vmem:[#allocation7 + $0x6d0] sm:$0xff]
    %v2455 = vld [vmem:[#allocation7 + $0x6d8] sm:$0xff]
    %v2456 = vld [vmem:[#allocation7 + $0x6e0] sm:$0xff]
    %v2457 = vld [vmem:[#allocation7 + $0x6e8] sm:$0xff]
    %v2458 = vld [vmem:[#allocation7 + $0x6f0] sm:$0xff]
    %v2459 = vld [vmem:[#allocation7 + $0x6f8] sm:$0xff]
    %v2460 = vld [vmem:[#allocation7 + $0x700] sm:$0xff]
    %v2461 = vld [vmem:[#allocation7 + $0x708] sm:$0xff]
    %v2462 = vld [vmem:[#allocation7 + $0x710] sm:$0xff]
    %v2463 = vld [vmem:[#allocation7 + $0x718] sm:$0xff]
    %v2464 = vld [vmem:[#allocation7 + $0x720] sm:$0xff]
    %v2465 = vld [vmem:[#allocation7 + $0x728] sm:$0xff]
    %v2466 = vld [vmem:[#allocation7 + $0x730] sm:$0xff]
    %v2467 = vld [vmem:[#allocation7 + $0x738] sm:$0xff]
    %v2468 = vld [vmem:[#allocation7 + $0x740] sm:$0xff]
    %v2469 = vld [vmem:[#allocation7 + $0x748] sm:$0xff]
    %v2470 = vld [vmem:[#allocation7 + $0x750] sm:$0xff]
    %v2471 = vld [vmem:[#allocation7 + $0x758] sm:$0xff]
    %v2472 = vld [vmem:[#allocation7 + $0x760] sm:$0xff]
    %v2473 = vld [vmem:[#allocation7 + $0x768] sm:$0xff]
    %v2474 = vld [vmem:[#allocation7 + $0x770] sm:$0xff]
    %v2475 = vld [vmem:[#allocation7 + $0x778] sm:$0xff]
    %v2476 = vld [vmem:[#allocation7 + $0x780] sm:$0xff]
    %v2477 = vld [vmem:[#allocation7 + $0x788] sm:$0xff]
    %v2478 = vld [vmem:[#allocation7 + $0x790] sm:$0xff]
    %v2479 = vld [vmem:[#allocation7 + $0x798] sm:$0xff]
    %v2480 = vld [vmem:[#allocation7 + $0x7a0] sm:$0xff]
    %v2481 = vld [vmem:[#allocation7 + $0x7a8] sm:$0xff]
    %v2482 = vld [vmem:[#allocation7 + $0x7b0] sm:$0xff]
    %v2483 = vld [vmem:[#allocation7 + $0x7b8] sm:$0xff]
    %v2484 = vld [vmem:[#allocation7 + $0x7c0] sm:$0xff]
    %v2485 = vld [vmem:[#allocation7 + $0x7c8] sm:$0xff]
    %v2486 = vld [vmem:[#allocation7 + $0x7d0] sm:$0xff]
    %v2487 = vld [vmem:[#allocation7 + $0x7d8] sm:$0xff]
    %v2488 = vld [vmem:[#allocation7 + $0x7e0] sm:$0xff]
    %v2489 = vld [vmem:[#allocation7 + $0x7e8] sm:$0xff]
    %v2490 = vld [vmem:[#allocation7 + $0x7f0] sm:$0xff]
    %v2491 = vld [vmem:[#allocation7 + $0x7f8] sm:$0xff]
    %v2492 = vld [vmem:[#allocation7 + $0x800] sm:$0xff]
    %v2493 = vld [vmem:[#allocation7 + $0x808] sm:$0xff]
    %v2494 = vld [vmem:[#allocation7 + $0x810] sm:$0xff]
    %v2495 = vld [vmem:[#allocation7 + $0x818] sm:$0xff]
    %v2496 = vld [vmem:[#allocation7 + $0x820] sm:$0xff]
    %v2497 = vld [vmem:[#allocation7 + $0x828] sm:$0xff]
    %v2498 = vld [vmem:[#allocation7 + $0x830] sm:$0xff]
    %v2499 = vld [vmem:[#allocation7 + $0x838] sm:$0xff]
    %v2500 = vld [vmem:[#allocation7 + $0x840] sm:$0xff]
    %v2501 = vld [vmem:[#allocation7 + $0x848] sm:$0xff]
    %v2502 = vld [vmem:[#allocation7 + $0x850] sm:$0xff]
    %v2503 = vld [vmem:[#allocation7 + $0x858] sm:$0xff]
    %v2504 = vld [vmem:[#allocation7 + $0x860] sm:$0xff]
    %v2505 = vld [vmem:[#allocation7 + $0x868] sm:$0xff]
    %v2506 = vld [vmem:[#allocation7 + $0x870] sm:$0xff]
    %v2507 = vld [vmem:[#allocation7 + $0x878] sm:$0xff]
    %v2508 = vld [vmem:[#allocation7 + $0x880] sm:$0xff]
    %v2509 = vld [vmem:[#allocation7 + $0x888] sm:$0xff]
    %v2510 = vld [vmem:[#allocation7 + $0x890] sm:$0xff]
    %v2511 = vld [vmem:[#allocation7 + $0x898] sm:$0xff]
    %v2512 = vld [vmem:[#allocation7 + $0x8a0] sm:$0xff]
    %v2513 = vld [vmem:[#allocation7 + $0x8a8] sm:$0xff]
    %v2514 = vld [vmem:[#allocation7 + $0x8b0] sm:$0xff]
    %v2515 = vld [vmem:[#allocation7 + $0x8b8] sm:$0xff]
    %v2516 = vld [vmem:[#allocation7 + $0x8c0] sm:$0xff]
    %v2517 = vld [vmem:[#allocation7 + $0x8c8] sm:$0xff]
    %v2518 = vld [vmem:[#allocation7 + $0x8d0] sm:$0xff]
    %v2519 = vld [vmem:[#allocation7 + $0x8d8] sm:$0xff]
    %v2520 = vld [vmem:[#allocation7 + $0x8e0] sm:$0xff]
    %v2521 = vld [vmem:[#allocation7 + $0x8e8] sm:$0xff]
    %v2522 = vld [vmem:[#allocation7 + $0x8f0] sm:$0xff]
    %v2523 = vld [vmem:[#allocation7 + $0x8f8] sm:$0xff]
    %v2524 = vld [vmem:[#allocation7 + $0x900] sm:$0xff]
    %v2525 = vld [vmem:[#allocation7 + $0x908] sm:$0xff]
    %v2526 = vld [vmem:[#allocation7 + $0x910] sm:$0xff]
    %v2527 = vld [vmem:[#allocation7 + $0x918] sm:$0xff]
    %v2528 = vld [vmem:[#allocation7 + $0x920] sm:$0xff]
    %v2529 = vld [vmem:[#allocation7 + $0x928] sm:$0xff]
    %v2530 = vld [vmem:[#allocation7 + $0x930] sm:$0xff]
    %v2531 = vld [vmem:[#allocation7 + $0x938] sm:$0xff]
    %v2532 = vld [vmem:[#allocation7 + $0x940] sm:$0xff]
    %v2533 = vld [vmem:[#allocation7 + $0x948] sm:$0xff]
    %v2534 = vld [vmem:[#allocation7 + $0x950] sm:$0xff]
    %v2535 = vld [vmem:[#allocation7 + $0x958] sm:$0xff]
    %v2536 = vld [vmem:[#allocation7 + $0x960] sm:$0xff]
    %v2537 = vld [vmem:[#allocation7 + $0x968] sm:$0xff]
    %v2538 = vld [vmem:[#allocation7 + $0x970] sm:$0xff]
    %v2539 = vld [vmem:[#allocation7 + $0x978] sm:$0xff]
    %v2540 = vld [vmem:[#allocation7 + $0x980] sm:$0xff]
    %v2541 = vld [vmem:[#allocation7 + $0x988] sm:$0xff]
    %v2542 = vld [vmem:[#allocation7 + $0x990] sm:$0xff]
    %v2543 = vld [vmem:[#allocation7 + $0x998] sm:$0xff]
    %v2544 = vld [vmem:[#allocation7 + $0x9a0] sm:$0xff]
    %v2545 = vld [vmem:[#allocation7 + $0x9a8] sm:$0xff]
    %v2546 = vld [vmem:[#allocation7 + $0x9b0] sm:$0xff]
    %v2547 = vld [vmem:[#allocation7 + $0x9b8] sm:$0xff]
    %v2548 = vld [vmem:[#allocation7 + $0x9c0] sm:$0xff]
    %v2549 = vld [vmem:[#allocation7 + $0x9c8] sm:$0xff]
    %v2550 = vld [vmem:[#allocation7 + $0x9d0] sm:$0xff]
    %v2551 = vld [vmem:[#allocation7 + $0x9d8] sm:$0xff]
    %v2552 = vld [vmem:[#allocation7 + $0x9e0] sm:$0xff]
    %v2553 = vld [vmem:[#allocation7 + $0x9e8] sm:$0xff]
    %v2554 = vld [vmem:[#allocation7 + $0x9f0] sm:$0xff]
    %v2555 = vld [vmem:[#allocation7 + $0x9f8] sm:$0xff]
    %v2556 = vld [vmem:[#allocation7 + $0xa00] sm:$0xff]
    %v2557 = vld [vmem:[#allocation7 + $0xa08] sm:$0xff]
    %v2558 = vld [vmem:[#allocation7 + $0xa10] sm:$0xff]
    %v2559 = vld [vmem:[#allocation7 + $0xa18] sm:$0xff]
    %v2560 = vld [vmem:[#allocation7 + $0xa20] sm:$0xff]
    %v2561 = vld [vmem:[#allocation7 + $0xa28] sm:$0xff]
    %v2562 = vld [vmem:[#allocation7 + $0xa30] sm:$0xff]
    %v2563 = vld [vmem:[#allocation7 + $0xa38] sm:$0xff]
    %v2564 = vld [vmem:[#allocation7 + $0xa40] sm:$0xff]
    %v2565 = vld [vmem:[#allocation7 + $0xa48] sm:$0xff]
    %v2566 = vld [vmem:[#allocation7 + $0xa50] sm:$0xff]
    %v2567 = vld [vmem:[#allocation7 + $0xa58] sm:$0xff]
    %v2568 = vld [vmem:[#allocation7 + $0xa60] sm:$0xff]
    %v2569 = vld [vmem:[#allocation7 + $0xa68] sm:$0xff]
    %v2570 = vld [vmem:[#allocation7 + $0xa70] sm:$0xff]
    %v2571 = vld [vmem:[#allocation7 + $0xa78] sm:$0xff]
    %v2572 = vld [vmem:[#allocation7 + $0xa80] sm:$0xff]
    %v2573 = vld [vmem:[#allocation7 + $0xa88] sm:$0xff]
    %v2574 = vld [vmem:[#allocation7 + $0xa90] sm:$0xff]
    %v2575 = vld [vmem:[#allocation7 + $0xa98] sm:$0xff]
    %v2576 = vld [vmem:[#allocation7 + $0xaa0] sm:$0xff]
    %v2577 = vld [vmem:[#allocation7 + $0xaa8] sm:$0xff]
    %v2578 = vld [vmem:[#allocation7 + $0xab0] sm:$0xff]
    %v2579 = vld [vmem:[#allocation7 + $0xab8] sm:$0xff]
    %v2580 = vld [vmem:[#allocation7 + $0xac0] sm:$0xff]
    %v2581 = vld [vmem:[#allocation7 + $0xac8] sm:$0xff]
    %v2582 = vld [vmem:[#allocation7 + $0xad0] sm:$0xff]
    %v2583 = vld [vmem:[#allocation7 + $0xad8] sm:$0xff]
    %v2584 = vld [vmem:[#allocation7 + $0xae0] sm:$0xff]
    %v2585 = vld [vmem:[#allocation7 + $0xae8] sm:$0xff]
    %v2586 = vld [vmem:[#allocation7 + $0xaf0] sm:$0xff]
    %v2587 = vld [vmem:[#allocation7 + $0xaf8] sm:$0xff]
    %v2588 = vld [vmem:[#allocation7 + $0xb00] sm:$0xff]
    %v2589 = vld [vmem:[#allocation7 + $0xb08] sm:$0xff]
    %v2590 = vld [vmem:[#allocation7 + $0xb10] sm:$0xff]
    %v2591 = vld [vmem:[#allocation7 + $0xb18] sm:$0xff]
    %v2592 = vld [vmem:[#allocation7 + $0xb20] sm:$0xff]
    %v2593 = vld [vmem:[#allocation7 + $0xb28] sm:$0xff]
    %v2594 = vld [vmem:[#allocation7 + $0xb30] sm:$0xff]
    %v2595 = vld [vmem:[#allocation7 + $0xb38] sm:$0xff]
    %v2596 = vld [vmem:[#allocation7 + $0xb40] sm:$0xff]
    %v2597 = vld [vmem:[#allocation7 + $0xb48] sm:$0xff]
    %v2598 = vld [vmem:[#allocation7 + $0xb50] sm:$0xff]
    %v2599 = vld [vmem:[#allocation7 + $0xb58] sm:$0xff]
    %v2600 = vld [vmem:[#allocation7 + $0xb60] sm:$0xff]
    %v2601 = vld [vmem:[#allocation7 + $0xb68] sm:$0xff]
    %v2602 = vld [vmem:[#allocation7 + $0xb70] sm:$0xff]
    %v2603 = vld [vmem:[#allocation7 + $0xb78] sm:$0xff]
    %v2604 = vld [vmem:[#allocation7 + $0xb80] sm:$0xff]
    %v2605 = vld [vmem:[#allocation7 + $0xb88] sm:$0xff]
    %v2606 = vld [vmem:[#allocation7 + $0xb90] sm:$0xff]
    %v2607 = vld [vmem:[#allocation7 + $0xb98] sm:$0xff]
    %v2608 = vld [vmem:[#allocation7 + $0xba0] sm:$0xff]
    %v2609 = vld [vmem:[#allocation7 + $0xba8] sm:$0xff]
    %v2610 = vld [vmem:[#allocation7 + $0xbb0] sm:$0xff]
    %v2611 = vld [vmem:[#allocation7 + $0xbb8] sm:$0xff]
    %v2612 = vld [vmem:[#allocation7 + $0xbc0] sm:$0xff]
    %v2613 = vld [vmem:[#allocation7 + $0xbc8] sm:$0xff]
    %v2614 = vld [vmem:[#allocation7 + $0xbd0] sm:$0xff]
    %v2615 = vld [vmem:[#allocation7 + $0xbd8] sm:$0xff]
    %v2616 = vld [vmem:[#allocation7 + $0xbe0] sm:$0xff]
    %v2617 = vld [vmem:[#allocation7 + $0xbe8] sm:$0xff]
    %v2618 = vld [vmem:[#allocation7 + $0xbf0] sm:$0xff]
    %v2619 = vld [vmem:[#allocation7 + $0xbf8] sm:$0xff]
    %v2620 = vld [vmem:[#allocation7 + $0xc00] sm:$0xff]
    %v2621 = vld [vmem:[#allocation7 + $0xc08] sm:$0xff]
    %v2622 = vld [vmem:[#allocation7 + $0xc10] sm:$0xff]
    %v2623 = vld [vmem:[#allocation7 + $0xc18] sm:$0xff]
    %v2624 = vld [vmem:[#allocation7 + $0xc20] sm:$0xff]
    %v2625 = vld [vmem:[#allocation7 + $0xc28] sm:$0xff]
    %v2626 = vld [vmem:[#allocation7 + $0xc30] sm:$0xff]
    %v2627 = vld [vmem:[#allocation7 + $0xc38] sm:$0xff]
    %v2628 = vld [vmem:[#allocation7 + $0xc40] sm:$0xff]
    %v2629 = vld [vmem:[#allocation7 + $0xc48] sm:$0xff]
    %v2630 = vld [vmem:[#allocation7 + $0xc50] sm:$0xff]
    %v2631 = vld [vmem:[#allocation7 + $0xc58] sm:$0xff]
    %v2632 = vld [vmem:[#allocation7 + $0xc60] sm:$0xff]
    %v2633 = vld [vmem:[#allocation7 + $0xc68] sm:$0xff]
    %v2634 = vld [vmem:[#allocation7 + $0xc70] sm:$0xff]
    %v2635 = vld [vmem:[#allocation7 + $0xc78] sm:$0xff]
    %v2636 = vld [vmem:[#allocation7 + $0xc80] sm:$0xff]
    %v2637 = vld [vmem:[#allocation7 + $0xc88] sm:$0xff]
    %v2638 = vld [vmem:[#allocation7 + $0xc90] sm:$0xff]
    %v2639 = vld [vmem:[#allocation7 + $0xc98] sm:$0xff]
    %v2640 = vld [vmem:[#allocation7 + $0xca0] sm:$0xff]
    %v2641 = vld [vmem:[#allocation7 + $0xca8] sm:$0xff]
    %v2642 = vld [vmem:[#allocation7 + $0xcb0] sm:$0xff]
    %v2643 = vld [vmem:[#allocation7 + $0xcb8] sm:$0xff]
    %v2644 = vld [vmem:[#allocation7 + $0xcc0] sm:$0xff]
    %v2645 = vld [vmem:[#allocation7 + $0xcc8] sm:$0xff]
    %v2646 = vld [vmem:[#allocation7 + $0xcd0] sm:$0xff]
    %v2647 = vld [vmem:[#allocation7 + $0xcd8] sm:$0xff]
    %v2648 = vld [vmem:[#allocation7 + $0xce0] sm:$0xff]
    %v2649 = vld [vmem:[#allocation7 + $0xce8] sm:$0xff]
    %v2650 = vld [vmem:[#allocation7 + $0xcf0] sm:$0xff]
    %v2651 = vld [vmem:[#allocation7 + $0xcf8] sm:$0xff]
    %v2652 = vld [vmem:[#allocation7 + $0xd00] sm:$0xff]
    %v2653 = vld [vmem:[#allocation7 + $0xd08] sm:$0xff]
    %v2654 = vld [vmem:[#allocation7 + $0xd10] sm:$0xff]
    %v2655 = vld [vmem:[#allocation7 + $0xd18] sm:$0xff]
    %v2656 = vld [vmem:[#allocation7 + $0xd20] sm:$0xff]
    %v2657 = vld [vmem:[#allocation7 + $0xd28] sm:$0xff]
    %v2658 = vld [vmem:[#allocation7 + $0xd30] sm:$0xff]
    %v2659 = vld [vmem:[#allocation7 + $0xd38] sm:$0xff]
    %v2660 = vld [vmem:[#allocation7 + $0xd40] sm:$0xff]
    %v2661 = vld [vmem:[#allocation7 + $0xd48] sm:$0xff]
    %v2662 = vld [vmem:[#allocation7 + $0xd50] sm:$0xff]
    %v2663 = vld [vmem:[#allocation7 + $0xd58] sm:$0xff]
    %v2664 = vld [vmem:[#allocation7 + $0xd60] sm:$0xff]
    %v2665 = vld [vmem:[#allocation7 + $0xd68] sm:$0xff]
    %v2666 = vld [vmem:[#allocation7 + $0xd70] sm:$0xff]
    %v2667 = vld [vmem:[#allocation7 + $0xd78] sm:$0xff]
    %v2668 = vld [vmem:[#allocation7 + $0xd80] sm:$0xff]
    %v2669 = vld [vmem:[#allocation7 + $0xd88] sm:$0xff]
    %v2670 = vld [vmem:[#allocation7 + $0xd90] sm:$0xff]
    %v2671 = vld [vmem:[#allocation7 + $0xd98] sm:$0xff]
    %v2672 = vld [vmem:[#allocation7 + $0xda0] sm:$0xff]
    %v2673 = vld [vmem:[#allocation7 + $0xda8] sm:$0xff]
    %v2674 = vld [vmem:[#allocation7 + $0xdb0] sm:$0xff]
    %v2675 = vld [vmem:[#allocation7 + $0xdb8] sm:$0xff]
    %v2676 = vld [vmem:[#allocation7 + $0xdc0] sm:$0xff]
    %v2677 = vld [vmem:[#allocation7 + $0xdc8] sm:$0xff]
    %v2678 = vld [vmem:[#allocation7 + $0xdd0] sm:$0xff]
    %v2679 = vld [vmem:[#allocation7 + $0xdd8] sm:$0xff]
    %v2680 = vld [vmem:[#allocation7 + $0xde0] sm:$0xff]
    %v2681 = vld [vmem:[#allocation7 + $0xde8] sm:$0xff]
    %v2682 = vld [vmem:[#allocation7 + $0xdf0] sm:$0xff]
    %v2683 = vld [vmem:[#allocation7 + $0xdf8] sm:$0xff]
    %v2684 = vld [vmem:[#allocation7 + $0xe00] sm:$0xff]
    %v2685 = vld [vmem:[#allocation7 + $0xe08] sm:$0xff]
    %v2686 = vld [vmem:[#allocation7 + $0xe10] sm:$0xff]
    %v2687 = vld [vmem:[#allocation7 + $0xe18] sm:$0xff]
    %v2688 = vld [vmem:[#allocation7 + $0xe20] sm:$0xff]
    %v2689 = vld [vmem:[#allocation7 + $0xe28] sm:$0xff]
    %v2690 = vld [vmem:[#allocation7 + $0xe30] sm:$0xff]
    %v2691 = vld [vmem:[#allocation7 + $0xe38] sm:$0xff]
    %v2692 = vld [vmem:[#allocation7 + $0xe40] sm:$0xff]
    %v2693 = vld [vmem:[#allocation7 + $0xe48] sm:$0xff]
    %v2694 = vld [vmem:[#allocation7 + $0xe50] sm:$0xff]
    %v2695 = vld [vmem:[#allocation7 + $0xe58] sm:$0xff]
    %v2696 = vld [vmem:[#allocation7 + $0xe60] sm:$0xff]
    %v2697 = vld [vmem:[#allocation7 + $0xe68] sm:$0xff]
    %v2698 = vld [vmem:[#allocation7 + $0xe70] sm:$0xff]
    %v2699 = vld [vmem:[#allocation7 + $0xe78] sm:$0xff]
    %v2700 = vld [vmem:[#allocation7 + $0xe80] sm:$0xff]
    %v2701 = vld [vmem:[#allocation7 + $0xe88] sm:$0xff]
    %v2702 = vld [vmem:[#allocation7 + $0xe90] sm:$0xff]
    %v2703 = vld [vmem:[#allocation7 + $0xe98] sm:$0xff]
    %v2704 = vld [vmem:[#allocation7 + $0xea0] sm:$0xff]
    %v2705 = vld [vmem:[#allocation7 + $0xea8] sm:$0xff]
    %v2706 = vld [vmem:[#allocation7 + $0xeb0] sm:$0xff]
    %v2707 = vld [vmem:[#allocation7 + $0xeb8] sm:$0xff]
    %v2708 = vld [vmem:[#allocation7 + $0xec0] sm:$0xff]
    %v2709 = vld [vmem:[#allocation7 + $0xec8] sm:$0xff]
    %v2710 = vld [vmem:[#allocation7 + $0xed0] sm:$0xff]
    %v2711 = vld [vmem:[#allocation7 + $0xed8] sm:$0xff]
    %v2712 = vld [vmem:[#allocation7 + $0xee0] sm:$0xff]
    %v2713 = vld [vmem:[#allocation7 + $0xee8] sm:$0xff]
    %v2714 = vld [vmem:[#allocation7 + $0xef0] sm:$0xff]
    %v2715 = vld [vmem:[#allocation7 + $0xef8] sm:$0xff]
    %v2716 = vld [vmem:[#allocation7 + $0xf00] sm:$0xff]
    %v2717 = vld [vmem:[#allocation7 + $0xf08] sm:$0xff]
    %v2718 = vld [vmem:[#allocation7 + $0xf10] sm:$0xff]
    %v2719 = vld [vmem:[#allocation7 + $0xf18] sm:$0xff]
    %v2720 = vld [vmem:[#allocation7 + $0xf20] sm:$0xff]
    %v2721 = vld [vmem:[#allocation7 + $0xf28] sm:$0xff]
    %v2722 = vld [vmem:[#allocation7 + $0xf30] sm:$0xff]
    %v2723 = vld [vmem:[#allocation7 + $0xf38] sm:$0xff]
    %v2724 = vld [vmem:[#allocation7 + $0xf40] sm:$0xff]
    %v2725 = vld [vmem:[#allocation7 + $0xf48] sm:$0xff]
    %v2726 = vld [vmem:[#allocation7 + $0xf50] sm:$0xff]
    %v2727 = vld [vmem:[#allocation7 + $0xf58] sm:$0xff]
    %v2728 = vld [vmem:[#allocation7 + $0xf60] sm:$0xff]
    %v2729 = vld [vmem:[#allocation7 + $0xf68] sm:$0xff]
    %v2730 = vld [vmem:[#allocation7 + $0xf70] sm:$0xff]
    %v2731 = vld [vmem:[#allocation7 + $0xf78] sm:$0xff]
    %v2732 = vld [vmem:[#allocation7 + $0xf80] sm:$0xff]
    %v2733 = vld [vmem:[#allocation7 + $0xf88] sm:$0xff]
    %v2734 = vld [vmem:[#allocation7 + $0xf90] sm:$0xff]
    %v2735 = vld [vmem:[#allocation7 + $0xf98] sm:$0xff]
    %v2736 = vld [vmem:[#allocation7 + $0xfa0] sm:$0xff]
    %v2737 = vld [vmem:[#allocation7 + $0xfa8] sm:$0xff]
    %v2738 = vld [vmem:[#allocation7 + $0xfb0] sm:$0xff]
    %v2739 = vld [vmem:[#allocation7 + $0xfb8] sm:$0xff]
    %v2740 = vld [vmem:[#allocation7 + $0xfc0] sm:$0xff]
    %v2741 = vld [vmem:[#allocation7 + $0xfc8] sm:$0xff]
    %v2742 = vld [vmem:[#allocation7 + $0xfd0] sm:$0xff]
    %v2743 = vld [vmem:[#allocation7 + $0xfd8] sm:$0xff]
    %v2744 = vld [vmem:[#allocation7 + $0xfe0] sm:$0xff]
    %v2745 = vld [vmem:[#allocation7 + $0xfe8] sm:$0xff]
    %v2746 = vld [vmem:[#allocation7 + $0xff0] sm:$0xff]
    %v2747 = vld [vmem:[#allocation7 + $0xff8] sm:$0xff]
    %v2748 = vld [vmem:[#allocation8] sm:$0xf]
    %v2750 = vperm.slane %v2748, 0
    %v2751 = vperm.slane %v2748, 1
    %v2752 = vperm.slane %v2748, 2
    %v2753 = vperm.slane %v2748, 3
    %v3270 = vunpack.c.l.b16 %v2236
    %v3271 = vunpack.c.h.b16 %v2236
    %v3272 = vunpack.c.l.b16 %v2237
    %v3273 = vunpack.c.h.b16 %v2237
    %v3274 = vunpack.c.l.b16 %v2238
    %v3275 = vunpack.c.h.b16 %v2238
    %v3276 = vunpack.c.l.b16 %v2239
    %v3277 = vunpack.c.h.b16 %v2239
    %v3278 = vunpack.c.l.b16 %v2240
    %v3279 = vunpack.c.h.b16 %v2240
    %v3280 = vunpack.c.l.b16 %v2241
    %v3281 = vunpack.c.h.b16 %v2241
    %v3282 = vunpack.c.l.b16 %v2242
    %v3283 = vunpack.c.h.b16 %v2242
    %v3284 = vunpack.c.l.b16 %v2243
    %v3285 = vunpack.c.h.b16 %v2243
    %v3286 = vunpack.c.l.b16 %v2244
    %v3287 = vunpack.c.h.b16 %v2244
    %v3288 = vunpack.c.l.b16 %v2245
    %v3289 = vunpack.c.h.b16 %v2245
    %v3290 = vunpack.c.l.b16 %v2246
    %v3291 = vunpack.c.h.b16 %v2246
    %v3292 = vunpack.c.l.b16 %v2247
    %v3293 = vunpack.c.h.b16 %v2247
    %v3294 = vunpack.c.l.b16 %v2248
    %v3295 = vunpack.c.h.b16 %v2248
    %v3296 = vunpack.c.l.b16 %v2249
    %v3297 = vunpack.c.h.b16 %v2249
    %v3298 = vunpack.c.l.b16 %v2250
    %v3299 = vunpack.c.h.b16 %v2250
    %v3300 = vunpack.c.l.b16 %v2251
    %v3301 = vunpack.c.h.b16 %v2251
    %v3302 = vunpack.c.l.b16 %v2252
    %v3303 = vunpack.c.h.b16 %v2252
    %v3304 = vunpack.c.l.b16 %v2253
    %v3305 = vunpack.c.h.b16 %v2253
    %v3306 = vunpack.c.l.b16 %v2254
    %v3307 = vunpack.c.h.b16 %v2254
    %v3308 = vunpack.c.l.b16 %v2255
    %v3309 = vunpack.c.h.b16 %v2255
    %v3310 = vunpack.c.l.b16 %v2256
    %v3311 = vunpack.c.h.b16 %v2256
    %v3312 = vunpack.c.l.b16 %v2257
    %v3313 = vunpack.c.h.b16 %v2257
    %v3314 = vunpack.c.l.b16 %v2258
    %v3315 = vunpack.c.h.b16 %v2258
    %v3316 = vunpack.c.l.b16 %v2259
    %v3317 = vunpack.c.h.b16 %v2259
    %v3318 = vunpack.c.l.b16 %v2260
    %v3319 = vunpack.c.h.b16 %v2260
    %v3320 = vunpack.c.l.b16 %v2261
    %v3321 = vunpack.c.h.b16 %v2261
    %v3322 = vunpack.c.l.b16 %v2262
    %v3323 = vunpack.c.h.b16 %v2262
    %v3324 = vunpack.c.l.b16 %v2263
    %v3325 = vunpack.c.h.b16 %v2263
    %v3326 = vunpack.c.l.b16 %v2264
    %v3327 = vunpack.c.h.b16 %v2264
    %v3328 = vunpack.c.l.b16 %v2265
    %v3329 = vunpack.c.h.b16 %v2265
    %v3330 = vunpack.c.l.b16 %v2266
    %v3331 = vunpack.c.h.b16 %v2266
    %v3332 = vunpack.c.l.b16 %v2267
    %v3333 = vunpack.c.h.b16 %v2267
    %v3334 = vunpack.c.l.b16 %v2268
    %v3335 = vunpack.c.h.b16 %v2268
    %v3336 = vunpack.c.l.b16 %v2269
    %v3337 = vunpack.c.h.b16 %v2269
    %v3338 = vunpack.c.l.b16 %v2270
    %v3339 = vunpack.c.h.b16 %v2270
    %v3340 = vunpack.c.l.b16 %v2271
    %v3341 = vunpack.c.h.b16 %v2271
    %v3342 = vunpack.c.l.b16 %v2272
    %v3343 = vunpack.c.h.b16 %v2272
    %v3344 = vunpack.c.l.b16 %v2273
    %v3345 = vunpack.c.h.b16 %v2273
    %v3346 = vunpack.c.l.b16 %v2274
    %v3347 = vunpack.c.h.b16 %v2274
    %v3348 = vunpack.c.l.b16 %v2275
    %v3349 = vunpack.c.h.b16 %v2275
    %v3350 = vunpack.c.l.b16 %v2276
    %v3351 = vunpack.c.h.b16 %v2276
    %v3352 = vunpack.c.l.b16 %v2277
    %v3353 = vunpack.c.h.b16 %v2277
    %v3354 = vunpack.c.l.b16 %v2278
    %v3355 = vunpack.c.h.b16 %v2278
    %v3356 = vunpack.c.l.b16 %v2279
    %v3357 = vunpack.c.h.b16 %v2279
    %v3358 = vunpack.c.l.b16 %v2280
    %v3359 = vunpack.c.h.b16 %v2280
    %v3360 = vunpack.c.l.b16 %v2281
    %v3361 = vunpack.c.h.b16 %v2281
    %v3362 = vunpack.c.l.b16 %v2282
    %v3363 = vunpack.c.h.b16 %v2282
    %v3364 = vunpack.c.l.b16 %v2283
    %v3365 = vunpack.c.h.b16 %v2283
    %v3366 = vunpack.c.l.b16 %v2284
    %v3367 = vunpack.c.h.b16 %v2284
    %v3368 = vunpack.c.l.b16 %v2285
    %v3369 = vunpack.c.h.b16 %v2285
    %v3370 = vunpack.c.l.b16 %v2286
    %v3371 = vunpack.c.h.b16 %v2286
    %v3372 = vunpack.c.l.b16 %v2287
    %v3373 = vunpack.c.h.b16 %v2287
    %v3374 = vunpack.c.l.b16 %v2288
    %v3375 = vunpack.c.h.b16 %v2288
    %v3376 = vunpack.c.l.b16 %v2289
    %v3377 = vunpack.c.h.b16 %v2289
    %v3378 = vunpack.c.l.b16 %v2290
    %v3379 = vunpack.c.h.b16 %v2290
    %v3380 = vunpack.c.l.b16 %v2291
    %v3381 = vunpack.c.h.b16 %v2291
    %v3382 = vunpack.c.l.b16 %v2292
    %v3383 = vunpack.c.h.b16 %v2292
    %v3384 = vunpack.c.l.b16 %v2293
    %v3385 = vunpack.c.h.b16 %v2293
    %v3386 = vunpack.c.l.b16 %v2294
    %v3387 = vunpack.c.h.b16 %v2294
    %v3388 = vunpack.c.l.b16 %v2295
    %v3389 = vunpack.c.h.b16 %v2295
    %v3390 = vunpack.c.l.b16 %v2296
    %v3391 = vunpack.c.h.b16 %v2296
    %v3392 = vunpack.c.l.b16 %v2297
    %v3393 = vunpack.c.h.b16 %v2297
    %v3394 = vunpack.c.l.b16 %v2298
    %v3395 = vunpack.c.h.b16 %v2298
    %v3396 = vunpack.c.l.b16 %v2299
    %v3397 = vunpack.c.h.b16 %v2299
    %v3398 = vunpack.c.l.b16 %v2300
    %v3399 = vunpack.c.h.b16 %v2300
    %v3400 = vunpack.c.l.b16 %v2301
    %v3401 = vunpack.c.h.b16 %v2301
    %v3402 = vunpack.c.l.b16 %v2302
    %v3403 = vunpack.c.h.b16 %v2302
    %v3404 = vunpack.c.l.b16 %v2303
    %v3405 = vunpack.c.h.b16 %v2303
    %v3406 = vunpack.c.l.b16 %v2304
    %v3407 = vunpack.c.h.b16 %v2304
    %v3408 = vunpack.c.l.b16 %v2305
    %v3409 = vunpack.c.h.b16 %v2305
    %v3410 = vunpack.c.l.b16 %v2306
    %v3411 = vunpack.c.h.b16 %v2306
    %v3412 = vunpack.c.l.b16 %v2307
    %v3413 = vunpack.c.h.b16 %v2307
    %v3414 = vunpack.c.l.b16 %v2308
    %v3415 = vunpack.c.h.b16 %v2308
    %v3416 = vunpack.c.l.b16 %v2309
    %v3417 = vunpack.c.h.b16 %v2309
    %v3418 = vunpack.c.l.b16 %v2310
    %v3419 = vunpack.c.h.b16 %v2310
    %v3420 = vunpack.c.l.b16 %v2311
    %v3421 = vunpack.c.h.b16 %v2311
    %v3422 = vunpack.c.l.b16 %v2312
    %v3423 = vunpack.c.h.b16 %v2312
    %v3424 = vunpack.c.l.b16 %v2313
    %v3425 = vunpack.c.h.b16 %v2313
    %v3426 = vunpack.c.l.b16 %v2314
    %v3427 = vunpack.c.h.b16 %v2314
    %v3428 = vunpack.c.l.b16 %v2315
    %v3429 = vunpack.c.h.b16 %v2315
    %v3430 = vunpack.c.l.b16 %v2316
    %v3431 = vunpack.c.h.b16 %v2316
    %v3432 = vunpack.c.l.b16 %v2317
    %v3433 = vunpack.c.h.b16 %v2317
    %v3434 = vunpack.c.l.b16 %v2318
    %v3435 = vunpack.c.h.b16 %v2318
    %v3436 = vunpack.c.l.b16 %v2319
    %v3437 = vunpack.c.h.b16 %v2319
    %v3438 = vunpack.c.l.b16 %v2320
    %v3439 = vunpack.c.h.b16 %v2320
    %v3440 = vunpack.c.l.b16 %v2321
    %v3441 = vunpack.c.h.b16 %v2321
    %v3442 = vunpack.c.l.b16 %v2322
    %v3443 = vunpack.c.h.b16 %v2322
    %v3444 = vunpack.c.l.b16 %v2323
    %v3445 = vunpack.c.h.b16 %v2323
    %v3446 = vunpack.c.l.b16 %v2324
    %v3447 = vunpack.c.h.b16 %v2324
    %v3448 = vunpack.c.l.b16 %v2325
    %v3449 = vunpack.c.h.b16 %v2325
    %v3450 = vunpack.c.l.b16 %v2326
    %v3451 = vunpack.c.h.b16 %v2326
    %v3452 = vunpack.c.l.b16 %v2327
    %v3453 = vunpack.c.h.b16 %v2327
    %v3454 = vunpack.c.l.b16 %v2328
    %v3455 = vunpack.c.h.b16 %v2328
    %v3456 = vunpack.c.l.b16 %v2329
    %v3457 = vunpack.c.h.b16 %v2329
    %v3458 = vunpack.c.l.b16 %v2330
    %v3459 = vunpack.c.h.b16 %v2330
    %v3460 = vunpack.c.l.b16 %v2331
    %v3461 = vunpack.c.h.b16 %v2331
    %v3462 = vunpack.c.l.b16 %v2332
    %v3463 = vunpack.c.h.b16 %v2332
    %v3464 = vunpack.c.l.b16 %v2333
    %v3465 = vunpack.c.h.b16 %v2333
    %v3466 = vunpack.c.l.b16 %v2334
    %v3467 = vunpack.c.h.b16 %v2334
    %v3468 = vunpack.c.l.b16 %v2335
    %v3469 = vunpack.c.h.b16 %v2335
    %v3470 = vunpack.c.l.b16 %v2336
    %v3471 = vunpack.c.h.b16 %v2336
    %v3472 = vunpack.c.l.b16 %v2337
    %v3473 = vunpack.c.h.b16 %v2337
    %v3474 = vunpack.c.l.b16 %v2338
    %v3475 = vunpack.c.h.b16 %v2338
    %v3476 = vunpack.c.l.b16 %v2339
    %v3477 = vunpack.c.h.b16 %v2339
    %v3478 = vunpack.c.l.b16 %v2340
    %v3479 = vunpack.c.h.b16 %v2340
    %v3480 = vunpack.c.l.b16 %v2341
    %v3481 = vunpack.c.h.b16 %v2341
    %v3482 = vunpack.c.l.b16 %v2342
    %v3483 = vunpack.c.h.b16 %v2342
    %v3484 = vunpack.c.l.b16 %v2343
    %v3485 = vunpack.c.h.b16 %v2343
    %v3486 = vunpack.c.l.b16 %v2344
    %v3487 = vunpack.c.h.b16 %v2344
    %v3488 = vunpack.c.l.b16 %v2345
    %v3489 = vunpack.c.h.b16 %v2345
    %v3490 = vunpack.c.l.b16 %v2346
    %v3491 = vunpack.c.h.b16 %v2346
    %v3492 = vunpack.c.l.b16 %v2347
    %v3493 = vunpack.c.h.b16 %v2347
    %v3494 = vunpack.c.l.b16 %v2348
    %v3495 = vunpack.c.h.b16 %v2348
    %v3496 = vunpack.c.l.b16 %v2349
    %v3497 = vunpack.c.h.b16 %v2349
    %v3498 = vunpack.c.l.b16 %v2350
    %v3499 = vunpack.c.h.b16 %v2350
    %v3500 = vunpack.c.l.b16 %v2351
    %v3501 = vunpack.c.h.b16 %v2351
    %v3502 = vunpack.c.l.b16 %v2352
    %v3503 = vunpack.c.h.b16 %v2352
    %v3504 = vunpack.c.l.b16 %v2353
    %v3505 = vunpack.c.h.b16 %v2353
    %v3506 = vunpack.c.l.b16 %v2354
    %v3507 = vunpack.c.h.b16 %v2354
    %v3508 = vunpack.c.l.b16 %v2355
    %v3509 = vunpack.c.h.b16 %v2355
    %v3510 = vunpack.c.l.b16 %v2356
    %v3511 = vunpack.c.h.b16 %v2356
    %v3512 = vunpack.c.l.b16 %v2357
    %v3513 = vunpack.c.h.b16 %v2357
    %v3514 = vunpack.c.l.b16 %v2358
    %v3515 = vunpack.c.h.b16 %v2358
    %v3516 = vunpack.c.l.b16 %v2359
    %v3517 = vunpack.c.h.b16 %v2359
    %v3518 = vunpack.c.l.b16 %v2360
    %v3519 = vunpack.c.h.b16 %v2360
    %v3520 = vunpack.c.l.b16 %v2361
    %v3521 = vunpack.c.h.b16 %v2361
    %v3522 = vunpack.c.l.b16 %v2362
    %v3523 = vunpack.c.h.b16 %v2362
    %v3524 = vunpack.c.l.b16 %v2363
    %v3525 = vunpack.c.h.b16 %v2363
    %v3526 = vunpack.c.l.b16 %v2364
    %v3527 = vunpack.c.h.b16 %v2364
    %v3528 = vunpack.c.l.b16 %v2365
    %v3529 = vunpack.c.h.b16 %v2365
    %v3530 = vunpack.c.l.b16 %v2366
    %v3531 = vunpack.c.h.b16 %v2366
    %v3532 = vunpack.c.l.b16 %v2367
    %v3533 = vunpack.c.h.b16 %v2367
    %v3534 = vunpack.c.l.b16 %v2368
    %v3535 = vunpack.c.h.b16 %v2368
    %v3536 = vunpack.c.l.b16 %v2369
    %v3537 = vunpack.c.h.b16 %v2369
    %v3538 = vunpack.c.l.b16 %v2370
    %v3539 = vunpack.c.h.b16 %v2370
    %v3540 = vunpack.c.l.b16 %v2371
    %v3541 = vunpack.c.h.b16 %v2371
    %v3542 = vunpack.c.l.b16 %v2372
    %v3543 = vunpack.c.h.b16 %v2372
    %v3544 = vunpack.c.l.b16 %v2373
    %v3545 = vunpack.c.h.b16 %v2373
    %v3546 = vunpack.c.l.b16 %v2374
    %v3547 = vunpack.c.h.b16 %v2374
    %v3548 = vunpack.c.l.b16 %v2375
    %v3549 = vunpack.c.h.b16 %v2375
    %v3550 = vunpack.c.l.b16 %v2376
    %v3551 = vunpack.c.h.b16 %v2376
    %v3552 = vunpack.c.l.b16 %v2377
    %v3553 = vunpack.c.h.b16 %v2377
    %v3554 = vunpack.c.l.b16 %v2378
    %v3555 = vunpack.c.h.b16 %v2378
    %v3556 = vunpack.c.l.b16 %v2379
    %v3557 = vunpack.c.h.b16 %v2379
    %v3558 = vunpack.c.l.b16 %v2380
    %v3559 = vunpack.c.h.b16 %v2380
    %v3560 = vunpack.c.l.b16 %v2381
    %v3561 = vunpack.c.h.b16 %v2381
    %v3562 = vunpack.c.l.b16 %v2382
    %v3563 = vunpack.c.h.b16 %v2382
    %v3564 = vunpack.c.l.b16 %v2383
    %v3565 = vunpack.c.h.b16 %v2383
    %v3566 = vunpack.c.l.b16 %v2384
    %v3567 = vunpack.c.h.b16 %v2384
    %v3568 = vunpack.c.l.b16 %v2385
    %v3569 = vunpack.c.h.b16 %v2385
    %v3570 = vunpack.c.l.b16 %v2386
    %v3571 = vunpack.c.h.b16 %v2386
    %v3572 = vunpack.c.l.b16 %v2387
    %v3573 = vunpack.c.h.b16 %v2387
    %v3574 = vunpack.c.l.b16 %v2388
    %v3575 = vunpack.c.h.b16 %v2388
    %v3576 = vunpack.c.l.b16 %v2389
    %v3577 = vunpack.c.h.b16 %v2389
    %v3578 = vunpack.c.l.b16 %v2390
    %v3579 = vunpack.c.h.b16 %v2390
    %v3580 = vunpack.c.l.b16 %v2391
    %v3581 = vunpack.c.h.b16 %v2391
    %v3582 = vunpack.c.l.b16 %v2392
    %v3583 = vunpack.c.h.b16 %v2392
    %v3584 = vunpack.c.l.b16 %v2393
    %v3585 = vunpack.c.h.b16 %v2393
    %v3586 = vunpack.c.l.b16 %v2394
    %v3587 = vunpack.c.h.b16 %v2394
    %v3588 = vunpack.c.l.b16 %v2395
    %v3589 = vunpack.c.h.b16 %v2395
    %v3590 = vunpack.c.l.b16 %v2396
    %v3591 = vunpack.c.h.b16 %v2396
    %v3592 = vunpack.c.l.b16 %v2397
    %v3593 = vunpack.c.h.b16 %v2397
    %v3594 = vunpack.c.l.b16 %v2398
    %v3595 = vunpack.c.h.b16 %v2398
    %v3596 = vunpack.c.l.b16 %v2399
    %v3597 = vunpack.c.h.b16 %v2399
    %v3598 = vunpack.c.l.b16 %v2400
    %v3599 = vunpack.c.h.b16 %v2400
    %v3600 = vunpack.c.l.b16 %v2401
    %v3601 = vunpack.c.h.b16 %v2401
    %v3602 = vunpack.c.l.b16 %v2402
    %v3603 = vunpack.c.h.b16 %v2402
    %v3604 = vunpack.c.l.b16 %v2403
    %v3605 = vunpack.c.h.b16 %v2403
    %v3606 = vunpack.c.l.b16 %v2404
    %v3607 = vunpack.c.h.b16 %v2404
    %v3608 = vunpack.c.l.b16 %v2405
    %v3609 = vunpack.c.h.b16 %v2405
    %v3610 = vunpack.c.l.b16 %v2406
    %v3611 = vunpack.c.h.b16 %v2406
    %v3612 = vunpack.c.l.b16 %v2407
    %v3613 = vunpack.c.h.b16 %v2407
    %v3614 = vunpack.c.l.b16 %v2408
    %v3615 = vunpack.c.h.b16 %v2408
    %v3616 = vunpack.c.l.b16 %v2409
    %v3617 = vunpack.c.h.b16 %v2409
    %v3618 = vunpack.c.l.b16 %v2410
    %v3619 = vunpack.c.h.b16 %v2410
    %v3620 = vunpack.c.l.b16 %v2411
    %v3621 = vunpack.c.h.b16 %v2411
    %v3622 = vunpack.c.l.b16 %v2412
    %v3623 = vunpack.c.h.b16 %v2412
    %v3624 = vunpack.c.l.b16 %v2413
    %v3625 = vunpack.c.h.b16 %v2413
    %v3626 = vunpack.c.l.b16 %v2414
    %v3627 = vunpack.c.h.b16 %v2414
    %v3628 = vunpack.c.l.b16 %v2415
    %v3629 = vunpack.c.h.b16 %v2415
    %v3630 = vunpack.c.l.b16 %v2416
    %v3631 = vunpack.c.h.b16 %v2416
    %v3632 = vunpack.c.l.b16 %v2417
    %v3633 = vunpack.c.h.b16 %v2417
    %v3634 = vunpack.c.l.b16 %v2418
    %v3635 = vunpack.c.h.b16 %v2418
    %v3636 = vunpack.c.l.b16 %v2419
    %v3637 = vunpack.c.h.b16 %v2419
    %v3638 = vunpack.c.l.b16 %v2420
    %v3639 = vunpack.c.h.b16 %v2420
    %v3640 = vunpack.c.l.b16 %v2421
    %v3641 = vunpack.c.h.b16 %v2421
    %v3642 = vunpack.c.l.b16 %v2422
    %v3643 = vunpack.c.h.b16 %v2422
    %v3644 = vunpack.c.l.b16 %v2423
    %v3645 = vunpack.c.h.b16 %v2423
    %v3646 = vunpack.c.l.b16 %v2424
    %v3647 = vunpack.c.h.b16 %v2424
    %v3648 = vunpack.c.l.b16 %v2425
    %v3649 = vunpack.c.h.b16 %v2425
    %v3650 = vunpack.c.l.b16 %v2426
    %v3651 = vunpack.c.h.b16 %v2426
    %v3652 = vunpack.c.l.b16 %v2427
    %v3653 = vunpack.c.h.b16 %v2427
    %v3654 = vunpack.c.l.b16 %v2428
    %v3655 = vunpack.c.h.b16 %v2428
    %v3656 = vunpack.c.l.b16 %v2429
    %v3657 = vunpack.c.h.b16 %v2429
    %v3658 = vunpack.c.l.b16 %v2430
    %v3659 = vunpack.c.h.b16 %v2430
    %v3660 = vunpack.c.l.b16 %v2431
    %v3661 = vunpack.c.h.b16 %v2431
    %v3662 = vunpack.c.l.b16 %v2432
    %v3663 = vunpack.c.h.b16 %v2432
    %v3664 = vunpack.c.l.b16 %v2433
    %v3665 = vunpack.c.h.b16 %v2433
    %v3666 = vunpack.c.l.b16 %v2434
    %v3667 = vunpack.c.h.b16 %v2434
    %v3668 = vunpack.c.l.b16 %v2435
    %v3669 = vunpack.c.h.b16 %v2435
    %v3670 = vunpack.c.l.b16 %v2436
    %v3671 = vunpack.c.h.b16 %v2436
    %v3672 = vunpack.c.l.b16 %v2437
    %v3673 = vunpack.c.h.b16 %v2437
    %v3674 = vunpack.c.l.b16 %v2438
    %v3675 = vunpack.c.h.b16 %v2438
    %v3676 = vunpack.c.l.b16 %v2439
    %v3677 = vunpack.c.h.b16 %v2439
    %v3678 = vunpack.c.l.b16 %v2440
    %v3679 = vunpack.c.h.b16 %v2440
    %v3680 = vunpack.c.l.b16 %v2441
    %v3681 = vunpack.c.h.b16 %v2441
    %v3682 = vunpack.c.l.b16 %v2442
    %v3683 = vunpack.c.h.b16 %v2442
    %v3684 = vunpack.c.l.b16 %v2443
    %v3685 = vunpack.c.h.b16 %v2443
    %v3686 = vunpack.c.l.b16 %v2444
    %v3687 = vunpack.c.h.b16 %v2444
    %v3688 = vunpack.c.l.b16 %v2445
    %v3689 = vunpack.c.h.b16 %v2445
    %v3690 = vunpack.c.l.b16 %v2446
    %v3691 = vunpack.c.h.b16 %v2446
    %v3692 = vunpack.c.l.b16 %v2447
    %v3693 = vunpack.c.h.b16 %v2447
    %v3694 = vunpack.c.l.b16 %v2448
    %v3695 = vunpack.c.h.b16 %v2448
    %v3696 = vunpack.c.l.b16 %v2449
    %v3697 = vunpack.c.h.b16 %v2449
    %v3698 = vunpack.c.l.b16 %v2450
    %v3699 = vunpack.c.h.b16 %v2450
    %v3700 = vunpack.c.l.b16 %v2451
    %v3701 = vunpack.c.h.b16 %v2451
    %v3702 = vunpack.c.l.b16 %v2452
    %v3703 = vunpack.c.h.b16 %v2452
    %v3704 = vunpack.c.l.b16 %v2453
    %v3705 = vunpack.c.h.b16 %v2453
    %v3706 = vunpack.c.l.b16 %v2454
    %v3707 = vunpack.c.h.b16 %v2454
    %v3708 = vunpack.c.l.b16 %v2455
    %v3709 = vunpack.c.h.b16 %v2455
    %v3710 = vunpack.c.l.b16 %v2456
    %v3711 = vunpack.c.h.b16 %v2456
    %v3712 = vunpack.c.l.b16 %v2457
    %v3713 = vunpack.c.h.b16 %v2457
    %v3714 = vunpack.c.l.b16 %v2458
    %v3715 = vunpack.c.h.b16 %v2458
    %v3716 = vunpack.c.l.b16 %v2459
    %v3717 = vunpack.c.h.b16 %v2459
    %v3718 = vunpack.c.l.b16 %v2460
    %v3719 = vunpack.c.h.b16 %v2460
    %v3720 = vunpack.c.l.b16 %v2461
    %v3721 = vunpack.c.h.b16 %v2461
    %v3722 = vunpack.c.l.b16 %v2462
    %v3723 = vunpack.c.h.b16 %v2462
    %v3724 = vunpack.c.l.b16 %v2463
    %v3725 = vunpack.c.h.b16 %v2463
    %v3726 = vunpack.c.l.b16 %v2464
    %v3727 = vunpack.c.h.b16 %v2464
    %v3728 = vunpack.c.l.b16 %v2465
    %v3729 = vunpack.c.h.b16 %v2465
    %v3730 = vunpack.c.l.b16 %v2466
    %v3731 = vunpack.c.h.b16 %v2466
    %v3732 = vunpack.c.l.b16 %v2467
    %v3733 = vunpack.c.h.b16 %v2467
    %v3734 = vunpack.c.l.b16 %v2468
    %v3735 = vunpack.c.h.b16 %v2468
    %v3736 = vunpack.c.l.b16 %v2469
    %v3737 = vunpack.c.h.b16 %v2469
    %v3738 = vunpack.c.l.b16 %v2470
    %v3739 = vunpack.c.h.b16 %v2470
    %v3740 = vunpack.c.l.b16 %v2471
    %v3741 = vunpack.c.h.b16 %v2471
    %v3742 = vunpack.c.l.b16 %v2472
    %v3743 = vunpack.c.h.b16 %v2472
    %v3744 = vunpack.c.l.b16 %v2473
    %v3745 = vunpack.c.h.b16 %v2473
    %v3746 = vunpack.c.l.b16 %v2474
    %v3747 = vunpack.c.h.b16 %v2474
    %v3748 = vunpack.c.l.b16 %v2475
    %v3749 = vunpack.c.h.b16 %v2475
    %v3750 = vunpack.c.l.b16 %v2476
    %v3751 = vunpack.c.h.b16 %v2476
    %v3752 = vunpack.c.l.b16 %v2477
    %v3753 = vunpack.c.h.b16 %v2477
    %v3754 = vunpack.c.l.b16 %v2478
    %v3755 = vunpack.c.h.b16 %v2478
    %v3756 = vunpack.c.l.b16 %v2479
    %v3757 = vunpack.c.h.b16 %v2479
    %v3758 = vunpack.c.l.b16 %v2480
    %v3759 = vunpack.c.h.b16 %v2480
    %v3760 = vunpack.c.l.b16 %v2481
    %v3761 = vunpack.c.h.b16 %v2481
    %v3762 = vunpack.c.l.b16 %v2482
    %v3763 = vunpack.c.h.b16 %v2482
    %v3764 = vunpack.c.l.b16 %v2483
    %v3765 = vunpack.c.h.b16 %v2483
    %v3766 = vunpack.c.l.b16 %v2484
    %v3767 = vunpack.c.h.b16 %v2484
    %v3768 = vunpack.c.l.b16 %v2485
    %v3769 = vunpack.c.h.b16 %v2485
    %v3770 = vunpack.c.l.b16 %v2486
    %v3771 = vunpack.c.h.b16 %v2486
    %v3772 = vunpack.c.l.b16 %v2487
    %v3773 = vunpack.c.h.b16 %v2487
    %v3774 = vunpack.c.l.b16 %v2488
    %v3775 = vunpack.c.h.b16 %v2488
    %v3776 = vunpack.c.l.b16 %v2489
    %v3777 = vunpack.c.h.b16 %v2489
    %v3778 = vunpack.c.l.b16 %v2490
    %v3779 = vunpack.c.h.b16 %v2490
    %v3780 = vunpack.c.l.b16 %v2491
    %v3781 = vunpack.c.h.b16 %v2491
    %v3782 = vunpack.c.l.b16 %v2492
    %v3783 = vunpack.c.h.b16 %v2492
    %v3784 = vunpack.c.l.b16 %v2493
    %v3785 = vunpack.c.h.b16 %v2493
    %v3786 = vunpack.c.l.b16 %v2494
    %v3787 = vunpack.c.h.b16 %v2494
    %v3788 = vunpack.c.l.b16 %v2495
    %v3789 = vunpack.c.h.b16 %v2495
    %v3790 = vunpack.c.l.b16 %v2496
    %v3791 = vunpack.c.h.b16 %v2496
    %v3792 = vunpack.c.l.b16 %v2497
    %v3793 = vunpack.c.h.b16 %v2497
    %v3794 = vunpack.c.l.b16 %v2498
    %v3795 = vunpack.c.h.b16 %v2498
    %v3796 = vunpack.c.l.b16 %v2499
    %v3797 = vunpack.c.h.b16 %v2499
    %v3798 = vunpack.c.l.b16 %v2500
    %v3799 = vunpack.c.h.b16 %v2500
    %v3800 = vunpack.c.l.b16 %v2501
    %v3801 = vunpack.c.h.b16 %v2501
    %v3802 = vunpack.c.l.b16 %v2502
    %v3803 = vunpack.c.h.b16 %v2502
    %v3804 = vunpack.c.l.b16 %v2503
    %v3805 = vunpack.c.h.b16 %v2503
    %v3806 = vunpack.c.l.b16 %v2504
    %v3807 = vunpack.c.h.b16 %v2504
    %v3808 = vunpack.c.l.b16 %v2505
    %v3809 = vunpack.c.h.b16 %v2505
    %v3810 = vunpack.c.l.b16 %v2506
    %v3811 = vunpack.c.h.b16 %v2506
    %v3812 = vunpack.c.l.b16 %v2507
    %v3813 = vunpack.c.h.b16 %v2507
    %v3814 = vunpack.c.l.b16 %v2508
    %v3815 = vunpack.c.h.b16 %v2508
    %v3816 = vunpack.c.l.b16 %v2509
    %v3817 = vunpack.c.h.b16 %v2509
    %v3818 = vunpack.c.l.b16 %v2510
    %v3819 = vunpack.c.h.b16 %v2510
    %v3820 = vunpack.c.l.b16 %v2511
    %v3821 = vunpack.c.h.b16 %v2511
    %v3822 = vunpack.c.l.b16 %v2512
    %v3823 = vunpack.c.h.b16 %v2512
    %v3824 = vunpack.c.l.b16 %v2513
    %v3825 = vunpack.c.h.b16 %v2513
    %v3826 = vunpack.c.l.b16 %v2514
    %v3827 = vunpack.c.h.b16 %v2514
    %v3828 = vunpack.c.l.b16 %v2515
    %v3829 = vunpack.c.h.b16 %v2515
    %v3830 = vunpack.c.l.b16 %v2516
    %v3831 = vunpack.c.h.b16 %v2516
    %v3832 = vunpack.c.l.b16 %v2517
    %v3833 = vunpack.c.h.b16 %v2517
    %v3834 = vunpack.c.l.b16 %v2518
    %v3835 = vunpack.c.h.b16 %v2518
    %v3836 = vunpack.c.l.b16 %v2519
    %v3837 = vunpack.c.h.b16 %v2519
    %v3838 = vunpack.c.l.b16 %v2520
    %v3839 = vunpack.c.h.b16 %v2520
    %v3840 = vunpack.c.l.b16 %v2521
    %v3841 = vunpack.c.h.b16 %v2521
    %v3842 = vunpack.c.l.b16 %v2522
    %v3843 = vunpack.c.h.b16 %v2522
    %v3844 = vunpack.c.l.b16 %v2523
    %v3845 = vunpack.c.h.b16 %v2523
    %v3846 = vunpack.c.l.b16 %v2524
    %v3847 = vunpack.c.h.b16 %v2524
    %v3848 = vunpack.c.l.b16 %v2525
    %v3849 = vunpack.c.h.b16 %v2525
    %v3850 = vunpack.c.l.b16 %v2526
    %v3851 = vunpack.c.h.b16 %v2526
    %v3852 = vunpack.c.l.b16 %v2527
    %v3853 = vunpack.c.h.b16 %v2527
    %v3854 = vunpack.c.l.b16 %v2528
    %v3855 = vunpack.c.h.b16 %v2528
    %v3856 = vunpack.c.l.b16 %v2529
    %v3857 = vunpack.c.h.b16 %v2529
    %v3858 = vunpack.c.l.b16 %v2530
    %v3859 = vunpack.c.h.b16 %v2530
    %v3860 = vunpack.c.l.b16 %v2531
    %v3861 = vunpack.c.h.b16 %v2531
    %v3862 = vunpack.c.l.b16 %v2532
    %v3863 = vunpack.c.h.b16 %v2532
    %v3864 = vunpack.c.l.b16 %v2533
    %v3865 = vunpack.c.h.b16 %v2533
    %v3866 = vunpack.c.l.b16 %v2534
    %v3867 = vunpack.c.h.b16 %v2534
    %v3868 = vunpack.c.l.b16 %v2535
    %v3869 = vunpack.c.h.b16 %v2535
    %v3870 = vunpack.c.l.b16 %v2536
    %v3871 = vunpack.c.h.b16 %v2536
    %v3872 = vunpack.c.l.b16 %v2537
    %v3873 = vunpack.c.h.b16 %v2537
    %v3874 = vunpack.c.l.b16 %v2538
    %v3875 = vunpack.c.h.b16 %v2538
    %v3876 = vunpack.c.l.b16 %v2539
    %v3877 = vunpack.c.h.b16 %v2539
    %v3878 = vunpack.c.l.b16 %v2540
    %v3879 = vunpack.c.h.b16 %v2540
    %v3880 = vunpack.c.l.b16 %v2541
    %v3881 = vunpack.c.h.b16 %v2541
    %v3882 = vunpack.c.l.b16 %v2542
    %v3883 = vunpack.c.h.b16 %v2542
    %v3884 = vunpack.c.l.b16 %v2543
    %v3885 = vunpack.c.h.b16 %v2543
    %v3886 = vunpack.c.l.b16 %v2544
    %v3887 = vunpack.c.h.b16 %v2544
    %v3888 = vunpack.c.l.b16 %v2545
    %v3889 = vunpack.c.h.b16 %v2545
    %v3890 = vunpack.c.l.b16 %v2546
    %v3891 = vunpack.c.h.b16 %v2546
    %v3892 = vunpack.c.l.b16 %v2547
    %v3893 = vunpack.c.h.b16 %v2547
    %v3894 = vunpack.c.l.b16 %v2548
    %v3895 = vunpack.c.h.b16 %v2548
    %v3896 = vunpack.c.l.b16 %v2549
    %v3897 = vunpack.c.h.b16 %v2549
    %v3898 = vunpack.c.l.b16 %v2550
    %v3899 = vunpack.c.h.b16 %v2550
    %v3900 = vunpack.c.l.b16 %v2551
    %v3901 = vunpack.c.h.b16 %v2551
    %v3902 = vunpack.c.l.b16 %v2552
    %v3903 = vunpack.c.h.b16 %v2552
    %v3904 = vunpack.c.l.b16 %v2553
    %v3905 = vunpack.c.h.b16 %v2553
    %v3906 = vunpack.c.l.b16 %v2554
    %v3907 = vunpack.c.h.b16 %v2554
    %v3908 = vunpack.c.l.b16 %v2555
    %v3909 = vunpack.c.h.b16 %v2555
    %v3910 = vunpack.c.l.b16 %v2556
    %v3911 = vunpack.c.h.b16 %v2556
    %v3912 = vunpack.c.l.b16 %v2557
    %v3913 = vunpack.c.h.b16 %v2557
    %v3914 = vunpack.c.l.b16 %v2558
    %v3915 = vunpack.c.h.b16 %v2558
    %v3916 = vunpack.c.l.b16 %v2559
    %v3917 = vunpack.c.h.b16 %v2559
    %v3918 = vunpack.c.l.b16 %v2560
    %v3919 = vunpack.c.h.b16 %v2560
    %v3920 = vunpack.c.l.b16 %v2561
    %v3921 = vunpack.c.h.b16 %v2561
    %v3922 = vunpack.c.l.b16 %v2562
    %v3923 = vunpack.c.h.b16 %v2562
    %v3924 = vunpack.c.l.b16 %v2563
    %v3925 = vunpack.c.h.b16 %v2563
    %v3926 = vunpack.c.l.b16 %v2564
    %v3927 = vunpack.c.h.b16 %v2564
    %v3928 = vunpack.c.l.b16 %v2565
    %v3929 = vunpack.c.h.b16 %v2565
    %v3930 = vunpack.c.l.b16 %v2566
    %v3931 = vunpack.c.h.b16 %v2566
    %v3932 = vunpack.c.l.b16 %v2567
    %v3933 = vunpack.c.h.b16 %v2567
    %v3934 = vunpack.c.l.b16 %v2568
    %v3935 = vunpack.c.h.b16 %v2568
    %v3936 = vunpack.c.l.b16 %v2569
    %v3937 = vunpack.c.h.b16 %v2569
    %v3938 = vunpack.c.l.b16 %v2570
    %v3939 = vunpack.c.h.b16 %v2570
    %v3940 = vunpack.c.l.b16 %v2571
    %v3941 = vunpack.c.h.b16 %v2571
    %v3942 = vunpack.c.l.b16 %v2572
    %v3943 = vunpack.c.h.b16 %v2572
    %v3944 = vunpack.c.l.b16 %v2573
    %v3945 = vunpack.c.h.b16 %v2573
    %v3946 = vunpack.c.l.b16 %v2574
    %v3947 = vunpack.c.h.b16 %v2574
    %v3948 = vunpack.c.l.b16 %v2575
    %v3949 = vunpack.c.h.b16 %v2575
    %v3950 = vunpack.c.l.b16 %v2576
    %v3951 = vunpack.c.h.b16 %v2576
    %v3952 = vunpack.c.l.b16 %v2577
    %v3953 = vunpack.c.h.b16 %v2577
    %v3954 = vunpack.c.l.b16 %v2578
    %v3955 = vunpack.c.h.b16 %v2578
    %v3956 = vunpack.c.l.b16 %v2579
    %v3957 = vunpack.c.h.b16 %v2579
    %v3958 = vunpack.c.l.b16 %v2580
    %v3959 = vunpack.c.h.b16 %v2580
    %v3960 = vunpack.c.l.b16 %v2581
    %v3961 = vunpack.c.h.b16 %v2581
    %v3962 = vunpack.c.l.b16 %v2582
    %v3963 = vunpack.c.h.b16 %v2582
    %v3964 = vunpack.c.l.b16 %v2583
    %v3965 = vunpack.c.h.b16 %v2583
    %v3966 = vunpack.c.l.b16 %v2584
    %v3967 = vunpack.c.h.b16 %v2584
    %v3968 = vunpack.c.l.b16 %v2585
    %v3969 = vunpack.c.h.b16 %v2585
    %v3970 = vunpack.c.l.b16 %v2586
    %v3971 = vunpack.c.h.b16 %v2586
    %v3972 = vunpack.c.l.b16 %v2587
    %v3973 = vunpack.c.h.b16 %v2587
    %v3974 = vunpack.c.l.b16 %v2588
    %v3975 = vunpack.c.h.b16 %v2588
    %v3976 = vunpack.c.l.b16 %v2589
    %v3977 = vunpack.c.h.b16 %v2589
    %v3978 = vunpack.c.l.b16 %v2590
    %v3979 = vunpack.c.h.b16 %v2590
    %v3980 = vunpack.c.l.b16 %v2591
    %v3981 = vunpack.c.h.b16 %v2591
    %v3982 = vunpack.c.l.b16 %v2592
    %v3983 = vunpack.c.h.b16 %v2592
    %v3984 = vunpack.c.l.b16 %v2593
    %v3985 = vunpack.c.h.b16 %v2593
    %v3986 = vunpack.c.l.b16 %v2594
    %v3987 = vunpack.c.h.b16 %v2594
    %v3988 = vunpack.c.l.b16 %v2595
    %v3989 = vunpack.c.h.b16 %v2595
    %v3990 = vunpack.c.l.b16 %v2596
    %v3991 = vunpack.c.h.b16 %v2596
    %v3992 = vunpack.c.l.b16 %v2597
    %v3993 = vunpack.c.h.b16 %v2597
    %v3994 = vunpack.c.l.b16 %v2598
    %v3995 = vunpack.c.h.b16 %v2598
    %v3996 = vunpack.c.l.b16 %v2599
    %v3997 = vunpack.c.h.b16 %v2599
    %v3998 = vunpack.c.l.b16 %v2600
    %v3999 = vunpack.c.h.b16 %v2600
    %v4000 = vunpack.c.l.b16 %v2601
    %v4001 = vunpack.c.h.b16 %v2601
    %v4002 = vunpack.c.l.b16 %v2602
    %v4003 = vunpack.c.h.b16 %v2602
    %v4004 = vunpack.c.l.b16 %v2603
    %v4005 = vunpack.c.h.b16 %v2603
    %v4006 = vunpack.c.l.b16 %v2604
    %v4007 = vunpack.c.h.b16 %v2604
    %v4008 = vunpack.c.l.b16 %v2605
    %v4009 = vunpack.c.h.b16 %v2605
    %v4010 = vunpack.c.l.b16 %v2606
    %v4011 = vunpack.c.h.b16 %v2606
    %v4012 = vunpack.c.l.b16 %v2607
    %v4013 = vunpack.c.h.b16 %v2607
    %v4014 = vunpack.c.l.b16 %v2608
    %v4015 = vunpack.c.h.b16 %v2608
    %v4016 = vunpack.c.l.b16 %v2609
    %v4017 = vunpack.c.h.b16 %v2609
    %v4018 = vunpack.c.l.b16 %v2610
    %v4019 = vunpack.c.h.b16 %v2610
    %v4020 = vunpack.c.l.b16 %v2611
    %v4021 = vunpack.c.h.b16 %v2611
    %v4022 = vunpack.c.l.b16 %v2612
    %v4023 = vunpack.c.h.b16 %v2612
    %v4024 = vunpack.c.l.b16 %v2613
    %v4025 = vunpack.c.h.b16 %v2613
    %v4026 = vunpack.c.l.b16 %v2614
    %v4027 = vunpack.c.h.b16 %v2614
    %v4028 = vunpack.c.l.b16 %v2615
    %v4029 = vunpack.c.h.b16 %v2615
    %v4030 = vunpack.c.l.b16 %v2616
    %v4031 = vunpack.c.h.b16 %v2616
    %v4032 = vunpack.c.l.b16 %v2617
    %v4033 = vunpack.c.h.b16 %v2617
    %v4034 = vunpack.c.l.b16 %v2618
    %v4035 = vunpack.c.h.b16 %v2618
    %v4036 = vunpack.c.l.b16 %v2619
    %v4037 = vunpack.c.h.b16 %v2619
    %v4038 = vunpack.c.l.b16 %v2620
    %v4039 = vunpack.c.h.b16 %v2620
    %v4040 = vunpack.c.l.b16 %v2621
    %v4041 = vunpack.c.h.b16 %v2621
    %v4042 = vunpack.c.l.b16 %v2622
    %v4043 = vunpack.c.h.b16 %v2622
    %v4044 = vunpack.c.l.b16 %v2623
    %v4045 = vunpack.c.h.b16 %v2623
    %v4046 = vunpack.c.l.b16 %v2624
    %v4047 = vunpack.c.h.b16 %v2624
    %v4048 = vunpack.c.l.b16 %v2625
    %v4049 = vunpack.c.h.b16 %v2625
    %v4050 = vunpack.c.l.b16 %v2626
    %v4051 = vunpack.c.h.b16 %v2626
    %v4052 = vunpack.c.l.b16 %v2627
    %v4053 = vunpack.c.h.b16 %v2627
    %v4054 = vunpack.c.l.b16 %v2628
    %v4055 = vunpack.c.h.b16 %v2628
    %v4056 = vunpack.c.l.b16 %v2629
    %v4057 = vunpack.c.h.b16 %v2629
    %v4058 = vunpack.c.l.b16 %v2630
    %v4059 = vunpack.c.h.b16 %v2630
    %v4060 = vunpack.c.l.b16 %v2631
    %v4061 = vunpack.c.h.b16 %v2631
    %v4062 = vunpack.c.l.b16 %v2632
    %v4063 = vunpack.c.h.b16 %v2632
    %v4064 = vunpack.c.l.b16 %v2633
    %v4065 = vunpack.c.h.b16 %v2633
    %v4066 = vunpack.c.l.b16 %v2634
    %v4067 = vunpack.c.h.b16 %v2634
    %v4068 = vunpack.c.l.b16 %v2635
    %v4069 = vunpack.c.h.b16 %v2635
    %v4070 = vunpack.c.l.b16 %v2636
    %v4071 = vunpack.c.h.b16 %v2636
    %v4072 = vunpack.c.l.b16 %v2637
    %v4073 = vunpack.c.h.b16 %v2637
    %v4074 = vunpack.c.l.b16 %v2638
    %v4075 = vunpack.c.h.b16 %v2638
    %v4076 = vunpack.c.l.b16 %v2639
    %v4077 = vunpack.c.h.b16 %v2639
    %v4078 = vunpack.c.l.b16 %v2640
    %v4079 = vunpack.c.h.b16 %v2640
    %v4080 = vunpack.c.l.b16 %v2641
    %v4081 = vunpack.c.h.b16 %v2641
    %v4082 = vunpack.c.l.b16 %v2642
    %v4083 = vunpack.c.h.b16 %v2642
    %v4084 = vunpack.c.l.b16 %v2643
    %v4085 = vunpack.c.h.b16 %v2643
    %v4086 = vunpack.c.l.b16 %v2644
    %v4087 = vunpack.c.h.b16 %v2644
    %v4088 = vunpack.c.l.b16 %v2645
    %v4089 = vunpack.c.h.b16 %v2645
    %v4090 = vunpack.c.l.b16 %v2646
    %v4091 = vunpack.c.h.b16 %v2646
    %v4092 = vunpack.c.l.b16 %v2647
    %v4093 = vunpack.c.h.b16 %v2647
    %v4094 = vunpack.c.l.b16 %v2648
    %v4095 = vunpack.c.h.b16 %v2648
    %v4096 = vunpack.c.l.b16 %v2649
    %v4097 = vunpack.c.h.b16 %v2649
    %v4098 = vunpack.c.l.b16 %v2650
    %v4099 = vunpack.c.h.b16 %v2650
    %v4100 = vunpack.c.l.b16 %v2651
    %v4101 = vunpack.c.h.b16 %v2651
    %v4102 = vunpack.c.l.b16 %v2652
    %v4103 = vunpack.c.h.b16 %v2652
    %v4104 = vunpack.c.l.b16 %v2653
    %v4105 = vunpack.c.h.b16 %v2653
    %v4106 = vunpack.c.l.b16 %v2654
    %v4107 = vunpack.c.h.b16 %v2654
    %v4108 = vunpack.c.l.b16 %v2655
    %v4109 = vunpack.c.h.b16 %v2655
    %v4110 = vunpack.c.l.b16 %v2656
    %v4111 = vunpack.c.h.b16 %v2656
    %v4112 = vunpack.c.l.b16 %v2657
    %v4113 = vunpack.c.h.b16 %v2657
    %v4114 = vunpack.c.l.b16 %v2658
    %v4115 = vunpack.c.h.b16 %v2658
    %v4116 = vunpack.c.l.b16 %v2659
    %v4117 = vunpack.c.h.b16 %v2659
    %v4118 = vunpack.c.l.b16 %v2660
    %v4119 = vunpack.c.h.b16 %v2660
    %v4120 = vunpack.c.l.b16 %v2661
    %v4121 = vunpack.c.h.b16 %v2661
    %v4122 = vunpack.c.l.b16 %v2662
    %v4123 = vunpack.c.h.b16 %v2662
    %v4124 = vunpack.c.l.b16 %v2663
    %v4125 = vunpack.c.h.b16 %v2663
    %v4126 = vunpack.c.l.b16 %v2664
    %v4127 = vunpack.c.h.b16 %v2664
    %v4128 = vunpack.c.l.b16 %v2665
    %v4129 = vunpack.c.h.b16 %v2665
    %v4130 = vunpack.c.l.b16 %v2666
    %v4131 = vunpack.c.h.b16 %v2666
    %v4132 = vunpack.c.l.b16 %v2667
    %v4133 = vunpack.c.h.b16 %v2667
    %v4134 = vunpack.c.l.b16 %v2668
    %v4135 = vunpack.c.h.b16 %v2668
    %v4136 = vunpack.c.l.b16 %v2669
    %v4137 = vunpack.c.h.b16 %v2669
    %v4138 = vunpack.c.l.b16 %v2670
    %v4139 = vunpack.c.h.b16 %v2670
    %v4140 = vunpack.c.l.b16 %v2671
    %v4141 = vunpack.c.h.b16 %v2671
    %v4142 = vunpack.c.l.b16 %v2672
    %v4143 = vunpack.c.h.b16 %v2672
    %v4144 = vunpack.c.l.b16 %v2673
    %v4145 = vunpack.c.h.b16 %v2673
    %v4146 = vunpack.c.l.b16 %v2674
    %v4147 = vunpack.c.h.b16 %v2674
    %v4148 = vunpack.c.l.b16 %v2675
    %v4149 = vunpack.c.h.b16 %v2675
    %v4150 = vunpack.c.l.b16 %v2676
    %v4151 = vunpack.c.h.b16 %v2676
    %v4152 = vunpack.c.l.b16 %v2677
    %v4153 = vunpack.c.h.b16 %v2677
    %v4154 = vunpack.c.l.b16 %v2678
    %v4155 = vunpack.c.h.b16 %v2678
    %v4156 = vunpack.c.l.b16 %v2679
    %v4157 = vunpack.c.h.b16 %v2679
    %v4158 = vunpack.c.l.b16 %v2680
    %v4159 = vunpack.c.h.b16 %v2680
    %v4160 = vunpack.c.l.b16 %v2681
    %v4161 = vunpack.c.h.b16 %v2681
    %v4162 = vunpack.c.l.b16 %v2682
    %v4163 = vunpack.c.h.b16 %v2682
    %v4164 = vunpack.c.l.b16 %v2683
    %v4165 = vunpack.c.h.b16 %v2683
    %v4166 = vunpack.c.l.b16 %v2684
    %v4167 = vunpack.c.h.b16 %v2684
    %v4168 = vunpack.c.l.b16 %v2685
    %v4169 = vunpack.c.h.b16 %v2685
    %v4170 = vunpack.c.l.b16 %v2686
    %v4171 = vunpack.c.h.b16 %v2686
    %v4172 = vunpack.c.l.b16 %v2687
    %v4173 = vunpack.c.h.b16 %v2687
    %v4174 = vunpack.c.l.b16 %v2688
    %v4175 = vunpack.c.h.b16 %v2688
    %v4176 = vunpack.c.l.b16 %v2689
    %v4177 = vunpack.c.h.b16 %v2689
    %v4178 = vunpack.c.l.b16 %v2690
    %v4179 = vunpack.c.h.b16 %v2690
    %v4180 = vunpack.c.l.b16 %v2691
    %v4181 = vunpack.c.h.b16 %v2691
    %v4182 = vunpack.c.l.b16 %v2692
    %v4183 = vunpack.c.h.b16 %v2692
    %v4184 = vunpack.c.l.b16 %v2693
    %v4185 = vunpack.c.h.b16 %v2693
    %v4186 = vunpack.c.l.b16 %v2694
    %v4187 = vunpack.c.h.b16 %v2694
    %v4188 = vunpack.c.l.b16 %v2695
    %v4189 = vunpack.c.h.b16 %v2695
    %v4190 = vunpack.c.l.b16 %v2696
    %v4191 = vunpack.c.h.b16 %v2696
    %v4192 = vunpack.c.l.b16 %v2697
    %v4193 = vunpack.c.h.b16 %v2697
    %v4194 = vunpack.c.l.b16 %v2698
    %v4195 = vunpack.c.h.b16 %v2698
    %v4196 = vunpack.c.l.b16 %v2699
    %v4197 = vunpack.c.h.b16 %v2699
    %v4198 = vunpack.c.l.b16 %v2700
    %v4199 = vunpack.c.h.b16 %v2700
    %v4200 = vunpack.c.l.b16 %v2701
    %v4201 = vunpack.c.h.b16 %v2701
    %v4202 = vunpack.c.l.b16 %v2702
    %v4203 = vunpack.c.h.b16 %v2702
    %v4204 = vunpack.c.l.b16 %v2703
    %v4205 = vunpack.c.h.b16 %v2703
    %v4206 = vunpack.c.l.b16 %v2704
    %v4207 = vunpack.c.h.b16 %v2704
    %v4208 = vunpack.c.l.b16 %v2705
    %v4209 = vunpack.c.h.b16 %v2705
    %v4210 = vunpack.c.l.b16 %v2706
    %v4211 = vunpack.c.h.b16 %v2706
    %v4212 = vunpack.c.l.b16 %v2707
    %v4213 = vunpack.c.h.b16 %v2707
    %v4214 = vunpack.c.l.b16 %v2708
    %v4215 = vunpack.c.h.b16 %v2708
    %v4216 = vunpack.c.l.b16 %v2709
    %v4217 = vunpack.c.h.b16 %v2709
    %v4218 = vunpack.c.l.b16 %v2710
    %v4219 = vunpack.c.h.b16 %v2710
    %v4220 = vunpack.c.l.b16 %v2711
    %v4221 = vunpack.c.h.b16 %v2711
    %v4222 = vunpack.c.l.b16 %v2712
    %v4223 = vunpack.c.h.b16 %v2712
    %v4224 = vunpack.c.l.b16 %v2713
    %v4225 = vunpack.c.h.b16 %v2713
    %v4226 = vunpack.c.l.b16 %v2714
    %v4227 = vunpack.c.h.b16 %v2714
    %v4228 = vunpack.c.l.b16 %v2715
    %v4229 = vunpack.c.h.b16 %v2715
    %v4230 = vunpack.c.l.b16 %v2716
    %v4231 = vunpack.c.h.b16 %v2716
    %v4232 = vunpack.c.l.b16 %v2717
    %v4233 = vunpack.c.h.b16 %v2717
    %v4234 = vunpack.c.l.b16 %v2718
    %v4235 = vunpack.c.h.b16 %v2718
    %v4236 = vunpack.c.l.b16 %v2719
    %v4237 = vunpack.c.h.b16 %v2719
    %v4238 = vunpack.c.l.b16 %v2720
    %v4239 = vunpack.c.h.b16 %v2720
    %v4240 = vunpack.c.l.b16 %v2721
    %v4241 = vunpack.c.h.b16 %v2721
    %v4242 = vunpack.c.l.b16 %v2722
    %v4243 = vunpack.c.h.b16 %v2722
    %v4244 = vunpack.c.l.b16 %v2723
    %v4245 = vunpack.c.h.b16 %v2723
    %v4246 = vunpack.c.l.b16 %v2724
    %v4247 = vunpack.c.h.b16 %v2724
    %v4248 = vunpack.c.l.b16 %v2725
    %v4249 = vunpack.c.h.b16 %v2725
    %v4250 = vunpack.c.l.b16 %v2726
    %v4251 = vunpack.c.h.b16 %v2726
    %v4252 = vunpack.c.l.b16 %v2727
    %v4253 = vunpack.c.h.b16 %v2727
    %v4254 = vunpack.c.l.b16 %v2728
    %v4255 = vunpack.c.h.b16 %v2728
    %v4256 = vunpack.c.l.b16 %v2729
    %v4257 = vunpack.c.h.b16 %v2729
    %v4258 = vunpack.c.l.b16 %v2730
    %v4259 = vunpack.c.h.b16 %v2730
    %v4260 = vunpack.c.l.b16 %v2731
    %v4261 = vunpack.c.h.b16 %v2731
    %v4262 = vunpack.c.l.b16 %v2732
    %v4263 = vunpack.c.h.b16 %v2732
    %v4264 = vunpack.c.l.b16 %v2733
    %v4265 = vunpack.c.h.b16 %v2733
    %v4266 = vunpack.c.l.b16 %v2734
    %v4267 = vunpack.c.h.b16 %v2734
    %v4268 = vunpack.c.l.b16 %v2735
    %v4269 = vunpack.c.h.b16 %v2735
    %v4270 = vunpack.c.l.b16 %v2736
    %v4271 = vunpack.c.h.b16 %v2736
    %v4272 = vunpack.c.l.b16 %v2737
    %v4273 = vunpack.c.h.b16 %v2737
    %v4274 = vunpack.c.l.b16 %v2738
    %v4275 = vunpack.c.h.b16 %v2738
    %v4276 = vunpack.c.l.b16 %v2739
    %v4277 = vunpack.c.h.b16 %v2739
    %v4278 = vunpack.c.l.b16 %v2740
    %v4279 = vunpack.c.h.b16 %v2740
    %v4280 = vunpack.c.l.b16 %v2741
    %v4281 = vunpack.c.h.b16 %v2741
    %v4282 = vunpack.c.l.b16 %v2742
    %v4283 = vunpack.c.h.b16 %v2742
    %v4284 = vunpack.c.l.b16 %v2743
    %v4285 = vunpack.c.h.b16 %v2743
    %v4286 = vunpack.c.l.b16 %v2744
    %v4287 = vunpack.c.h.b16 %v2744
    %v4288 = vunpack.c.l.b16 %v2745
    %v4289 = vunpack.c.h.b16 %v2745
    %v4290 = vunpack.c.l.b16 %v2746
    %v4291 = vunpack.c.h.b16 %v2746
    %v4292 = vunpack.c.l.b16 %v2747
    %v4293 = vunpack.c.h.b16 %v2747
    %v4294 = vpack.c.b16 %v3274, %v3270
    %v4295 = vpack.c.b16 %v3275, %v3271
    %v4296 = vpack.c.b16 %v3276, %v3272
    %v4297 = vpack.c.b16 %v3277, %v3273
    %v4298 = vpack.c.b16 %v3282, %v3278
    %v4299 = vpack.c.b16 %v3283, %v3279
    %v4300 = vpack.c.b16 %v3284, %v3280
    %v4301 = vpack.c.b16 %v3285, %v3281
    %v4302 = vpack.c.b16 %v3290, %v3286
    %v4303 = vpack.c.b16 %v3291, %v3287
    %v4304 = vpack.c.b16 %v3292, %v3288
    %v4305 = vpack.c.b16 %v3293, %v3289
    %v4306 = vpack.c.b16 %v3298, %v3294
    %v4307 = vpack.c.b16 %v3299, %v3295
    %v4308 = vpack.c.b16 %v3300, %v3296
    %v4309 = vpack.c.b16 %v3301, %v3297
    %v4310 = vpack.c.b16 %v3306, %v3302
    %v4311 = vpack.c.b16 %v3307, %v3303
    %v4312 = vpack.c.b16 %v3308, %v3304
    %v4313 = vpack.c.b16 %v3309, %v3305
    %v4314 = vpack.c.b16 %v3314, %v3310
    %v4315 = vpack.c.b16 %v3315, %v3311
    %v4316 = vpack.c.b16 %v3316, %v3312
    %v4317 = vpack.c.b16 %v3317, %v3313
    %v4318 = vpack.c.b16 %v3322, %v3318
    %v4319 = vpack.c.b16 %v3323, %v3319
    %v4320 = vpack.c.b16 %v3324, %v3320
    %v4321 = vpack.c.b16 %v3325, %v3321
    %v4322 = vpack.c.b16 %v3330, %v3326
    %v4323 = vpack.c.b16 %v3331, %v3327
    %v4324 = vpack.c.b16 %v3332, %v3328
    %v4325 = vpack.c.b16 %v3333, %v3329
    %v4326 = vpack.c.b16 %v3338, %v3334
    %v4327 = vpack.c.b16 %v3339, %v3335
    %v4328 = vpack.c.b16 %v3340, %v3336
    %v4329 = vpack.c.b16 %v3341, %v3337
    %v4330 = vpack.c.b16 %v3346, %v3342
    %v4331 = vpack.c.b16 %v3347, %v3343
    %v4332 = vpack.c.b16 %v3348, %v3344
    %v4333 = vpack.c.b16 %v3349, %v3345
    %v4334 = vpack.c.b16 %v3354, %v3350
    %v4335 = vpack.c.b16 %v3355, %v3351
    %v4336 = vpack.c.b16 %v3356, %v3352
    %v4337 = vpack.c.b16 %v3357, %v3353
    %v4338 = vpack.c.b16 %v3362, %v3358
    %v4339 = vpack.c.b16 %v3363, %v3359
    %v4340 = vpack.c.b16 %v3364, %v3360
    %v4341 = vpack.c.b16 %v3365, %v3361
    %v4342 = vpack.c.b16 %v3370, %v3366
    %v4343 = vpack.c.b16 %v3371, %v3367
    %v4344 = vpack.c.b16 %v3372, %v3368
    %v4345 = vpack.c.b16 %v3373, %v3369
    %v4346 = vpack.c.b16 %v3378, %v3374
    %v4347 = vpack.c.b16 %v3379, %v3375
    %v4348 = vpack.c.b16 %v3380, %v3376
    %v4349 = vpack.c.b16 %v3381, %v3377
    %v4350 = vpack.c.b16 %v3386, %v3382
    %v4351 = vpack.c.b16 %v3387, %v3383
    %v4352 = vpack.c.b16 %v3388, %v3384
    %v4353 = vpack.c.b16 %v3389, %v3385
    %v4354 = vpack.c.b16 %v3394, %v3390
    %v4355 = vpack.c.b16 %v3395, %v3391
    %v4356 = vpack.c.b16 %v3396, %v3392
    %v4357 = vpack.c.b16 %v3397, %v3393
    %v4358 = vpack.c.b16 %v3402, %v3398
    %v4359 = vpack.c.b16 %v3403, %v3399
    %v4360 = vpack.c.b16 %v3404, %v3400
    %v4361 = vpack.c.b16 %v3405, %v3401
    %v4362 = vpack.c.b16 %v3410, %v3406
    %v4363 = vpack.c.b16 %v3411, %v3407
    %v4364 = vpack.c.b16 %v3412, %v3408
    %v4365 = vpack.c.b16 %v3413, %v3409
    %v4366 = vpack.c.b16 %v3418, %v3414
    %v4367 = vpack.c.b16 %v3419, %v3415
    %v4368 = vpack.c.b16 %v3420, %v3416
    %v4369 = vpack.c.b16 %v3421, %v3417
    %v4370 = vpack.c.b16 %v3426, %v3422
    %v4371 = vpack.c.b16 %v3427, %v3423
    %v4372 = vpack.c.b16 %v3428, %v3424
    %v4373 = vpack.c.b16 %v3429, %v3425
    %v4374 = vpack.c.b16 %v3434, %v3430
    %v4375 = vpack.c.b16 %v3435, %v3431
    %v4376 = vpack.c.b16 %v3436, %v3432
    %v4377 = vpack.c.b16 %v3437, %v3433
    %v4378 = vpack.c.b16 %v3442, %v3438
    %v4379 = vpack.c.b16 %v3443, %v3439
    %v4380 = vpack.c.b16 %v3444, %v3440
    %v4381 = vpack.c.b16 %v3445, %v3441
    %v4382 = vpack.c.b16 %v3450, %v3446
    %v4383 = vpack.c.b16 %v3451, %v3447
    %v4384 = vpack.c.b16 %v3452, %v3448
    %v4385 = vpack.c.b16 %v3453, %v3449
    %v4386 = vpack.c.b16 %v3458, %v3454
    %v4387 = vpack.c.b16 %v3459, %v3455
    %v4388 = vpack.c.b16 %v3460, %v3456
    %v4389 = vpack.c.b16 %v3461, %v3457
    %v4390 = vpack.c.b16 %v3466, %v3462
    %v4391 = vpack.c.b16 %v3467, %v3463
    %v4392 = vpack.c.b16 %v3468, %v3464
    %v4393 = vpack.c.b16 %v3469, %v3465
    %v4394 = vpack.c.b16 %v3474, %v3470
    %v4395 = vpack.c.b16 %v3475, %v3471
    %v4396 = vpack.c.b16 %v3476, %v3472
    %v4397 = vpack.c.b16 %v3477, %v3473
    %v4398 = vpack.c.b16 %v3482, %v3478
    %v4399 = vpack.c.b16 %v3483, %v3479
    %v4400 = vpack.c.b16 %v3484, %v3480
    %v4401 = vpack.c.b16 %v3485, %v3481
    %v4402 = vpack.c.b16 %v3490, %v3486
    %v4403 = vpack.c.b16 %v3491, %v3487
    %v4404 = vpack.c.b16 %v3492, %v3488
    %v4405 = vpack.c.b16 %v3493, %v3489
    %v4406 = vpack.c.b16 %v3498, %v3494
    %v4407 = vpack.c.b16 %v3499, %v3495
    %v4408 = vpack.c.b16 %v3500, %v3496
    %v4409 = vpack.c.b16 %v3501, %v3497
    %v4410 = vpack.c.b16 %v3506, %v3502
    %v4411 = vpack.c.b16 %v3507, %v3503
    %v4412 = vpack.c.b16 %v3508, %v3504
    %v4413 = vpack.c.b16 %v3509, %v3505
    %v4414 = vpack.c.b16 %v3514, %v3510
    %v4415 = vpack.c.b16 %v3515, %v3511
    %v4416 = vpack.c.b16 %v3516, %v3512
    %v4417 = vpack.c.b16 %v3517, %v3513
    %v4418 = vpack.c.b16 %v3522, %v3518
    %v4419 = vpack.c.b16 %v3523, %v3519
    %v4420 = vpack.c.b16 %v3524, %v3520
    %v4421 = vpack.c.b16 %v3525, %v3521
    %v4422 = vpack.c.b16 %v3530, %v3526
    %v4423 = vpack.c.b16 %v3531, %v3527
    %v4424 = vpack.c.b16 %v3532, %v3528
    %v4425 = vpack.c.b16 %v3533, %v3529
    %v4426 = vpack.c.b16 %v3538, %v3534
    %v4427 = vpack.c.b16 %v3539, %v3535
    %v4428 = vpack.c.b16 %v3540, %v3536
    %v4429 = vpack.c.b16 %v3541, %v3537
    %v4430 = vpack.c.b16 %v3546, %v3542
    %v4431 = vpack.c.b16 %v3547, %v3543
    %v4432 = vpack.c.b16 %v3548, %v3544
    %v4433 = vpack.c.b16 %v3549, %v3545
    %v4434 = vpack.c.b16 %v3554, %v3550
    %v4435 = vpack.c.b16 %v3555, %v3551
    %v4436 = vpack.c.b16 %v3556, %v3552
    %v4437 = vpack.c.b16 %v3557, %v3553
    %v4438 = vpack.c.b16 %v3562, %v3558
    %v4439 = vpack.c.b16 %v3563, %v3559
    %v4440 = vpack.c.b16 %v3564, %v3560
    %v4441 = vpack.c.b16 %v3565, %v3561
    %v4442 = vpack.c.b16 %v3570, %v3566
    %v4443 = vpack.c.b16 %v3571, %v3567
    %v4444 = vpack.c.b16 %v3572, %v3568
    %v4445 = vpack.c.b16 %v3573, %v3569
    %v4446 = vpack.c.b16 %v3578, %v3574
    %v4447 = vpack.c.b16 %v3579, %v3575
    %v4448 = vpack.c.b16 %v3580, %v3576
    %v4449 = vpack.c.b16 %v3581, %v3577
    %v4450 = vpack.c.b16 %v3586, %v3582
    %v4451 = vpack.c.b16 %v3587, %v3583
    %v4452 = vpack.c.b16 %v3588, %v3584
    %v4453 = vpack.c.b16 %v3589, %v3585
    %v4454 = vpack.c.b16 %v3594, %v3590
    %v4455 = vpack.c.b16 %v3595, %v3591
    %v4456 = vpack.c.b16 %v3596, %v3592
    %v4457 = vpack.c.b16 %v3597, %v3593
    %v4458 = vpack.c.b16 %v3602, %v3598
    %v4459 = vpack.c.b16 %v3603, %v3599
    %v4460 = vpack.c.b16 %v3604, %v3600
    %v4461 = vpack.c.b16 %v3605, %v3601
    %v4462 = vpack.c.b16 %v3610, %v3606
    %v4463 = vpack.c.b16 %v3611, %v3607
    %v4464 = vpack.c.b16 %v3612, %v3608
    %v4465 = vpack.c.b16 %v3613, %v3609
    %v4466 = vpack.c.b16 %v3618, %v3614
    %v4467 = vpack.c.b16 %v3619, %v3615
    %v4468 = vpack.c.b16 %v3620, %v3616
    %v4469 = vpack.c.b16 %v3621, %v3617
    %v4470 = vpack.c.b16 %v3626, %v3622
    %v4471 = vpack.c.b16 %v3627, %v3623
    %v4472 = vpack.c.b16 %v3628, %v3624
    %v4473 = vpack.c.b16 %v3629, %v3625
    %v4474 = vpack.c.b16 %v3634, %v3630
    %v4475 = vpack.c.b16 %v3635, %v3631
    %v4476 = vpack.c.b16 %v3636, %v3632
    %v4477 = vpack.c.b16 %v3637, %v3633
    %v4478 = vpack.c.b16 %v3642, %v3638
    %v4479 = vpack.c.b16 %v3643, %v3639
    %v4480 = vpack.c.b16 %v3644, %v3640
    %v4481 = vpack.c.b16 %v3645, %v3641
    %v4482 = vpack.c.b16 %v3650, %v3646
    %v4483 = vpack.c.b16 %v3651, %v3647
    %v4484 = vpack.c.b16 %v3652, %v3648
    %v4485 = vpack.c.b16 %v3653, %v3649
    %v4486 = vpack.c.b16 %v3658, %v3654
    %v4487 = vpack.c.b16 %v3659, %v3655
    %v4488 = vpack.c.b16 %v3660, %v3656
    %v4489 = vpack.c.b16 %v3661, %v3657
    %v4490 = vpack.c.b16 %v3666, %v3662
    %v4491 = vpack.c.b16 %v3667, %v3663
    %v4492 = vpack.c.b16 %v3668, %v3664
    %v4493 = vpack.c.b16 %v3669, %v3665
    %v4494 = vpack.c.b16 %v3674, %v3670
    %v4495 = vpack.c.b16 %v3675, %v3671
    %v4496 = vpack.c.b16 %v3676, %v3672
    %v4497 = vpack.c.b16 %v3677, %v3673
    %v4498 = vpack.c.b16 %v3682, %v3678
    %v4499 = vpack.c.b16 %v3683, %v3679
    %v4500 = vpack.c.b16 %v3684, %v3680
    %v4501 = vpack.c.b16 %v3685, %v3681
    %v4502 = vpack.c.b16 %v3690, %v3686
    %v4503 = vpack.c.b16 %v3691, %v3687
    %v4504 = vpack.c.b16 %v3692, %v3688
    %v4505 = vpack.c.b16 %v3693, %v3689
    %v4506 = vpack.c.b16 %v3698, %v3694
    %v4507 = vpack.c.b16 %v3699, %v3695
    %v4508 = vpack.c.b16 %v3700, %v3696
    %v4509 = vpack.c.b16 %v3701, %v3697
    %v4510 = vpack.c.b16 %v3706, %v3702
    %v4511 = vpack.c.b16 %v3707, %v3703
    %v4512 = vpack.c.b16 %v3708, %v3704
    %v4513 = vpack.c.b16 %v3709, %v3705
    %v4514 = vpack.c.b16 %v3714, %v3710
    %v4515 = vpack.c.b16 %v3715, %v3711
    %v4516 = vpack.c.b16 %v3716, %v3712
    %v4517 = vpack.c.b16 %v3717, %v3713
    %v4518 = vpack.c.b16 %v3722, %v3718
    %v4519 = vpack.c.b16 %v3723, %v3719
    %v4520 = vpack.c.b16 %v3724, %v3720
    %v4521 = vpack.c.b16 %v3725, %v3721
    %v4522 = vpack.c.b16 %v3730, %v3726
    %v4523 = vpack.c.b16 %v3731, %v3727
    %v4524 = vpack.c.b16 %v3732, %v3728
    %v4525 = vpack.c.b16 %v3733, %v3729
    %v4526 = vpack.c.b16 %v3738, %v3734
    %v4527 = vpack.c.b16 %v3739, %v3735
    %v4528 = vpack.c.b16 %v3740, %v3736
    %v4529 = vpack.c.b16 %v3741, %v3737
    %v4530 = vpack.c.b16 %v3746, %v3742
    %v4531 = vpack.c.b16 %v3747, %v3743
    %v4532 = vpack.c.b16 %v3748, %v3744
    %v4533 = vpack.c.b16 %v3749, %v3745
    %v4534 = vpack.c.b16 %v3754, %v3750
    %v4535 = vpack.c.b16 %v3755, %v3751
    %v4536 = vpack.c.b16 %v3756, %v3752
    %v4537 = vpack.c.b16 %v3757, %v3753
    %v4538 = vpack.c.b16 %v3762, %v3758
    %v4539 = vpack.c.b16 %v3763, %v3759
    %v4540 = vpack.c.b16 %v3764, %v3760
    %v4541 = vpack.c.b16 %v3765, %v3761
    %v4542 = vpack.c.b16 %v3770, %v3766
    %v4543 = vpack.c.b16 %v3771, %v3767
    %v4544 = vpack.c.b16 %v3772, %v3768
    %v4545 = vpack.c.b16 %v3773, %v3769
    %v4546 = vpack.c.b16 %v3778, %v3774
    %v4547 = vpack.c.b16 %v3779, %v3775
    %v4548 = vpack.c.b16 %v3780, %v3776
    %v4549 = vpack.c.b16 %v3781, %v3777
    %v4550 = vpack.c.b16 %v3786, %v3782
    %v4551 = vpack.c.b16 %v3787, %v3783
    %v4552 = vpack.c.b16 %v3788, %v3784
    %v4553 = vpack.c.b16 %v3789, %v3785
    %v4554 = vpack.c.b16 %v3794, %v3790
    %v4555 = vpack.c.b16 %v3795, %v3791
    %v4556 = vpack.c.b16 %v3796, %v3792
    %v4557 = vpack.c.b16 %v3797, %v3793
    %v4558 = vpack.c.b16 %v3802, %v3798
    %v4559 = vpack.c.b16 %v3803, %v3799
    %v4560 = vpack.c.b16 %v3804, %v3800
    %v4561 = vpack.c.b16 %v3805, %v3801
    %v4562 = vpack.c.b16 %v3810, %v3806
    %v4563 = vpack.c.b16 %v3811, %v3807
    %v4564 = vpack.c.b16 %v3812, %v3808
    %v4565 = vpack.c.b16 %v3813, %v3809
    %v4566 = vpack.c.b16 %v3818, %v3814
    %v4567 = vpack.c.b16 %v3819, %v3815
    %v4568 = vpack.c.b16 %v3820, %v3816
    %v4569 = vpack.c.b16 %v3821, %v3817
    %v4570 = vpack.c.b16 %v3826, %v3822
    %v4571 = vpack.c.b16 %v3827, %v3823
    %v4572 = vpack.c.b16 %v3828, %v3824
    %v4573 = vpack.c.b16 %v3829, %v3825
    %v4574 = vpack.c.b16 %v3834, %v3830
    %v4575 = vpack.c.b16 %v3835, %v3831
    %v4576 = vpack.c.b16 %v3836, %v3832
    %v4577 = vpack.c.b16 %v3837, %v3833
    %v4578 = vpack.c.b16 %v3842, %v3838
    %v4579 = vpack.c.b16 %v3843, %v3839
    %v4580 = vpack.c.b16 %v3844, %v3840
    %v4581 = vpack.c.b16 %v3845, %v3841
    %v4582 = vpack.c.b16 %v3850, %v3846
    %v4583 = vpack.c.b16 %v3851, %v3847
    %v4584 = vpack.c.b16 %v3852, %v3848
    %v4585 = vpack.c.b16 %v3853, %v3849
    %v4586 = vpack.c.b16 %v3858, %v3854
    %v4587 = vpack.c.b16 %v3859, %v3855
    %v4588 = vpack.c.b16 %v3860, %v3856
    %v4589 = vpack.c.b16 %v3861, %v3857
    %v4590 = vpack.c.b16 %v3866, %v3862
    %v4591 = vpack.c.b16 %v3867, %v3863
    %v4592 = vpack.c.b16 %v3868, %v3864
    %v4593 = vpack.c.b16 %v3869, %v3865
    %v4594 = vpack.c.b16 %v3874, %v3870
    %v4595 = vpack.c.b16 %v3875, %v3871
    %v4596 = vpack.c.b16 %v3876, %v3872
    %v4597 = vpack.c.b16 %v3877, %v3873
    %v4598 = vpack.c.b16 %v3882, %v3878
    %v4599 = vpack.c.b16 %v3883, %v3879
    %v4600 = vpack.c.b16 %v3884, %v3880
    %v4601 = vpack.c.b16 %v3885, %v3881
    %v4602 = vpack.c.b16 %v3890, %v3886
    %v4603 = vpack.c.b16 %v3891, %v3887
    %v4604 = vpack.c.b16 %v3892, %v3888
    %v4605 = vpack.c.b16 %v3893, %v3889
    %v4606 = vpack.c.b16 %v3898, %v3894
    %v4607 = vpack.c.b16 %v3899, %v3895
    %v4608 = vpack.c.b16 %v3900, %v3896
    %v4609 = vpack.c.b16 %v3901, %v3897
    %v4610 = vpack.c.b16 %v3906, %v3902
    %v4611 = vpack.c.b16 %v3907, %v3903
    %v4612 = vpack.c.b16 %v3908, %v3904
    %v4613 = vpack.c.b16 %v3909, %v3905
    %v4614 = vpack.c.b16 %v3914, %v3910
    %v4615 = vpack.c.b16 %v3915, %v3911
    %v4616 = vpack.c.b16 %v3916, %v3912
    %v4617 = vpack.c.b16 %v3917, %v3913
    %v4618 = vpack.c.b16 %v3922, %v3918
    %v4619 = vpack.c.b16 %v3923, %v3919
    %v4620 = vpack.c.b16 %v3924, %v3920
    %v4621 = vpack.c.b16 %v3925, %v3921
    %v4622 = vpack.c.b16 %v3930, %v3926
    %v4623 = vpack.c.b16 %v3931, %v3927
    %v4624 = vpack.c.b16 %v3932, %v3928
    %v4625 = vpack.c.b16 %v3933, %v3929
    %v4626 = vpack.c.b16 %v3938, %v3934
    %v4627 = vpack.c.b16 %v3939, %v3935
    %v4628 = vpack.c.b16 %v3940, %v3936
    %v4629 = vpack.c.b16 %v3941, %v3937
    %v4630 = vpack.c.b16 %v3946, %v3942
    %v4631 = vpack.c.b16 %v3947, %v3943
    %v4632 = vpack.c.b16 %v3948, %v3944
    %v4633 = vpack.c.b16 %v3949, %v3945
    %v4634 = vpack.c.b16 %v3954, %v3950
    %v4635 = vpack.c.b16 %v3955, %v3951
    %v4636 = vpack.c.b16 %v3956, %v3952
    %v4637 = vpack.c.b16 %v3957, %v3953
    %v4638 = vpack.c.b16 %v3962, %v3958
    %v4639 = vpack.c.b16 %v3963, %v3959
    %v4640 = vpack.c.b16 %v3964, %v3960
    %v4641 = vpack.c.b16 %v3965, %v3961
    %v4642 = vpack.c.b16 %v3970, %v3966
    %v4643 = vpack.c.b16 %v3971, %v3967
    %v4644 = vpack.c.b16 %v3972, %v3968
    %v4645 = vpack.c.b16 %v3973, %v3969
    %v4646 = vpack.c.b16 %v3978, %v3974
    %v4647 = vpack.c.b16 %v3979, %v3975
    %v4648 = vpack.c.b16 %v3980, %v3976
    %v4649 = vpack.c.b16 %v3981, %v3977
    %v4650 = vpack.c.b16 %v3986, %v3982
    %v4651 = vpack.c.b16 %v3987, %v3983
    %v4652 = vpack.c.b16 %v3988, %v3984
    %v4653 = vpack.c.b16 %v3989, %v3985
    %v4654 = vpack.c.b16 %v3994, %v3990
    %v4655 = vpack.c.b16 %v3995, %v3991
    %v4656 = vpack.c.b16 %v3996, %v3992
    %v4657 = vpack.c.b16 %v3997, %v3993
    %v4658 = vpack.c.b16 %v4002, %v3998
    %v4659 = vpack.c.b16 %v4003, %v3999
    %v4660 = vpack.c.b16 %v4004, %v4000
    %v4661 = vpack.c.b16 %v4005, %v4001
    %v4662 = vpack.c.b16 %v4010, %v4006
    %v4663 = vpack.c.b16 %v4011, %v4007
    %v4664 = vpack.c.b16 %v4012, %v4008
    %v4665 = vpack.c.b16 %v4013, %v4009
    %v4666 = vpack.c.b16 %v4018, %v4014
    %v4667 = vpack.c.b16 %v4019, %v4015
    %v4668 = vpack.c.b16 %v4020, %v4016
    %v4669 = vpack.c.b16 %v4021, %v4017
    %v4670 = vpack.c.b16 %v4026, %v4022
    %v4671 = vpack.c.b16 %v4027, %v4023
    %v4672 = vpack.c.b16 %v4028, %v4024
    %v4673 = vpack.c.b16 %v4029, %v4025
    %v4674 = vpack.c.b16 %v4034, %v4030
    %v4675 = vpack.c.b16 %v4035, %v4031
    %v4676 = vpack.c.b16 %v4036, %v4032
    %v4677 = vpack.c.b16 %v4037, %v4033
    %v4678 = vpack.c.b16 %v4042, %v4038
    %v4679 = vpack.c.b16 %v4043, %v4039
    %v4680 = vpack.c.b16 %v4044, %v4040
    %v4681 = vpack.c.b16 %v4045, %v4041
    %v4682 = vpack.c.b16 %v4050, %v4046
    %v4683 = vpack.c.b16 %v4051, %v4047
    %v4684 = vpack.c.b16 %v4052, %v4048
    %v4685 = vpack.c.b16 %v4053, %v4049
    %v4686 = vpack.c.b16 %v4058, %v4054
    %v4687 = vpack.c.b16 %v4059, %v4055
    %v4688 = vpack.c.b16 %v4060, %v4056
    %v4689 = vpack.c.b16 %v4061, %v4057
    %v4690 = vpack.c.b16 %v4066, %v4062
    %v4691 = vpack.c.b16 %v4067, %v4063
    %v4692 = vpack.c.b16 %v4068, %v4064
    %v4693 = vpack.c.b16 %v4069, %v4065
    %v4694 = vpack.c.b16 %v4074, %v4070
    %v4695 = vpack.c.b16 %v4075, %v4071
    %v4696 = vpack.c.b16 %v4076, %v4072
    %v4697 = vpack.c.b16 %v4077, %v4073
    %v4698 = vpack.c.b16 %v4082, %v4078
    %v4699 = vpack.c.b16 %v4083, %v4079
    %v4700 = vpack.c.b16 %v4084, %v4080
    %v4701 = vpack.c.b16 %v4085, %v4081
    %v4702 = vpack.c.b16 %v4090, %v4086
    %v4703 = vpack.c.b16 %v4091, %v4087
    %v4704 = vpack.c.b16 %v4092, %v4088
    %v4705 = vpack.c.b16 %v4093, %v4089
    %v4706 = vpack.c.b16 %v4098, %v4094
    %v4707 = vpack.c.b16 %v4099, %v4095
    %v4708 = vpack.c.b16 %v4100, %v4096
    %v4709 = vpack.c.b16 %v4101, %v4097
    %v4710 = vpack.c.b16 %v4106, %v4102
    %v4711 = vpack.c.b16 %v4107, %v4103
    %v4712 = vpack.c.b16 %v4108, %v4104
    %v4713 = vpack.c.b16 %v4109, %v4105
    %v4714 = vpack.c.b16 %v4114, %v4110
    %v4715 = vpack.c.b16 %v4115, %v4111
    %v4716 = vpack.c.b16 %v4116, %v4112
    %v4717 = vpack.c.b16 %v4117, %v4113
    %v4718 = vpack.c.b16 %v4122, %v4118
    %v4719 = vpack.c.b16 %v4123, %v4119
    %v4720 = vpack.c.b16 %v4124, %v4120
    %v4721 = vpack.c.b16 %v4125, %v4121
    %v4722 = vpack.c.b16 %v4130, %v4126
    %v4723 = vpack.c.b16 %v4131, %v4127
    %v4724 = vpack.c.b16 %v4132, %v4128
    %v4725 = vpack.c.b16 %v4133, %v4129
    %v4726 = vpack.c.b16 %v4138, %v4134
    %v4727 = vpack.c.b16 %v4139, %v4135
    %v4728 = vpack.c.b16 %v4140, %v4136
    %v4729 = vpack.c.b16 %v4141, %v4137
    %v4730 = vpack.c.b16 %v4146, %v4142
    %v4731 = vpack.c.b16 %v4147, %v4143
    %v4732 = vpack.c.b16 %v4148, %v4144
    %v4733 = vpack.c.b16 %v4149, %v4145
    %v4734 = vpack.c.b16 %v4154, %v4150
    %v4735 = vpack.c.b16 %v4155, %v4151
    %v4736 = vpack.c.b16 %v4156, %v4152
    %v4737 = vpack.c.b16 %v4157, %v4153
    %v4738 = vpack.c.b16 %v4162, %v4158
    %v4739 = vpack.c.b16 %v4163, %v4159
    %v4740 = vpack.c.b16 %v4164, %v4160
    %v4741 = vpack.c.b16 %v4165, %v4161
    %v4742 = vpack.c.b16 %v4170, %v4166
    %v4743 = vpack.c.b16 %v4171, %v4167
    %v4744 = vpack.c.b16 %v4172, %v4168
    %v4745 = vpack.c.b16 %v4173, %v4169
    %v4746 = vpack.c.b16 %v4178, %v4174
    %v4747 = vpack.c.b16 %v4179, %v4175
    %v4748 = vpack.c.b16 %v4180, %v4176
    %v4749 = vpack.c.b16 %v4181, %v4177
    %v4750 = vpack.c.b16 %v4186, %v4182
    %v4751 = vpack.c.b16 %v4187, %v4183
    %v4752 = vpack.c.b16 %v4188, %v4184
    %v4753 = vpack.c.b16 %v4189, %v4185
    %v4754 = vpack.c.b16 %v4194, %v4190
    %v4755 = vpack.c.b16 %v4195, %v4191
    %v4756 = vpack.c.b16 %v4196, %v4192
    %v4757 = vpack.c.b16 %v4197, %v4193
    %v4758 = vpack.c.b16 %v4202, %v4198
    %v4759 = vpack.c.b16 %v4203, %v4199
    %v4760 = vpack.c.b16 %v4204, %v4200
    %v4761 = vpack.c.b16 %v4205, %v4201
    %v4762 = vpack.c.b16 %v4210, %v4206
    %v4763 = vpack.c.b16 %v4211, %v4207
    %v4764 = vpack.c.b16 %v4212, %v4208
    %v4765 = vpack.c.b16 %v4213, %v4209
    %v4766 = vpack.c.b16 %v4218, %v4214
    %v4767 = vpack.c.b16 %v4219, %v4215
    %v4768 = vpack.c.b16 %v4220, %v4216
    %v4769 = vpack.c.b16 %v4221, %v4217
    %v4770 = vpack.c.b16 %v4226, %v4222
    %v4771 = vpack.c.b16 %v4227, %v4223
    %v4772 = vpack.c.b16 %v4228, %v4224
    %v4773 = vpack.c.b16 %v4229, %v4225
    %v4774 = vpack.c.b16 %v4234, %v4230
    %v4775 = vpack.c.b16 %v4235, %v4231
    %v4776 = vpack.c.b16 %v4236, %v4232
    %v4777 = vpack.c.b16 %v4237, %v4233
    %v4778 = vpack.c.b16 %v4242, %v4238
    %v4779 = vpack.c.b16 %v4243, %v4239
    %v4780 = vpack.c.b16 %v4244, %v4240
    %v4781 = vpack.c.b16 %v4245, %v4241
    %v4782 = vpack.c.b16 %v4250, %v4246
    %v4783 = vpack.c.b16 %v4251, %v4247
    %v4784 = vpack.c.b16 %v4252, %v4248
    %v4785 = vpack.c.b16 %v4253, %v4249
    %v4786 = vpack.c.b16 %v4258, %v4254
    %v4787 = vpack.c.b16 %v4259, %v4255
    %v4788 = vpack.c.b16 %v4260, %v4256
    %v4789 = vpack.c.b16 %v4261, %v4257
    %v4790 = vpack.c.b16 %v4266, %v4262
    %v4791 = vpack.c.b16 %v4267, %v4263
    %v4792 = vpack.c.b16 %v4268, %v4264
    %v4793 = vpack.c.b16 %v4269, %v4265
    %v4794 = vpack.c.b16 %v4274, %v4270
    %v4795 = vpack.c.b16 %v4275, %v4271
    %v4796 = vpack.c.b16 %v4276, %v4272
    %v4797 = vpack.c.b16 %v4277, %v4273
    %v4798 = vpack.c.b16 %v4282, %v4278
    %v4799 = vpack.c.b16 %v4283, %v4279
    %v4800 = vpack.c.b16 %v4284, %v4280
    %v4801 = vpack.c.b16 %v4285, %v4281
    %v4802 = vpack.c.b16 %v4290, %v4286
    %v4803 = vpack.c.b16 %v4291, %v4287
    %v4804 = vpack.c.b16 %v4292, %v4288
    %v4805 = vpack.c.b16 %v4293, %v4289
    %5318 = vmatpush.bf16.msra.mxu0 %v4322
    %5319 = vmatpush.bf16.msra.mxu0 %v4318
    %5320 = vmatpush.bf16.msra.mxu0 %v4314
    %5321 = vmatpush.bf16.msra.mxu0 %v4310
    %5322 = vmatpush.bf16.msra.mxu0 %v4306
    %5323 = vmatpush.bf16.msra.mxu0 %v4302
    %5324 = vmatpush.bf16.msra.mxu0 %v4298
    %5325 = vmatpush.bf16.msra.mxu0 %v4294
    %5326 = vmatmul.bf16.gmra.mxu0 %v2220
    %v5327 = vpop.f32.mrf.mxu0
    %v5328 = vadd.f32 %v2750, %v5327
    %v5329 = vpop.f32.mrf.mxu0
    %v5330 = vadd.f32 %v2750, %v5329
    %5331 = vdwg.mxu0
    %5332 = vmatpush.bf16.msra.mxu0 %v4354
    %5333 = vmatpush.bf16.msra.mxu0 %v4350
    %5334 = vmatpush.bf16.msra.mxu0 %v4346
    %5335 = vmatpush.bf16.msra.mxu0 %v4342
    %5336 = vmatpush.bf16.msra.mxu0 %v4338
    %5337 = vmatpush.bf16.msra.mxu0 %v4334
    %5338 = vmatpush.bf16.msra.mxu0 %v4330
    %5339 = vmatpush.bf16.msra.mxu0 %v4326
    %5340 = vmatmul.bf16.gmra.mxu0 %v2221
    %v5341 = vpop.f32.mrf.mxu0
    %v5342 = vadd.f32 %v5328, %v5341
    %v5343 = vpop.f32.mrf.mxu0
    %v5344 = vadd.f32 %v5330, %v5343
    %5345 = vdwg.mxu0
    %5346 = vmatpush.bf16.msra.mxu0 %v4386
    %5347 = vmatpush.bf16.msra.mxu0 %v4382
    %5348 = vmatpush.bf16.msra.mxu0 %v4378
    %5349 = vmatpush.bf16.msra.mxu0 %v4374
    %5350 = vmatpush.bf16.msra.mxu0 %v4370
    %5351 = vmatpush.bf16.msra.mxu0 %v4366
    %5352 = vmatpush.bf16.msra.mxu0 %v4362
    %5353 = vmatpush.bf16.msra.mxu0 %v4358
    %5354 = vmatmul.bf16.gmra.mxu0 %v2222
    %v5355 = vpop.f32.mrf.mxu0
    %v5356 = vadd.f32 %v5342, %v5355
    %v5357 = vpop.f32.mrf.mxu0
    %v5358 = vadd.f32 %v5344, %v5357
    %5359 = vdwg.mxu0
    %5360 = vmatpush.bf16.msra.mxu0 %v4418
    %5361 = vmatpush.bf16.msra.mxu0 %v4414
    %5362 = vmatpush.bf16.msra.mxu0 %v4410
    %5363 = vmatpush.bf16.msra.mxu0 %v4406
    %5364 = vmatpush.bf16.msra.mxu0 %v4402
    %5365 = vmatpush.bf16.msra.mxu0 %v4398
    %5366 = vmatpush.bf16.msra.mxu0 %v4394
    %5367 = vmatpush.bf16.msra.mxu0 %v4390
    %5368 = vmatmul.bf16.gmra.mxu0 %v2223
    %v5369 = vpop.f32.mrf.mxu0
    %v5370 = vadd.f32 %v5356, %v5369
    %v5371 = vpop.f32.mrf.mxu0
    %v5372 = vadd.f32 %v5358, %v5371
    %5373 = vdwg.mxu0
    %5374 = vmatpush.bf16.msra.mxu0 %v4450
    %5375 = vmatpush.bf16.msra.mxu0 %v4446
    %5376 = vmatpush.bf16.msra.mxu0 %v4442
    %5377 = vmatpush.bf16.msra.mxu0 %v4438
    %5378 = vmatpush.bf16.msra.mxu0 %v4434
    %5379 = vmatpush.bf16.msra.mxu0 %v4430
    %5380 = vmatpush.bf16.msra.mxu0 %v4426
    %5381 = vmatpush.bf16.msra.mxu0 %v4422
    %5382 = vmatmul.bf16.gmra.mxu0 %v2224
    %v5383 = vpop.f32.mrf.mxu0
    %v5384 = vadd.f32 %v5370, %v5383
    %v5385 = vpop.f32.mrf.mxu0
    %v5386 = vadd.f32 %v5372, %v5385
    %5387 = vdwg.mxu0
    %5388 = vmatpush.bf16.msra.mxu0 %v4482
    %5389 = vmatpush.bf16.msra.mxu0 %v4478
    %5390 = vmatpush.bf16.msra.mxu0 %v4474
    %5391 = vmatpush.bf16.msra.mxu0 %v4470
    %5392 = vmatpush.bf16.msra.mxu0 %v4466
    %5393 = vmatpush.bf16.msra.mxu0 %v4462
    %5394 = vmatpush.bf16.msra.mxu0 %v4458
    %5395 = vmatpush.bf16.msra.mxu0 %v4454
    %5396 = vmatmul.bf16.gmra.mxu0 %v2225
    %v5397 = vpop.f32.mrf.mxu0
    %v5398 = vadd.f32 %v5384, %v5397
    %v5399 = vpop.f32.mrf.mxu0
    %v5400 = vadd.f32 %v5386, %v5399
    %5401 = vdwg.mxu0
    %5402 = vmatpush.bf16.msra.mxu0 %v4514
    %5403 = vmatpush.bf16.msra.mxu0 %v4510
    %5404 = vmatpush.bf16.msra.mxu0 %v4506
    %5405 = vmatpush.bf16.msra.mxu0 %v4502
    %5406 = vmatpush.bf16.msra.mxu0 %v4498
    %5407 = vmatpush.bf16.msra.mxu0 %v4494
    %5408 = vmatpush.bf16.msra.mxu0 %v4490
    %5409 = vmatpush.bf16.msra.mxu0 %v4486
    %5410 = vmatmul.bf16.gmra.mxu0 %v2226
    %v5411 = vpop.f32.mrf.mxu0
    %v5412 = vadd.f32 %v5398, %v5411
    %v5413 = vpop.f32.mrf.mxu0
    %v5414 = vadd.f32 %v5400, %v5413
    %5415 = vdwg.mxu0
    %5416 = vmatpush.bf16.msra.mxu0 %v4546
    %5417 = vmatpush.bf16.msra.mxu0 %v4542
    %5418 = vmatpush.bf16.msra.mxu0 %v4538
    %5419 = vmatpush.bf16.msra.mxu0 %v4534
    %5420 = vmatpush.bf16.msra.mxu0 %v4530
    %5421 = vmatpush.bf16.msra.mxu0 %v4526
    %5422 = vmatpush.bf16.msra.mxu0 %v4522
    %5423 = vmatpush.bf16.msra.mxu0 %v4518
    %5424 = vmatmul.bf16.gmra.mxu0 %v2227
    %v5425 = vpop.f32.mrf.mxu0
    %v5426 = vadd.f32 %v5412, %v5425
    %v5427 = vpop.f32.mrf.mxu0
    %v5428 = vadd.f32 %v5414, %v5427
    %5429 = vdwg.mxu0
    %5430 = vmatpush.bf16.msra.mxu0 %v4578
    %5431 = vmatpush.bf16.msra.mxu0 %v4574
    %5432 = vmatpush.bf16.msra.mxu0 %v4570
    %5433 = vmatpush.bf16.msra.mxu0 %v4566
    %5434 = vmatpush.bf16.msra.mxu0 %v4562
    %5435 = vmatpush.bf16.msra.mxu0 %v4558
    %5436 = vmatpush.bf16.msra.mxu0 %v4554
    %5437 = vmatpush.bf16.msra.mxu0 %v4550
    %5438 = vmatmul.bf16.gmra.mxu0 %v2228
    %v5439 = vpop.f32.mrf.mxu0
    %v5440 = vadd.f32 %v5426, %v5439
    %v5441 = vpop.f32.mrf.mxu0
    %v5442 = vadd.f32 %v5428, %v5441
    %5443 = vdwg.mxu0
    %5444 = vmatpush.bf16.msra.mxu0 %v4610
    %5445 = vmatpush.bf16.msra.mxu0 %v4606
    %5446 = vmatpush.bf16.msra.mxu0 %v4602
    %5447 = vmatpush.bf16.msra.mxu0 %v4598
    %5448 = vmatpush.bf16.msra.mxu0 %v4594
    %5449 = vmatpush.bf16.msra.mxu0 %v4590
    %5450 = vmatpush.bf16.msra.mxu0 %v4586
    %5451 = vmatpush.bf16.msra.mxu0 %v4582
    %5452 = vmatmul.bf16.gmra.mxu0 %v2229
    %v5453 = vpop.f32.mrf.mxu0
    %v5454 = vadd.f32 %v5440, %v5453
    %v5455 = vpop.f32.mrf.mxu0
    %v5456 = vadd.f32 %v5442, %v5455
    %5457 = vdwg.mxu0
    %5458 = vmatpush.bf16.msra.mxu0 %v4642
    %5459 = vmatpush.bf16.msra.mxu0 %v4638
    %5460 = vmatpush.bf16.msra.mxu0 %v4634
    %5461 = vmatpush.bf16.msra.mxu0 %v4630
    %5462 = vmatpush.bf16.msra.mxu0 %v4626
    %5463 = vmatpush.bf16.msra.mxu0 %v4622
    %5464 = vmatpush.bf16.msra.mxu0 %v4618
    %5465 = vmatpush.bf16.msra.mxu0 %v4614
    %5466 = vmatmul.bf16.gmra.mxu0 %v2230
    %v5467 = vpop.f32.mrf.mxu0
    %v5468 = vadd.f32 %v5454, %v5467
    %v5469 = vpop.f32.mrf.mxu0
    %v5470 = vadd.f32 %v5456, %v5469
    %5471 = vdwg.mxu0
    %5472 = vmatpush.bf16.msra.mxu0 %v4674
    %5473 = vmatpush.bf16.msra.mxu0 %v4670
    %5474 = vmatpush.bf16.msra.mxu0 %v4666
    %5475 = vmatpush.bf16.msra.mxu0 %v4662
    %5476 = vmatpush.bf16.msra.mxu0 %v4658
    %5477 = vmatpush.bf16.msra.mxu0 %v4654
    %5478 = vmatpush.bf16.msra.mxu0 %v4650
    %5479 = vmatpush.bf16.msra.mxu0 %v4646
    %5480 = vmatmul.bf16.gmra.mxu0 %v2231
    %v5481 = vpop.f32.mrf.mxu0
    %v5482 = vadd.f32 %v5468, %v5481
    %v5483 = vpop.f32.mrf.mxu0
    %v5484 = vadd.f32 %v5470, %v5483
    %5485 = vdwg.mxu0
    %5486 = vmatpush.bf16.msra.mxu0 %v4706
    %5487 = vmatpush.bf16.msra.mxu0 %v4702
    %5488 = vmatpush.bf16.msra.mxu0 %v4698
    %5489 = vmatpush.bf16.msra.mxu0 %v4694
    %5490 = vmatpush.bf16.msra.mxu0 %v4690
    %5491 = vmatpush.bf16.msra.mxu0 %v4686
    %5492 = vmatpush.bf16.msra.mxu0 %v4682
    %5493 = vmatpush.bf16.msra.mxu0 %v4678
    %5494 = vmatmul.bf16.gmra.mxu0 %v2232
    %v5495 = vpop.f32.mrf.mxu0
    %v5496 = vadd.f32 %v5482, %v5495
    %v5497 = vpop.f32.mrf.mxu0
    %v5498 = vadd.f32 %v5484, %v5497
    %5499 = vdwg.mxu0
    %5500 = vmatpush.bf16.msra.mxu0 %v4738
    %5501 = vmatpush.bf16.msra.mxu0 %v4734
    %5502 = vmatpush.bf16.msra.mxu0 %v4730
    %5503 = vmatpush.bf16.msra.mxu0 %v4726
    %5504 = vmatpush.bf16.msra.mxu0 %v4722
    %5505 = vmatpush.bf16.msra.mxu0 %v4718
    %5506 = vmatpush.bf16.msra.mxu0 %v4714
    %5507 = vmatpush.bf16.msra.mxu0 %v4710
    %5508 = vmatmul.bf16.gmra.mxu0 %v2233
    %v5509 = vpop.f32.mrf.mxu0
    %v5510 = vadd.f32 %v5496, %v5509
    %v5511 = vpop.f32.mrf.mxu0
    %v5512 = vadd.f32 %v5498, %v5511
    %5513 = vdwg.mxu0
    %5514 = vmatpush.bf16.msra.mxu0 %v4770
    %5515 = vmatpush.bf16.msra.mxu0 %v4766
    %5516 = vmatpush.bf16.msra.mxu0 %v4762
    %5517 = vmatpush.bf16.msra.mxu0 %v4758
    %5518 = vmatpush.bf16.msra.mxu0 %v4754
    %5519 = vmatpush.bf16.msra.mxu0 %v4750
    %5520 = vmatpush.bf16.msra.mxu0 %v4746
    %5521 = vmatpush.bf16.msra.mxu0 %v4742
    %5522 = vmatmul.bf16.gmra.mxu0 %v2234
    %v5523 = vpop.f32.mrf.mxu0
    %v5524 = vadd.f32 %v5510, %v5523
    %v5525 = vpop.f32.mrf.mxu0
    %v5526 = vadd.f32 %v5512, %v5525
    %5527 = vdwg.mxu0
    %5528 = vmatpush.bf16.msra.mxu0 %v4802
    %5529 = vmatpush.bf16.msra.mxu0 %v4798
    %5530 = vmatpush.bf16.msra.mxu0 %v4794
    %5531 = vmatpush.bf16.msra.mxu0 %v4790
    %5532 = vmatpush.bf16.msra.mxu0 %v4786
    %5533 = vmatpush.bf16.msra.mxu0 %v4782
    %5534 = vmatpush.bf16.msra.mxu0 %v4778
    %5535 = vmatpush.bf16.msra.mxu0 %v4774
    %5536 = vmatmul.bf16.gmra.mxu0 %v2235
    %v5537 = vpop.f32.mrf.mxu0
    %v5538 = vadd.f32 %v5524, %v5537
    %v5539 = vpop.f32.mrf.mxu0
    %v5540 = vadd.f32 %v5526, %v5539
    %5541 = vdwg.mxu0
    %5542 = vmatpush.bf16.msra.mxu0 %v4323
    %5543 = vmatpush.bf16.msra.mxu0 %v4319
    %5544 = vmatpush.bf16.msra.mxu0 %v4315
    %5545 = vmatpush.bf16.msra.mxu0 %v4311
    %5546 = vmatpush.bf16.msra.mxu0 %v4307
    %5547 = vmatpush.bf16.msra.mxu0 %v4303
    %5548 = vmatpush.bf16.msra.mxu0 %v4299
    %5549 = vmatpush.bf16.msra.mxu0 %v4295
    %5550 = vmatmul.bf16.gmra.mxu0 %v2220
    %v5551 = vpop.f32.mrf.mxu0
    %v5552 = vadd.f32 %v2751, %v5551
    %v5553 = vpop.f32.mrf.mxu0
    %v5554 = vadd.f32 %v2751, %v5553
    %5555 = vdwg.mxu0
    %5556 = vmatpush.bf16.msra.mxu0 %v4355
    %5557 = vmatpush.bf16.msra.mxu0 %v4351
    %5558 = vmatpush.bf16.msra.mxu0 %v4347
    %5559 = vmatpush.bf16.msra.mxu0 %v4343
    %5560 = vmatpush.bf16.msra.mxu0 %v4339
    %5561 = vmatpush.bf16.msra.mxu0 %v4335
    %5562 = vmatpush.bf16.msra.mxu0 %v4331
    %5563 = vmatpush.bf16.msra.mxu0 %v4327
    %5564 = vmatmul.bf16.gmra.mxu0 %v2221
    %v5565 = vpop.f32.mrf.mxu0
    %v5566 = vadd.f32 %v5552, %v5565
    %v5567 = vpop.f32.mrf.mxu0
    %v5568 = vadd.f32 %v5554, %v5567
    %5569 = vdwg.mxu0
    %5570 = vmatpush.bf16.msra.mxu0 %v4387
    %5571 = vmatpush.bf16.msra.mxu0 %v4383
    %5572 = vmatpush.bf16.msra.mxu0 %v4379
    %5573 = vmatpush.bf16.msra.mxu0 %v4375
    %5574 = vmatpush.bf16.msra.mxu0 %v4371
    %5575 = vmatpush.bf16.msra.mxu0 %v4367
    %5576 = vmatpush.bf16.msra.mxu0 %v4363
    %5577 = vmatpush.bf16.msra.mxu0 %v4359
    %5578 = vmatmul.bf16.gmra.mxu0 %v2222
    %v5579 = vpop.f32.mrf.mxu0
    %v5580 = vadd.f32 %v5566, %v5579
    %v5581 = vpop.f32.mrf.mxu0
    %v5582 = vadd.f32 %v5568, %v5581
    %5583 = vdwg.mxu0
    %5584 = vmatpush.bf16.msra.mxu0 %v4419
    %5585 = vmatpush.bf16.msra.mxu0 %v4415
    %5586 = vmatpush.bf16.msra.mxu0 %v4411
    %5587 = vmatpush.bf16.msra.mxu0 %v4407
    %5588 = vmatpush.bf16.msra.mxu0 %v4403
    %5589 = vmatpush.bf16.msra.mxu0 %v4399
    %5590 = vmatpush.bf16.msra.mxu0 %v4395
    %5591 = vmatpush.bf16.msra.mxu0 %v4391
    %5592 = vmatmul.bf16.gmra.mxu0 %v2223
    %v5593 = vpop.f32.mrf.mxu0
    %v5594 = vadd.f32 %v5580, %v5593
    %v5595 = vpop.f32.mrf.mxu0
    %v5596 = vadd.f32 %v5582, %v5595
    %5597 = vdwg.mxu0
    %5598 = vmatpush.bf16.msra.mxu0 %v4451
    %5599 = vmatpush.bf16.msra.mxu0 %v4447
    %5600 = vmatpush.bf16.msra.mxu0 %v4443
    %5601 = vmatpush.bf16.msra.mxu0 %v4439
    %5602 = vmatpush.bf16.msra.mxu0 %v4435
    %5603 = vmatpush.bf16.msra.mxu0 %v4431
    %5604 = vmatpush.bf16.msra.mxu0 %v4427
    %5605 = vmatpush.bf16.msra.mxu0 %v4423
    %5606 = vmatmul.bf16.gmra.mxu0 %v2224
    %v5607 = vpop.f32.mrf.mxu0
    %v5608 = vadd.f32 %v5594, %v5607
    %v5609 = vpop.f32.mrf.mxu0
    %v5610 = vadd.f32 %v5596, %v5609
    %5611 = vdwg.mxu0
    %5612 = vmatpush.bf16.msra.mxu0 %v4483
    %5613 = vmatpush.bf16.msra.mxu0 %v4479
    %5614 = vmatpush.bf16.msra.mxu0 %v4475
    %5615 = vmatpush.bf16.msra.mxu0 %v4471
    %5616 = vmatpush.bf16.msra.mxu0 %v4467
    %5617 = vmatpush.bf16.msra.mxu0 %v4463
    %5618 = vmatpush.bf16.msra.mxu0 %v4459
    %5619 = vmatpush.bf16.msra.mxu0 %v4455
    %5620 = vmatmul.bf16.gmra.mxu0 %v2225
    %v5621 = vpop.f32.mrf.mxu0
    %v5622 = vadd.f32 %v5608, %v5621
    %v5623 = vpop.f32.mrf.mxu0
    %v5624 = vadd.f32 %v5610, %v5623
    %5625 = vdwg.mxu0
    %5626 = vmatpush.bf16.msra.mxu0 %v4515
    %5627 = vmatpush.bf16.msra.mxu0 %v4511
    %5628 = vmatpush.bf16.msra.mxu0 %v4507
    %5629 = vmatpush.bf16.msra.mxu0 %v4503
    %5630 = vmatpush.bf16.msra.mxu0 %v4499
    %5631 = vmatpush.bf16.msra.mxu0 %v4495
    %5632 = vmatpush.bf16.msra.mxu0 %v4491
    %5633 = vmatpush.bf16.msra.mxu0 %v4487
    %5634 = vmatmul.bf16.gmra.mxu0 %v2226
    %v5635 = vpop.f32.mrf.mxu0
    %v5636 = vadd.f32 %v5622, %v5635
    %v5637 = vpop.f32.mrf.mxu0
    %v5638 = vadd.f32 %v5624, %v5637
    %5639 = vdwg.mxu0
    %5640 = vmatpush.bf16.msra.mxu0 %v4547
    %5641 = vmatpush.bf16.msra.mxu0 %v4543
    %5642 = vmatpush.bf16.msra.mxu0 %v4539
    %5643 = vmatpush.bf16.msra.mxu0 %v4535
    %5644 = vmatpush.bf16.msra.mxu0 %v4531
    %5645 = vmatpush.bf16.msra.mxu0 %v4527
    %5646 = vmatpush.bf16.msra.mxu0 %v4523
    %5647 = vmatpush.bf16.msra.mxu0 %v4519
    %5648 = vmatmul.bf16.gmra.mxu0 %v2227
    %v5649 = vpop.f32.mrf.mxu0
    %v5650 = vadd.f32 %v5636, %v5649
    %v5651 = vpop.f32.mrf.mxu0
    %v5652 = vadd.f32 %v5638, %v5651
    %5653 = vdwg.mxu0
    %5654 = vmatpush.bf16.msra.mxu0 %v4579
    %5655 = vmatpush.bf16.msra.mxu0 %v4575
    %5656 = vmatpush.bf16.msra.mxu0 %v4571
    %5657 = vmatpush.bf16.msra.mxu0 %v4567
    %5658 = vmatpush.bf16.msra.mxu0 %v4563
    %5659 = vmatpush.bf16.msra.mxu0 %v4559
    %5660 = vmatpush.bf16.msra.mxu0 %v4555
    %5661 = vmatpush.bf16.msra.mxu0 %v4551
    %5662 = vmatmul.bf16.gmra.mxu0 %v2228
    %v5663 = vpop.f32.mrf.mxu0
    %v5664 = vadd.f32 %v5650, %v5663
    %v5665 = vpop.f32.mrf.mxu0
    %v5666 = vadd.f32 %v5652, %v5665
    %5667 = vdwg.mxu0
    %5668 = vmatpush.bf16.msra.mxu0 %v4611
    %5669 = vmatpush.bf16.msra.mxu0 %v4607
    %5670 = vmatpush.bf16.msra.mxu0 %v4603
    %5671 = vmatpush.bf16.msra.mxu0 %v4599
    %5672 = vmatpush.bf16.msra.mxu0 %v4595
    %5673 = vmatpush.bf16.msra.mxu0 %v4591
    %5674 = vmatpush.bf16.msra.mxu0 %v4587
    %5675 = vmatpush.bf16.msra.mxu0 %v4583
    %5676 = vmatmul.bf16.gmra.mxu0 %v2229
    %v5677 = vpop.f32.mrf.mxu0
    %v5678 = vadd.f32 %v5664, %v5677
    %v5679 = vpop.f32.mrf.mxu0
    %v5680 = vadd.f32 %v5666, %v5679
    %5681 = vdwg.mxu0
    %5682 = vmatpush.bf16.msra.mxu0 %v4643
    %5683 = vmatpush.bf16.msra.mxu0 %v4639
    %5684 = vmatpush.bf16.msra.mxu0 %v4635
    %5685 = vmatpush.bf16.msra.mxu0 %v4631
    %5686 = vmatpush.bf16.msra.mxu0 %v4627
    %5687 = vmatpush.bf16.msra.mxu0 %v4623
    %5688 = vmatpush.bf16.msra.mxu0 %v4619
    %5689 = vmatpush.bf16.msra.mxu0 %v4615
    %5690 = vmatmul.bf16.gmra.mxu0 %v2230
    %v5691 = vpop.f32.mrf.mxu0
    %v5692 = vadd.f32 %v5678, %v5691
    %v5693 = vpop.f32.mrf.mxu0
    %v5694 = vadd.f32 %v5680, %v5693
    %5695 = vdwg.mxu0
    %5696 = vmatpush.bf16.msra.mxu0 %v4675
    %5697 = vmatpush.bf16.msra.mxu0 %v4671
    %5698 = vmatpush.bf16.msra.mxu0 %v4667
    %5699 = vmatpush.bf16.msra.mxu0 %v4663
    %5700 = vmatpush.bf16.msra.mxu0 %v4659
    %5701 = vmatpush.bf16.msra.mxu0 %v4655
    %5702 = vmatpush.bf16.msra.mxu0 %v4651
    %5703 = vmatpush.bf16.msra.mxu0 %v4647
    %5704 = vmatmul.bf16.gmra.mxu0 %v2231
    %v5705 = vpop.f32.mrf.mxu0
    %v5706 = vadd.f32 %v5692, %v5705
    %v5707 = vpop.f32.mrf.mxu0
    %v5708 = vadd.f32 %v5694, %v5707
    %5709 = vdwg.mxu0
    %5710 = vmatpush.bf16.msra.mxu0 %v4707
    %5711 = vmatpush.bf16.msra.mxu0 %v4703
    %5712 = vmatpush.bf16.msra.mxu0 %v4699
    %5713 = vmatpush.bf16.msra.mxu0 %v4695
    %5714 = vmatpush.bf16.msra.mxu0 %v4691
    %5715 = vmatpush.bf16.msra.mxu0 %v4687
    %5716 = vmatpush.bf16.msra.mxu0 %v4683
    %5717 = vmatpush.bf16.msra.mxu0 %v4679
    %5718 = vmatmul.bf16.gmra.mxu0 %v2232
    %v5719 = vpop.f32.mrf.mxu0
    %v5720 = vadd.f32 %v5706, %v5719
    %v5721 = vpop.f32.mrf.mxu0
    %v5722 = vadd.f32 %v5708, %v5721
    %5723 = vdwg.mxu0
    %5724 = vmatpush.bf16.msra.mxu0 %v4739
    %5725 = vmatpush.bf16.msra.mxu0 %v4735
    %5726 = vmatpush.bf16.msra.mxu0 %v4731
    %5727 = vmatpush.bf16.msra.mxu0 %v4727
    %5728 = vmatpush.bf16.msra.mxu0 %v4723
    %5729 = vmatpush.bf16.msra.mxu0 %v4719
    %5730 = vmatpush.bf16.msra.mxu0 %v4715
    %5731 = vmatpush.bf16.msra.mxu0 %v4711
    %5732 = vmatmul.bf16.gmra.mxu0 %v2233
    %v5733 = vpop.f32.mrf.mxu0
    %v5734 = vadd.f32 %v5720, %v5733
    %v5735 = vpop.f32.mrf.mxu0
    %v5736 = vadd.f32 %v5722, %v5735
    %5737 = vdwg.mxu0
    %5738 = vmatpush.bf16.msra.mxu0 %v4771
    %5739 = vmatpush.bf16.msra.mxu0 %v4767
    %5740 = vmatpush.bf16.msra.mxu0 %v4763
    %5741 = vmatpush.bf16.msra.mxu0 %v4759
    %5742 = vmatpush.bf16.msra.mxu0 %v4755
    %5743 = vmatpush.bf16.msra.mxu0 %v4751
    %5744 = vmatpush.bf16.msra.mxu0 %v4747
    %5745 = vmatpush.bf16.msra.mxu0 %v4743
    %5746 = vmatmul.bf16.gmra.mxu0 %v2234
    %v5747 = vpop.f32.mrf.mxu0
    %v5748 = vadd.f32 %v5734, %v5747
    %v5749 = vpop.f32.mrf.mxu0
    %v5750 = vadd.f32 %v5736, %v5749
    %5751 = vdwg.mxu0
    %5752 = vmatpush.bf16.msra.mxu0 %v4803
    %5753 = vmatpush.bf16.msra.mxu0 %v4799
    %5754 = vmatpush.bf16.msra.mxu0 %v4795
    %5755 = vmatpush.bf16.msra.mxu0 %v4791
    %5756 = vmatpush.bf16.msra.mxu0 %v4787
    %5757 = vmatpush.bf16.msra.mxu0 %v4783
    %5758 = vmatpush.bf16.msra.mxu0 %v4779
    %5759 = vmatpush.bf16.msra.mxu0 %v4775
    %5760 = vmatmul.bf16.gmra.mxu0 %v2235
    %v5761 = vpop.f32.mrf.mxu0
    %v5762 = vadd.f32 %v5748, %v5761
    %v5763 = vpop.f32.mrf.mxu0
    %v5764 = vadd.f32 %v5750, %v5763
    %5765 = vdwg.mxu0
    %5766 = vmatpush.bf16.msra.mxu0 %v4324
    %5767 = vmatpush.bf16.msra.mxu0 %v4320
    %5768 = vmatpush.bf16.msra.mxu0 %v4316
    %5769 = vmatpush.bf16.msra.mxu0 %v4312
    %5770 = vmatpush.bf16.msra.mxu0 %v4308
    %5771 = vmatpush.bf16.msra.mxu0 %v4304
    %5772 = vmatpush.bf16.msra.mxu0 %v4300
    %5773 = vmatpush.bf16.msra.mxu0 %v4296
    %5774 = vmatmul.bf16.gmra.mxu0 %v2220
    %v5775 = vpop.f32.mrf.mxu0
    %v5776 = vadd.f32 %v2752, %v5775
    %v5777 = vpop.f32.mrf.mxu0
    %v5778 = vadd.f32 %v2752, %v5777
    %5779 = vdwg.mxu0
    %5780 = vmatpush.bf16.msra.mxu0 %v4356
    %5781 = vmatpush.bf16.msra.mxu0 %v4352
    %5782 = vmatpush.bf16.msra.mxu0 %v4348
    %5783 = vmatpush.bf16.msra.mxu0 %v4344
    %5784 = vmatpush.bf16.msra.mxu0 %v4340
    %5785 = vmatpush.bf16.msra.mxu0 %v4336
    %5786 = vmatpush.bf16.msra.mxu0 %v4332
    %5787 = vmatpush.bf16.msra.mxu0 %v4328
    %5788 = vmatmul.bf16.gmra.mxu0 %v2221
    %v5789 = vpop.f32.mrf.mxu0
    %v5790 = vadd.f32 %v5776, %v5789
    %v5791 = vpop.f32.mrf.mxu0
    %v5792 = vadd.f32 %v5778, %v5791
    %5793 = vdwg.mxu0
    %5794 = vmatpush.bf16.msra.mxu0 %v4388
    %5795 = vmatpush.bf16.msra.mxu0 %v4384
    %5796 = vmatpush.bf16.msra.mxu0 %v4380
    %5797 = vmatpush.bf16.msra.mxu0 %v4376
    %5798 = vmatpush.bf16.msra.mxu0 %v4372
    %5799 = vmatpush.bf16.msra.mxu0 %v4368
    %5800 = vmatpush.bf16.msra.mxu0 %v4364
    %5801 = vmatpush.bf16.msra.mxu0 %v4360
    %5802 = vmatmul.bf16.gmra.mxu0 %v2222
    %v5803 = vpop.f32.mrf.mxu0
    %v5804 = vadd.f32 %v5790, %v5803
    %v5805 = vpop.f32.mrf.mxu0
    %v5806 = vadd.f32 %v5792, %v5805
    %5807 = vdwg.mxu0
    %5808 = vmatpush.bf16.msra.mxu0 %v4420
    %5809 = vmatpush.bf16.msra.mxu0 %v4416
    %5810 = vmatpush.bf16.msra.mxu0 %v4412
    %5811 = vmatpush.bf16.msra.mxu0 %v4408
    %5812 = vmatpush.bf16.msra.mxu0 %v4404
    %5813 = vmatpush.bf16.msra.mxu0 %v4400
    %5814 = vmatpush.bf16.msra.mxu0 %v4396
    %5815 = vmatpush.bf16.msra.mxu0 %v4392
    %5816 = vmatmul.bf16.gmra.mxu0 %v2223
    %v5817 = vpop.f32.mrf.mxu0
    %v5818 = vadd.f32 %v5804, %v5817
    %v5819 = vpop.f32.mrf.mxu0
    %v5820 = vadd.f32 %v5806, %v5819
    %5821 = vdwg.mxu0
    %5822 = vmatpush.bf16.msra.mxu0 %v4452
    %5823 = vmatpush.bf16.msra.mxu0 %v4448
    %5824 = vmatpush.bf16.msra.mxu0 %v4444
    %5825 = vmatpush.bf16.msra.mxu0 %v4440
    %5826 = vmatpush.bf16.msra.mxu0 %v4436
    %5827 = vmatpush.bf16.msra.mxu0 %v4432
    %5828 = vmatpush.bf16.msra.mxu0 %v4428
    %5829 = vmatpush.bf16.msra.mxu0 %v4424
    %5830 = vmatmul.bf16.gmra.mxu0 %v2224
    %v5831 = vpop.f32.mrf.mxu0
    %v5832 = vadd.f32 %v5818, %v5831
    %v5833 = vpop.f32.mrf.mxu0
    %v5834 = vadd.f32 %v5820, %v5833
    %5835 = vdwg.mxu0
    %5836 = vmatpush.bf16.msra.mxu0 %v4484
    %5837 = vmatpush.bf16.msra.mxu0 %v4480
    %5838 = vmatpush.bf16.msra.mxu0 %v4476
    %5839 = vmatpush.bf16.msra.mxu0 %v4472
    %5840 = vmatpush.bf16.msra.mxu0 %v4468
    %5841 = vmatpush.bf16.msra.mxu0 %v4464
    %5842 = vmatpush.bf16.msra.mxu0 %v4460
    %5843 = vmatpush.bf16.msra.mxu0 %v4456
    %5844 = vmatmul.bf16.gmra.mxu0 %v2225
    %v5845 = vpop.f32.mrf.mxu0
    %v5846 = vadd.f32 %v5832, %v5845
    %v5847 = vpop.f32.mrf.mxu0
    %v5848 = vadd.f32 %v5834, %v5847
    %5849 = vdwg.mxu0
    %5850 = vmatpush.bf16.msra.mxu0 %v4516
    %5851 = vmatpush.bf16.msra.mxu0 %v4512
    %5852 = vmatpush.bf16.msra.mxu0 %v4508
    %5853 = vmatpush.bf16.msra.mxu0 %v4504
    %5854 = vmatpush.bf16.msra.mxu0 %v4500
    %5855 = vmatpush.bf16.msra.mxu0 %v4496
    %5856 = vmatpush.bf16.msra.mxu0 %v4492
    %5857 = vmatpush.bf16.msra.mxu0 %v4488
    %5858 = vmatmul.bf16.gmra.mxu0 %v2226
    %v5859 = vpop.f32.mrf.mxu0
    %v5860 = vadd.f32 %v5846, %v5859
    %v5861 = vpop.f32.mrf.mxu0
    %v5862 = vadd.f32 %v5848, %v5861
    %5863 = vdwg.mxu0
    %5864 = vmatpush.bf16.msra.mxu0 %v4548
    %5865 = vmatpush.bf16.msra.mxu0 %v4544
    %5866 = vmatpush.bf16.msra.mxu0 %v4540
    %5867 = vmatpush.bf16.msra.mxu0 %v4536
    %5868 = vmatpush.bf16.msra.mxu0 %v4532
    %5869 = vmatpush.bf16.msra.mxu0 %v4528
    %5870 = vmatpush.bf16.msra.mxu0 %v4524
    %5871 = vmatpush.bf16.msra.mxu0 %v4520
    %5872 = vmatmul.bf16.gmra.mxu0 %v2227
    %v5873 = vpop.f32.mrf.mxu0
    %v5874 = vadd.f32 %v5860, %v5873
    %v5875 = vpop.f32.mrf.mxu0
    %v5876 = vadd.f32 %v5862, %v5875
    %5877 = vdwg.mxu0
    %5878 = vmatpush.bf16.msra.mxu0 %v4580
    %5879 = vmatpush.bf16.msra.mxu0 %v4576
    %5880 = vmatpush.bf16.msra.mxu0 %v4572
    %5881 = vmatpush.bf16.msra.mxu0 %v4568
    %5882 = vmatpush.bf16.msra.mxu0 %v4564
    %5883 = vmatpush.bf16.msra.mxu0 %v4560
    %5884 = vmatpush.bf16.msra.mxu0 %v4556
    %5885 = vmatpush.bf16.msra.mxu0 %v4552
    %5886 = vmatmul.bf16.gmra.mxu0 %v2228
    %v5887 = vpop.f32.mrf.mxu0
    %v5888 = vadd.f32 %v5874, %v5887
    %v5889 = vpop.f32.mrf.mxu0
    %v5890 = vadd.f32 %v5876, %v5889
    %5891 = vdwg.mxu0
    %5892 = vmatpush.bf16.msra.mxu0 %v4612
    %5893 = vmatpush.bf16.msra.mxu0 %v4608
    %5894 = vmatpush.bf16.msra.mxu0 %v4604
    %5895 = vmatpush.bf16.msra.mxu0 %v4600
    %5896 = vmatpush.bf16.msra.mxu0 %v4596
    %5897 = vmatpush.bf16.msra.mxu0 %v4592
    %5898 = vmatpush.bf16.msra.mxu0 %v4588
    %5899 = vmatpush.bf16.msra.mxu0 %v4584
    %5900 = vmatmul.bf16.gmra.mxu0 %v2229
    %v5901 = vpop.f32.mrf.mxu0
    %v5902 = vadd.f32 %v5888, %v5901
    %v5903 = vpop.f32.mrf.mxu0
    %v5904 = vadd.f32 %v5890, %v5903
    %5905 = vdwg.mxu0
    %5906 = vmatpush.bf16.msra.mxu0 %v4644
    %5907 = vmatpush.bf16.msra.mxu0 %v4640
    %5908 = vmatpush.bf16.msra.mxu0 %v4636
    %5909 = vmatpush.bf16.msra.mxu0 %v4632
    %5910 = vmatpush.bf16.msra.mxu0 %v4628
    %5911 = vmatpush.bf16.msra.mxu0 %v4624
    %5912 = vmatpush.bf16.msra.mxu0 %v4620
    %5913 = vmatpush.bf16.msra.mxu0 %v4616
    %5914 = vmatmul.bf16.gmra.mxu0 %v2230
    %v5915 = vpop.f32.mrf.mxu0
    %v5916 = vadd.f32 %v5902, %v5915
    %v5917 = vpop.f32.mrf.mxu0
    %v5918 = vadd.f32 %v5904, %v5917
    %5919 = vdwg.mxu0
    %5920 = vmatpush.bf16.msra.mxu0 %v4676
    %5921 = vmatpush.bf16.msra.mxu0 %v4672
    %5922 = vmatpush.bf16.msra.mxu0 %v4668
    %5923 = vmatpush.bf16.msra.mxu0 %v4664
    %5924 = vmatpush.bf16.msra.mxu0 %v4660
    %5925 = vmatpush.bf16.msra.mxu0 %v4656
    %5926 = vmatpush.bf16.msra.mxu0 %v4652
    %5927 = vmatpush.bf16.msra.mxu0 %v4648
    %5928 = vmatmul.bf16.gmra.mxu0 %v2231
    %v5929 = vpop.f32.mrf.mxu0
    %v5930 = vadd.f32 %v5916, %v5929
    %v5931 = vpop.f32.mrf.mxu0
    %v5932 = vadd.f32 %v5918, %v5931
    %5933 = vdwg.mxu0
    %5934 = vmatpush.bf16.msra.mxu0 %v4708
    %5935 = vmatpush.bf16.msra.mxu0 %v4704
    %5936 = vmatpush.bf16.msra.mxu0 %v4700
    %5937 = vmatpush.bf16.msra.mxu0 %v4696
    %5938 = vmatpush.bf16.msra.mxu0 %v4692
    %5939 = vmatpush.bf16.msra.mxu0 %v4688
    %5940 = vmatpush.bf16.msra.mxu0 %v4684
    %5941 = vmatpush.bf16.msra.mxu0 %v4680
    %5942 = vmatmul.bf16.gmra.mxu0 %v2232
    %v5943 = vpop.f32.mrf.mxu0
    %v5944 = vadd.f32 %v5930, %v5943
    %v5945 = vpop.f32.mrf.mxu0
    %v5946 = vadd.f32 %v5932, %v5945
    %5947 = vdwg.mxu0
    %5948 = vmatpush.bf16.msra.mxu0 %v4740
    %5949 = vmatpush.bf16.msra.mxu0 %v4736
    %5950 = vmatpush.bf16.msra.mxu0 %v4732
    %5951 = vmatpush.bf16.msra.mxu0 %v4728
    %5952 = vmatpush.bf16.msra.mxu0 %v4724
    %5953 = vmatpush.bf16.msra.mxu0 %v4720
    %5954 = vmatpush.bf16.msra.mxu0 %v4716
    %5955 = vmatpush.bf16.msra.mxu0 %v4712
    %5956 = vmatmul.bf16.gmra.mxu0 %v2233
    %v5957 = vpop.f32.mrf.mxu0
    %v5958 = vadd.f32 %v5944, %v5957
    %v5959 = vpop.f32.mrf.mxu0
    %v5960 = vadd.f32 %v5946, %v5959
    %5961 = vdwg.mxu0
    %5962 = vmatpush.bf16.msra.mxu0 %v4772
    %5963 = vmatpush.bf16.msra.mxu0 %v4768
    %5964 = vmatpush.bf16.msra.mxu0 %v4764
    %5965 = vmatpush.bf16.msra.mxu0 %v4760
    %5966 = vmatpush.bf16.msra.mxu0 %v4756
    %5967 = vmatpush.bf16.msra.mxu0 %v4752
    %5968 = vmatpush.bf16.msra.mxu0 %v4748
    %5969 = vmatpush.bf16.msra.mxu0 %v4744
    %5970 = vmatmul.bf16.gmra.mxu0 %v2234
    %v5971 = vpop.f32.mrf.mxu0
    %v5972 = vadd.f32 %v5958, %v5971
    %v5973 = vpop.f32.mrf.mxu0
    %v5974 = vadd.f32 %v5960, %v5973
    %5975 = vdwg.mxu0
    %5976 = vmatpush.bf16.msra.mxu0 %v4804
    %5977 = vmatpush.bf16.msra.mxu0 %v4800
    %5978 = vmatpush.bf16.msra.mxu0 %v4796
    %5979 = vmatpush.bf16.msra.mxu0 %v4792
    %5980 = vmatpush.bf16.msra.mxu0 %v4788
    %5981 = vmatpush.bf16.msra.mxu0 %v4784
    %5982 = vmatpush.bf16.msra.mxu0 %v4780
    %5983 = vmatpush.bf16.msra.mxu0 %v4776
    %5984 = vmatmul.bf16.gmra.mxu0 %v2235
    %v5985 = vpop.f32.mrf.mxu0
    %v5986 = vadd.f32 %v5972, %v5985
    %v5987 = vpop.f32.mrf.mxu0
    %v5988 = vadd.f32 %v5974, %v5987
    %5989 = vdwg.mxu0
    %5990 = vmatpush.bf16.msra.mxu0 %v4325
    %5991 = vmatpush.bf16.msra.mxu0 %v4321
    %5992 = vmatpush.bf16.msra.mxu0 %v4317
    %5993 = vmatpush.bf16.msra.mxu0 %v4313
    %5994 = vmatpush.bf16.msra.mxu0 %v4309
    %5995 = vmatpush.bf16.msra.mxu0 %v4305
    %5996 = vmatpush.bf16.msra.mxu0 %v4301
    %5997 = vmatpush.bf16.msra.mxu0 %v4297
    %5998 = vmatmul.bf16.gmra.mxu0 %v2220
    %v5999 = vpop.f32.mrf.mxu0
    %v6000 = vadd.f32 %v2753, %v5999
    %v6001 = vpop.f32.mrf.mxu0
    %v6002 = vadd.f32 %v2753, %v6001
    %6003 = vdwg.mxu0
    %6004 = vmatpush.bf16.msra.mxu0 %v4357
    %6005 = vmatpush.bf16.msra.mxu0 %v4353
    %6006 = vmatpush.bf16.msra.mxu0 %v4349
    %6007 = vmatpush.bf16.msra.mxu0 %v4345
    %6008 = vmatpush.bf16.msra.mxu0 %v4341
    %6009 = vmatpush.bf16.msra.mxu0 %v4337
    %6010 = vmatpush.bf16.msra.mxu0 %v4333
    %6011 = vmatpush.bf16.msra.mxu0 %v4329
    %6012 = vmatmul.bf16.gmra.mxu0 %v2221
    %v6013 = vpop.f32.mrf.mxu0
    %v6014 = vadd.f32 %v6000, %v6013
    %v6015 = vpop.f32.mrf.mxu0
    %v6016 = vadd.f32 %v6002, %v6015
    %6017 = vdwg.mxu0
    %6018 = vmatpush.bf16.msra.mxu0 %v4389
    %6019 = vmatpush.bf16.msra.mxu0 %v4385
    %6020 = vmatpush.bf16.msra.mxu0 %v4381
    %6021 = vmatpush.bf16.msra.mxu0 %v4377
    %6022 = vmatpush.bf16.msra.mxu0 %v4373
    %6023 = vmatpush.bf16.msra.mxu0 %v4369
    %6024 = vmatpush.bf16.msra.mxu0 %v4365
    %6025 = vmatpush.bf16.msra.mxu0 %v4361
    %6026 = vmatmul.bf16.gmra.mxu0 %v2222
    %v6027 = vpop.f32.mrf.mxu0
    %v6028 = vadd.f32 %v6014, %v6027
    %v6029 = vpop.f32.mrf.mxu0
    %v6030 = vadd.f32 %v6016, %v6029
    %6031 = vdwg.mxu0
    %6032 = vmatpush.bf16.msra.mxu0 %v4421
    %6033 = vmatpush.bf16.msra.mxu0 %v4417
    %6034 = vmatpush.bf16.msra.mxu0 %v4413
    %6035 = vmatpush.bf16.msra.mxu0 %v4409
    %6036 = vmatpush.bf16.msra.mxu0 %v4405
    %6037 = vmatpush.bf16.msra.mxu0 %v4401
    %6038 = vmatpush.bf16.msra.mxu0 %v4397
    %6039 = vmatpush.bf16.msra.mxu0 %v4393
    %6040 = vmatmul.bf16.gmra.mxu0 %v2223
    %v6041 = vpop.f32.mrf.mxu0
    %v6042 = vadd.f32 %v6028, %v6041
    %v6043 = vpop.f32.mrf.mxu0
    %v6044 = vadd.f32 %v6030, %v6043
    %6045 = vdwg.mxu0
    %6046 = vmatpush.bf16.msra.mxu0 %v4453
    %6047 = vmatpush.bf16.msra.mxu0 %v4449
    %6048 = vmatpush.bf16.msra.mxu0 %v4445
    %6049 = vmatpush.bf16.msra.mxu0 %v4441
    %6050 = vmatpush.bf16.msra.mxu0 %v4437
    %6051 = vmatpush.bf16.msra.mxu0 %v4433
    %6052 = vmatpush.bf16.msra.mxu0 %v4429
    %6053 = vmatpush.bf16.msra.mxu0 %v4425
    %6054 = vmatmul.bf16.gmra.mxu0 %v2224
    %v6055 = vpop.f32.mrf.mxu0
    %v6056 = vadd.f32 %v6042, %v6055
    %v6057 = vpop.f32.mrf.mxu0
    %v6058 = vadd.f32 %v6044, %v6057
    %6059 = vdwg.mxu0
    %6060 = vmatpush.bf16.msra.mxu0 %v4485
    %6061 = vmatpush.bf16.msra.mxu0 %v4481
    %6062 = vmatpush.bf16.msra.mxu0 %v4477
    %6063 = vmatpush.bf16.msra.mxu0 %v4473
    %6064 = vmatpush.bf16.msra.mxu0 %v4469
    %6065 = vmatpush.bf16.msra.mxu0 %v4465
    %6066 = vmatpush.bf16.msra.mxu0 %v4461
    %6067 = vmatpush.bf16.msra.mxu0 %v4457
    %6068 = vmatmul.bf16.gmra.mxu0 %v2225
    %v6069 = vpop.f32.mrf.mxu0
    %v6070 = vadd.f32 %v6056, %v6069
    %v6071 = vpop.f32.mrf.mxu0
    %v6072 = vadd.f32 %v6058, %v6071
    %6073 = vdwg.mxu0
    %6074 = vmatpush.bf16.msra.mxu0 %v4517
    %6075 = vmatpush.bf16.msra.mxu0 %v4513
    %6076 = vmatpush.bf16.msra.mxu0 %v4509
    %6077 = vmatpush.bf16.msra.mxu0 %v4505
    %6078 = vmatpush.bf16.msra.mxu0 %v4501
    %6079 = vmatpush.bf16.msra.mxu0 %v4497
    %6080 = vmatpush.bf16.msra.mxu0 %v4493
    %6081 = vmatpush.bf16.msra.mxu0 %v4489
    %6082 = vmatmul.bf16.gmra.mxu0 %v2226
    %v6083 = vpop.f32.mrf.mxu0
    %v6084 = vadd.f32 %v6070, %v6083
    %v6085 = vpop.f32.mrf.mxu0
    %v6086 = vadd.f32 %v6072, %v6085
    %6087 = vdwg.mxu0
    %6088 = vmatpush.bf16.msra.mxu0 %v4549
    %6089 = vmatpush.bf16.msra.mxu0 %v4545
    %6090 = vmatpush.bf16.msra.mxu0 %v4541
    %6091 = vmatpush.bf16.msra.mxu0 %v4537
    %6092 = vmatpush.bf16.msra.mxu0 %v4533
    %6093 = vmatpush.bf16.msra.mxu0 %v4529
    %6094 = vmatpush.bf16.msra.mxu0 %v4525
    %6095 = vmatpush.bf16.msra.mxu0 %v4521
    %6096 = vmatmul.bf16.gmra.mxu0 %v2227
    %v6097 = vpop.f32.mrf.mxu0
    %v6098 = vadd.f32 %v6084, %v6097
    %v6099 = vpop.f32.mrf.mxu0
    %v6100 = vadd.f32 %v6086, %v6099
    %6101 = vdwg.mxu0
    %6102 = vmatpush.bf16.msra.mxu0 %v4581
    %6103 = vmatpush.bf16.msra.mxu0 %v4577
    %6104 = vmatpush.bf16.msra.mxu0 %v4573
    %6105 = vmatpush.bf16.msra.mxu0 %v4569
    %6106 = vmatpush.bf16.msra.mxu0 %v4565
    %6107 = vmatpush.bf16.msra.mxu0 %v4561
    %6108 = vmatpush.bf16.msra.mxu0 %v4557
    %6109 = vmatpush.bf16.msra.mxu0 %v4553
    %6110 = vmatmul.bf16.gmra.mxu0 %v2228
    %v6111 = vpop.f32.mrf.mxu0
    %v6112 = vadd.f32 %v6098, %v6111
    %v6113 = vpop.f32.mrf.mxu0
    %v6114 = vadd.f32 %v6100, %v6113
    %6115 = vdwg.mxu0
    %6116 = vmatpush.bf16.msra.mxu0 %v4613
    %6117 = vmatpush.bf16.msra.mxu0 %v4609
    %6118 = vmatpush.bf16.msra.mxu0 %v4605
    %6119 = vmatpush.bf16.msra.mxu0 %v4601
    %6120 = vmatpush.bf16.msra.mxu0 %v4597
    %6121 = vmatpush.bf16.msra.mxu0 %v4593
    %6122 = vmatpush.bf16.msra.mxu0 %v4589
    %6123 = vmatpush.bf16.msra.mxu0 %v4585
    %6124 = vmatmul.bf16.gmra.mxu0 %v2229
    %v6125 = vpop.f32.mrf.mxu0
    %v6126 = vadd.f32 %v6112, %v6125
    %v6127 = vpop.f32.mrf.mxu0
    %v6128 = vadd.f32 %v6114, %v6127
    %6129 = vdwg.mxu0
    %6130 = vmatpush.bf16.msra.mxu0 %v4645
    %6131 = vmatpush.bf16.msra.mxu0 %v4641
    %6132 = vmatpush.bf16.msra.mxu0 %v4637
    %6133 = vmatpush.bf16.msra.mxu0 %v4633
    %6134 = vmatpush.bf16.msra.mxu0 %v4629
    %6135 = vmatpush.bf16.msra.mxu0 %v4625
    %6136 = vmatpush.bf16.msra.mxu0 %v4621
    %6137 = vmatpush.bf16.msra.mxu0 %v4617
    %6138 = vmatmul.bf16.gmra.mxu0 %v2230
    %v6139 = vpop.f32.mrf.mxu0
    %v6140 = vadd.f32 %v6126, %v6139
    %v6141 = vpop.f32.mrf.mxu0
    %v6142 = vadd.f32 %v6128, %v6141
    %6143 = vdwg.mxu0
    %6144 = vmatpush.bf16.msra.mxu0 %v4677
    %6145 = vmatpush.bf16.msra.mxu0 %v4673
    %6146 = vmatpush.bf16.msra.mxu0 %v4669
    %6147 = vmatpush.bf16.msra.mxu0 %v4665
    %6148 = vmatpush.bf16.msra.mxu0 %v4661
    %6149 = vmatpush.bf16.msra.mxu0 %v4657
    %6150 = vmatpush.bf16.msra.mxu0 %v4653
    %6151 = vmatpush.bf16.msra.mxu0 %v4649
    %6152 = vmatmul.bf16.gmra.mxu0 %v2231
    %v6153 = vpop.f32.mrf.mxu0
    %v6154 = vadd.f32 %v6140, %v6153
    %v6155 = vpop.f32.mrf.mxu0
    %v6156 = vadd.f32 %v6142, %v6155
    %6157 = vdwg.mxu0
    %6158 = vmatpush.bf16.msra.mxu0 %v4709
    %6159 = vmatpush.bf16.msra.mxu0 %v4705
    %6160 = vmatpush.bf16.msra.mxu0 %v4701
    %6161 = vmatpush.bf16.msra.mxu0 %v4697
    %6162 = vmatpush.bf16.msra.mxu0 %v4693
    %6163 = vmatpush.bf16.msra.mxu0 %v4689
    %6164 = vmatpush.bf16.msra.mxu0 %v4685
    %6165 = vmatpush.bf16.msra.mxu0 %v4681
    %6166 = vmatmul.bf16.gmra.mxu0 %v2232
    %v6167 = vpop.f32.mrf.mxu0
    %v6168 = vadd.f32 %v6154, %v6167
    %v6169 = vpop.f32.mrf.mxu0
    %v6170 = vadd.f32 %v6156, %v6169
    %6171 = vdwg.mxu0
    %6172 = vmatpush.bf16.msra.mxu0 %v4741
    %6173 = vmatpush.bf16.msra.mxu0 %v4737
    %6174 = vmatpush.bf16.msra.mxu0 %v4733
    %6175 = vmatpush.bf16.msra.mxu0 %v4729
    %6176 = vmatpush.bf16.msra.mxu0 %v4725
    %6177 = vmatpush.bf16.msra.mxu0 %v4721
    %6178 = vmatpush.bf16.msra.mxu0 %v4717
    %6179 = vmatpush.bf16.msra.mxu0 %v4713
    %6180 = vmatmul.bf16.gmra.mxu0 %v2233
    %v6181 = vpop.f32.mrf.mxu0
    %v6182 = vadd.f32 %v6168, %v6181
    %v6183 = vpop.f32.mrf.mxu0
    %v6184 = vadd.f32 %v6170, %v6183
    %6185 = vdwg.mxu0
    %6186 = vmatpush.bf16.msra.mxu0 %v4773
    %6187 = vmatpush.bf16.msra.mxu0 %v4769
    %6188 = vmatpush.bf16.msra.mxu0 %v4765
    %6189 = vmatpush.bf16.msra.mxu0 %v4761
    %6190 = vmatpush.bf16.msra.mxu0 %v4757
    %6191 = vmatpush.bf16.msra.mxu0 %v4753
    %6192 = vmatpush.bf16.msra.mxu0 %v4749
    %6193 = vmatpush.bf16.msra.mxu0 %v4745
    %6194 = vmatmul.bf16.gmra.mxu0 %v2234
    %v6195 = vpop.f32.mrf.mxu0
    %v6196 = vadd.f32 %v6182, %v6195
    %v6197 = vpop.f32.mrf.mxu0
    %v6198 = vadd.f32 %v6184, %v6197
    %6199 = vdwg.mxu0
    %6200 = vmatpush.bf16.msra.mxu0 %v4805
    %6201 = vmatpush.bf16.msra.mxu0 %v4801
    %6202 = vmatpush.bf16.msra.mxu0 %v4797
    %6203 = vmatpush.bf16.msra.mxu0 %v4793
    %6204 = vmatpush.bf16.msra.mxu0 %v4789
    %6205 = vmatpush.bf16.msra.mxu0 %v4785
    %6206 = vmatpush.bf16.msra.mxu0 %v4781
    %6207 = vmatpush.bf16.msra.mxu0 %v4777
    %6208 = vmatmul.bf16.gmra.mxu0 %v2235
    %v6209 = vpop.f32.mrf.mxu0
    %v6210 = vadd.f32 %v6196, %v6209
    %v6211 = vpop.f32.mrf.mxu0
    %v6212 = vadd.f32 %v6198, %v6211
    %6213 = vdwg.mxu0
    %v6214 = vmax.f32 %v5538, 0.0
    %v6215 = vmax.f32 %v5762, 0.0
    %v6216 = vmax.f32 %v5986, 0.0
    %v6217 = vmax.f32 %v6210, 0.0
    %v6218 = vmax.f32 %v5540, 0.0
    %v6219 = vmax.f32 %v5764, 0.0
    %v6220 = vmax.f32 %v5988, 0.0
    %v6221 = vmax.f32 %v6212, 0.0
    %v6222 = vld [vmem:[%s5] sm:$0xf]
    %v6223 = vld [vmem:[%s6] sm:$0xf]
    %v6224 = vmul.f32 %v6214, %v2218
    %v6225 = vmul.f32 %v6215, %v2218
    %v6226 = vmul.f32 %v6216, %v2218
    %v6227 = vmul.f32 %v6217, %v2218
    %v6228 = vmul.f32 %v6218, %v2219
    %v6229 = vmul.f32 %v6219, %v2219
    %v6230 = vmul.f32 %v6220, %v2219
    %v6231 = vmul.f32 %v6221, %v2219
    %v6232 = vadd.f32 %v6224, %v6228
    %v6233 = vrot.slane %v6232, 4
    %v6234 = vadd.f32 %v6232, %v6233
    %v6235 = vrot.slane %v6234, 2
    %v6236 = vadd.f32 %v6234, %v6235
    %v6237 = vrot.slane %v6236, 1
    %v6238 = vadd.f32 %v6236, %v6237
    %v6239 = vadd.f32 %v6225, %v6229
    %v6240 = vrot.slane %v6239, 4
    %v6241 = vadd.f32 %v6239, %v6240
    %v6242 = vrot.slane %v6241, 2
    %v6243 = vadd.f32 %v6241, %v6242
    %v6244 = vrot.slane %v6243, 1
    %v6245 = vadd.f32 %v6243, %v6244
    %v6246 = vadd.f32 %v6226, %v6230
    %v6247 = vrot.slane %v6246, 4
    %v6248 = vadd.f32 %v6246, %v6247
    %v6249 = vrot.slane %v6248, 2
    %v6250 = vadd.f32 %v6248, %v6249
    %v6251 = vrot.slane %v6250, 1
    %v6252 = vadd.f32 %v6250, %v6251
    %v6253 = vadd.f32 %v6227, %v6231
    %v6254 = vrot.slane %v6253, 4
    %v6255 = vadd.f32 %v6253, %v6254
    %v6256 = vrot.slane %v6255, 2
    %v6257 = vadd.f32 %v6255, %v6256
    %v6258 = vrot.slane %v6257, 1
    %v6259 = vadd.f32 %v6257, %v6258
    %v6260 = vmul.f32 %v6238, 0.5
    %v6261 = vmul.f32 %v6245, 0.5
    %v6262 = vmul.f32 %v6252, 0.5
    %v6263 = vmul.f32 %v6259, 0.5
    %v6264 = vsub.f32 %v6214, %v6260
    %v6265 = vsub.f32 %v6215, %v6261
    %v6266 = vsub.f32 %v6216, %v6262
    %v6267 = vsub.f32 %v6217, %v6263
    %v6268 = vsub.f32 %v6218, %v6260
    %v6269 = vsub.f32 %v6219, %v6261
    %v6270 = vsub.f32 %v6220, %v6262
    %v6271 = vsub.f32 %v6221, %v6263
    %v6272 = vmul.f32 %v6264, %v2218
    %v6273 = vmul.f32 %v6265, %v2218
    %v6274 = vmul.f32 %v6266, %v2218
    %v6275 = vmul.f32 %v6267, %v2218
    %v6276 = vmul.f32 %v6268, %v2219
    %v6277 = vmul.f32 %v6269, %v2219
    %v6278 = vmul.f32 %v6270, %v2219
    %v6279 = vmul.f32 %v6271, %v2219
    %v6280 = vmul.f32 %v6272, %v6272
    %v6281 = vmul.f32 %v6273, %v6273
    %v6282 = vmul.f32 %v6274, %v6274
    %v6283 = vmul.f32 %v6275, %v6275
    %v6284 = vmul.f32 %v6276, %v6276
    %v6285 = vmul.f32 %v6277, %v6277
    %v6286 = vmul.f32 %v6278, %v6278
    %v6287 = vmul.f32 %v6279, %v6279
    %v6288 = vadd.f32 %v6280, %v6284
    %v6289 = vrot.slane %v6288, 4
    %v6290 = vadd.f32 %v6288, %v6289
    %v6291 = vrot.slane %v6290, 2
    %v6292 = vadd.f32 %v6290, %v6291
    %v6293 = vrot.slane %v6292, 1
    %v6294 = vadd.f32 %v6292, %v6293
    %v6295 = vadd.f32 %v6281, %v6285
    %v6296 = vrot.slane %v6295, 4
    %v6297 = vadd.f32 %v6295, %v6296
    %v6298 = vrot.slane %v6297, 2
    %v6299 = vadd.f32 %v6297, %v6298
    %v6300 = vrot.slane %v6299, 1
    %v6301 = vadd.f32 %v6299, %v6300
    %v6302 = vadd.f32 %v6282, %v6286
    %v6303 = vrot.slane %v6302, 4
    %v6304 = vadd.f32 %v6302, %v6303
    %v6305 = vrot.slane %v6304, 2
    %v6306 = vadd.f32 %v6304, %v6305
    %v6307 = vrot.slane %v6306, 1
    %v6308 = vadd.f32 %v6306, %v6307
    %v6309 = vadd.f32 %v6283, %v6287
    %v6310 = vrot.slane %v6309, 4
    %v6311 = vadd.f32 %v6309, %v6310
    %v6312 = vrot.slane %v6311, 2
    %v6313 = vadd.f32 %v6311, %v6312
    %v6314 = vrot.slane %v6313, 1
    %v6315 = vadd.f32 %v6313, %v6314
    %v6316 = vmul.f32 %v6294, 0.5
    %v6317 = vmul.f32 %v6301, 0.5
    %v6318 = vmul.f32 %v6308, 0.5
    %v6319 = vmul.f32 %v6315, 0.5
    %v6320 = vadd.f32 %v6316, 1e-05
    %v6321 = vadd.f32 %v6317, 1e-05
    %v6322 = vadd.f32 %v6318, 1e-05
    %v6323 = vadd.f32 %v6319, 1e-05
    %v6324 = vrsqrt.pop %v6320
    %v6325 = vmul.f32 %v6324, %v6320
    %v6326 = vmul.f32 %v6325, %v6324
    %v6327 = vmul.f32 0.5, %v6326
    %v6328 = vsub.f32 1.5, %v6327
    %v6329 = vmul.f32 %v6324, %v6328
    %vm6330 = vweird.f32 %v6320
    %vm6331 = vweird.f32 %v6324
    %vm6332 = vmor %vm6330, %vm6331
    %v6333 = vsel %vm6332, %v6324, %v6329
    %v6334 = vrsqrt.pop %v6321
    %v6335 = vmul.f32 %v6334, %v6321
    %v6336 = vmul.f32 %v6335, %v6334
    %v6337 = vmul.f32 0.5, %v6336
    %v6338 = vsub.f32 1.5, %v6337
    %v6339 = vmul.f32 %v6334, %v6338
    %vm6340 = vweird.f32 %v6321
    %vm6341 = vweird.f32 %v6334
    %vm6342 = vmor %vm6340, %vm6341
    %v6343 = vsel %vm6342, %v6334, %v6339
    %v6344 = vrsqrt.pop %v6322
    %v6345 = vmul.f32 %v6344, %v6322
    %v6346 = vmul.f32 %v6345, %v6344
    %v6347 = vmul.f32 0.5, %v6346
    %v6348 = vsub.f32 1.5, %v6347
    %v6349 = vmul.f32 %v6344, %v6348
    %vm6350 = vweird.f32 %v6322
    %vm6351 = vweird.f32 %v6344
    %vm6352 = vmor %vm6350, %vm6351
    %v6353 = vsel %vm6352, %v6344, %v6349
    %v6354 = vrsqrt.pop %v6323
    %v6355 = vmul.f32 %v6354, %v6323
    %v6356 = vmul.f32 %v6355, %v6354
    %v6357 = vmul.f32 0.5, %v6356
    %v6358 = vsub.f32 1.5, %v6357
    %v6359 = vmul.f32 %v6354, %v6358
    %vm6360 = vweird.f32 %v6323
    %vm6361 = vweird.f32 %v6354
    %vm6362 = vmor %vm6360, %vm6361
    %v6363 = vsel %vm6362, %v6354, %v6359
    %v6364 = vmul.f32 %v6264, %v6333
    %v6365 = vmul.f32 %v6265, %v6343
    %v6366 = vmul.f32 %v6266, %v6353
    %v6367 = vmul.f32 %v6267, %v6363
    %v6368 = vmul.f32 %v6268, %v6333
    %v6369 = vmul.f32 %v6269, %v6343
    %v6370 = vmul.f32 %v6270, %v6353
    %v6371 = vmul.f32 %v6271, %v6363
    %v6373 = vperm.slane %v6222, 0
    %v6374 = vperm.slane %v6222, 1
    %v6375 = vperm.slane %v6222, 2
    %v6376 = vperm.slane %v6222, 3
    %v6381 = vmul.f32 %v6364, %v6373
    %v6382 = vmul.f32 %v6365, %v6374
    %v6383 = vmul.f32 %v6366, %v6375
    %v6384 = vmul.f32 %v6367, %v6376
    %v6385 = vmul.f32 %v6368, %v6373
    %v6386 = vmul.f32 %v6369, %v6374
    %v6387 = vmul.f32 %v6370, %v6375
    %v6388 = vmul.f32 %v6371, %v6376
    %v6390 = vperm.slane %v6223, 0
    %v6391 = vperm.slane %v6223, 1
    %v6392 = vperm.slane %v6223, 2
    %v6393 = vperm.slane %v6223, 3
    %v6398 = vadd.f32 %v6381, %v6390
    %v6399 = vadd.f32 %v6382, %v6391
    %v6400 = vadd.f32 %v6383, %v6392
    %v6401 = vadd.f32 %v6384, %v6393
    %v6402 = vadd.f32 %v6385, %v6390
    %v6403 = vadd.f32 %v6386, %v6391
    %v6404 = vadd.f32 %v6387, %v6392
    %v6405 = vadd.f32 %v6388, %v6393
    %v6406 = vld [vmem:[#allocation10] sm:$0xff]
    %v6407 = vld [vmem:[#allocation10 + $0x8] sm:$0xff]
    %v6408 = vld [vmem:[#allocation10 + $0x10] sm:$0xff]
    %v6409 = vld [vmem:[#allocation10 + $0x18] sm:$0xff]
    %v6410 = vld [vmem:[#allocation10 + $0x20] sm:$0xff]
    %v6411 = vld [vmem:[#allocation10 + $0x28] sm:$0xff]
    %v6412 = vld [vmem:[#allocation10 + $0x30] sm:$0xff]
    %v6413 = vld [vmem:[#allocation10 + $0x38] sm:$0xff]
    %v6414 = vld [vmem:[#allocation10 + $0x40] sm:$0xff]
    %v6415 = vld [vmem:[#allocation10 + $0x48] sm:$0xff]
    %v6416 = vld [vmem:[#allocation10 + $0x50] sm:$0xff]
    %v6417 = vld [vmem:[#allocation10 + $0x58] sm:$0xff]
    %v6418 = vld [vmem:[#allocation10 + $0x60] sm:$0xff]
    %v6419 = vld [vmem:[#allocation10 + $0x68] sm:$0xff]
    %v6420 = vld [vmem:[#allocation10 + $0x70] sm:$0xff]
    %v6421 = vld [vmem:[#allocation10 + $0x78] sm:$0xff]
    %v6422 = vld [vmem:[#allocation10 + $0x80] sm:$0xff]
    %v6423 = vld [vmem:[#allocation10 + $0x88] sm:$0xff]
    %v6424 = vld [vmem:[#allocation10 + $0x90] sm:$0xff]
    %v6425 = vld [vmem:[#allocation10 + $0x98] sm:$0xff]
    %v6426 = vld [vmem:[#allocation10 + $0xa0] sm:$0xff]
    %v6427 = vld [vmem:[#allocation10 + $0xa8] sm:$0xff]
    %v6428 = vld [vmem:[#allocation10 + $0xb0] sm:$0xff]
    %v6429 = vld [vmem:[#allocation10 + $0xb8] sm:$0xff]
    %v6430 = vld [vmem:[#allocation10 + $0xc0] sm:$0xff]
    %v6431 = vld [vmem:[#allocation10 + $0xc8] sm:$0xff]
    %v6432 = vld [vmem:[#allocation10 + $0xd0] sm:$0xff]
    %v6433 = vld [vmem:[#allocation10 + $0xd8] sm:$0xff]
    %v6434 = vld [vmem:[#allocation10 + $0xe0] sm:$0xff]
    %v6435 = vld [vmem:[#allocation10 + $0xe8] sm:$0xff]
    %v6436 = vld [vmem:[#allocation10 + $0xf0] sm:$0xff]
    %v6437 = vld [vmem:[#allocation10 + $0xf8] sm:$0xff]
    %v6438 = vld [vmem:[#allocation10 + $0x100] sm:$0xff]
    %v6439 = vld [vmem:[#allocation10 + $0x108] sm:$0xff]
    %v6440 = vld [vmem:[#allocation10 + $0x110] sm:$0xff]
    %v6441 = vld [vmem:[#allocation10 + $0x118] sm:$0xff]
    %v6442 = vld [vmem:[#allocation10 + $0x120] sm:$0xff]
    %v6443 = vld [vmem:[#allocation10 + $0x128] sm:$0xff]
    %v6444 = vld [vmem:[#allocation10 + $0x130] sm:$0xff]
    %v6445 = vld [vmem:[#allocation10 + $0x138] sm:$0xff]
    %v6446 = vld [vmem:[#allocation10 + $0x140] sm:$0xff]
    %v6447 = vld [vmem:[#allocation10 + $0x148] sm:$0xff]
    %v6448 = vld [vmem:[#allocation10 + $0x150] sm:$0xff]
    %v6449 = vld [vmem:[#allocation10 + $0x158] sm:$0xff]
    %v6450 = vld [vmem:[#allocation10 + $0x160] sm:$0xff]
    %v6451 = vld [vmem:[#allocation10 + $0x168] sm:$0xff]
    %v6452 = vld [vmem:[#allocation10 + $0x170] sm:$0xff]
    %v6453 = vld [vmem:[#allocation10 + $0x178] sm:$0xff]
    %v6454 = vld [vmem:[#allocation10 + $0x180] sm:$0xff]
    %v6455 = vld [vmem:[#allocation10 + $0x188] sm:$0xff]
    %v6456 = vld [vmem:[#allocation10 + $0x190] sm:$0xff]
    %v6457 = vld [vmem:[#allocation10 + $0x198] sm:$0xff]
    %v6458 = vld [vmem:[#allocation10 + $0x1a0] sm:$0xff]
    %v6459 = vld [vmem:[#allocation10 + $0x1a8] sm:$0xff]
    %v6460 = vld [vmem:[#allocation10 + $0x1b0] sm:$0xff]
    %v6461 = vld [vmem:[#allocation10 + $0x1b8] sm:$0xff]
    %v6462 = vld [vmem:[#allocation10 + $0x1c0] sm:$0xff]
    %v6463 = vld [vmem:[#allocation10 + $0x1c8] sm:$0xff]
    %v6464 = vld [vmem:[#allocation10 + $0x1d0] sm:$0xff]
    %v6465 = vld [vmem:[#allocation10 + $0x1d8] sm:$0xff]
    %v6466 = vld [vmem:[#allocation10 + $0x1e0] sm:$0xff]
    %v6467 = vld [vmem:[#allocation10 + $0x1e8] sm:$0xff]
    %v6468 = vld [vmem:[#allocation10 + $0x1f0] sm:$0xff]
    %v6469 = vld [vmem:[#allocation10 + $0x1f8] sm:$0xff]
    %v6470 = vld [vmem:[#allocation10 + $0x200] sm:$0xff]
    %v6471 = vld [vmem:[#allocation10 + $0x208] sm:$0xff]
    %v6472 = vld [vmem:[#allocation10 + $0x210] sm:$0xff]
    %v6473 = vld [vmem:[#allocation10 + $0x218] sm:$0xff]
    %v6474 = vld [vmem:[#allocation10 + $0x220] sm:$0xff]
    %v6475 = vld [vmem:[#allocation10 + $0x228] sm:$0xff]
    %v6476 = vld [vmem:[#allocation10 + $0x230] sm:$0xff]
    %v6477 = vld [vmem:[#allocation10 + $0x238] sm:$0xff]
    %v6478 = vld [vmem:[#allocation10 + $0x240] sm:$0xff]
    %v6479 = vld [vmem:[#allocation10 + $0x248] sm:$0xff]
    %v6480 = vld [vmem:[#allocation10 + $0x250] sm:$0xff]
    %v6481 = vld [vmem:[#allocation10 + $0x258] sm:$0xff]
    %v6482 = vld [vmem:[#allocation10 + $0x260] sm:$0xff]
    %v6483 = vld [vmem:[#allocation10 + $0x268] sm:$0xff]
    %v6484 = vld [vmem:[#allocation10 + $0x270] sm:$0xff]
    %v6485 = vld [vmem:[#allocation10 + $0x278] sm:$0xff]
    %v6486 = vld [vmem:[#allocation10 + $0x280] sm:$0xff]
    %v6487 = vld [vmem:[#allocation10 + $0x288] sm:$0xff]
    %v6488 = vld [vmem:[#allocation10 + $0x290] sm:$0xff]
    %v6489 = vld [vmem:[#allocation10 + $0x298] sm:$0xff]
    %v6490 = vld [vmem:[#allocation10 + $0x2a0] sm:$0xff]
    %v6491 = vld [vmem:[#allocation10 + $0x2a8] sm:$0xff]
    %v6492 = vld [vmem:[#allocation10 + $0x2b0] sm:$0xff]
    %v6493 = vld [vmem:[#allocation10 + $0x2b8] sm:$0xff]
    %v6494 = vld [vmem:[#allocation10 + $0x2c0] sm:$0xff]
    %v6495 = vld [vmem:[#allocation10 + $0x2c8] sm:$0xff]
    %v6496 = vld [vmem:[#allocation10 + $0x2d0] sm:$0xff]
    %v6497 = vld [vmem:[#allocation10 + $0x2d8] sm:$0xff]
    %v6498 = vld [vmem:[#allocation10 + $0x2e0] sm:$0xff]
    %v6499 = vld [vmem:[#allocation10 + $0x2e8] sm:$0xff]
    %v6500 = vld [vmem:[#allocation10 + $0x2f0] sm:$0xff]
    %v6501 = vld [vmem:[#allocation10 + $0x2f8] sm:$0xff]
    %v6502 = vld [vmem:[#allocation10 + $0x300] sm:$0xff]
    %v6503 = vld [vmem:[#allocation10 + $0x308] sm:$0xff]
    %v6504 = vld [vmem:[#allocation10 + $0x310] sm:$0xff]
    %v6505 = vld [vmem:[#allocation10 + $0x318] sm:$0xff]
    %v6506 = vld [vmem:[#allocation10 + $0x320] sm:$0xff]
    %v6507 = vld [vmem:[#allocation10 + $0x328] sm:$0xff]
    %v6508 = vld [vmem:[#allocation10 + $0x330] sm:$0xff]
    %v6509 = vld [vmem:[#allocation10 + $0x338] sm:$0xff]
    %v6510 = vld [vmem:[#allocation10 + $0x340] sm:$0xff]
    %v6511 = vld [vmem:[#allocation10 + $0x348] sm:$0xff]
    %v6512 = vld [vmem:[#allocation10 + $0x350] sm:$0xff]
    %v6513 = vld [vmem:[#allocation10 + $0x358] sm:$0xff]
    %v6514 = vld [vmem:[#allocation10 + $0x360] sm:$0xff]
    %v6515 = vld [vmem:[#allocation10 + $0x368] sm:$0xff]
    %v6516 = vld [vmem:[#allocation10 + $0x370] sm:$0xff]
    %v6517 = vld [vmem:[#allocation10 + $0x378] sm:$0xff]
    %v6518 = vld [vmem:[#allocation10 + $0x380] sm:$0xff]
    %v6519 = vld [vmem:[#allocation10 + $0x388] sm:$0xff]
    %v6520 = vld [vmem:[#allocation10 + $0x390] sm:$0xff]
    %v6521 = vld [vmem:[#allocation10 + $0x398] sm:$0xff]
    %v6522 = vld [vmem:[#allocation10 + $0x3a0] sm:$0xff]
    %v6523 = vld [vmem:[#allocation10 + $0x3a8] sm:$0xff]
    %v6524 = vld [vmem:[#allocation10 + $0x3b0] sm:$0xff]
    %v6525 = vld [vmem:[#allocation10 + $0x3b8] sm:$0xff]
    %v6526 = vld [vmem:[#allocation10 + $0x3c0] sm:$0xff]
    %v6527 = vld [vmem:[#allocation10 + $0x3c8] sm:$0xff]
    %v6528 = vld [vmem:[#allocation10 + $0x3d0] sm:$0xff]
    %v6529 = vld [vmem:[#allocation10 + $0x3d8] sm:$0xff]
    %v6530 = vld [vmem:[#allocation10 + $0x3e0] sm:$0xff]
    %v6531 = vld [vmem:[#allocation10 + $0x3e8] sm:$0xff]
    %v6532 = vld [vmem:[#allocation10 + $0x3f0] sm:$0xff]
    %v6533 = vld [vmem:[#allocation10 + $0x3f8] sm:$0xff]
    %v6534 = vld [vmem:[#allocation11] sm:$0x3]
    %v6536 = vperm.slane %v6534, 0
    %v6537 = vperm.slane %v6534, 1
    %6540 = vmatpush.msra.mxu0 %v6436
    %6541 = vmatpush.msra.mxu0 %v6434
    %6542 = vmatpush.msra.mxu0 %v6432
    %6543 = vmatpush.msra.mxu0 %v6430
    %6544 = vmatpush.msra.mxu0 %v6428
    %6545 = vmatpush.msra.mxu0 %v6426
    %6546 = vmatpush.msra.mxu0 %v6424
    %6547 = vmatpush.msra.mxu0 %v6422
    %6548 = vmatpush.msra.mxu0 %v6420
    %6549 = vmatpush.msra.mxu0 %v6418
    %6550 = vmatpush.msra.mxu0 %v6416
    %6551 = vmatpush.msra.mxu0 %v6414
    %6552 = vmatpush.msra.mxu0 %v6412
    %6553 = vmatpush.msra.mxu0 %v6410
    %6554 = vmatpush.msra.mxu0 %v6408
    %6555 = vmatpush.msra.mxu0 %v6406
    %6556 = vmatmul.f32.gmra.mxu0 %v6398
    %v6557 = vpop.f32.mrf.mxu0
    %v6558 = vadd.f32 %v6536, %v6557
    %6559 = vmatmul.f32.gmra.mxu0 %v6402
    %v6560 = vpop.f32.mrf.mxu0
    %v6561 = vadd.f32 %v6536, %v6560
    %6562 = vdwg.mxu0
    %6563 = vmatpush.msra.mxu0 %v6468
    %6564 = vmatpush.msra.mxu0 %v6466
    %6565 = vmatpush.msra.mxu0 %v6464
    %6566 = vmatpush.msra.mxu0 %v6462
    %6567 = vmatpush.msra.mxu0 %v6460
    %6568 = vmatpush.msra.mxu0 %v6458
    %6569 = vmatpush.msra.mxu0 %v6456
    %6570 = vmatpush.msra.mxu0 %v6454
    %6571 = vmatpush.msra.mxu0 %v6452
    %6572 = vmatpush.msra.mxu0 %v6450
    %6573 = vmatpush.msra.mxu0 %v6448
    %6574 = vmatpush.msra.mxu0 %v6446
    %6575 = vmatpush.msra.mxu0 %v6444
    %6576 = vmatpush.msra.mxu0 %v6442
    %6577 = vmatpush.msra.mxu0 %v6440
    %6578 = vmatpush.msra.mxu0 %v6438
    %6579 = vmatmul.f32.gmra.mxu0 %v6399
    %v6580 = vpop.f32.mrf.mxu0
    %v6581 = vadd.f32 %v6558, %v6580
    %6582 = vmatmul.f32.gmra.mxu0 %v6403
    %v6583 = vpop.f32.mrf.mxu0
    %v6584 = vadd.f32 %v6561, %v6583
    %6585 = vdwg.mxu0
    %6586 = vmatpush.msra.mxu0 %v6500
    %6587 = vmatpush.msra.mxu0 %v6498
    %6588 = vmatpush.msra.mxu0 %v6496
    %6589 = vmatpush.msra.mxu0 %v6494
    %6590 = vmatpush.msra.mxu0 %v6492
    %6591 = vmatpush.msra.mxu0 %v6490
    %6592 = vmatpush.msra.mxu0 %v6488
    %6593 = vmatpush.msra.mxu0 %v6486
    %6594 = vmatpush.msra.mxu0 %v6484
    %6595 = vmatpush.msra.mxu0 %v6482
    %6596 = vmatpush.msra.mxu0 %v6480
    %6597 = vmatpush.msra.mxu0 %v6478
    %6598 = vmatpush.msra.mxu0 %v6476
    %6599 = vmatpush.msra.mxu0 %v6474
    %6600 = vmatpush.msra.mxu0 %v6472
    %6601 = vmatpush.msra.mxu0 %v6470
    %6602 = vmatmul.f32.gmra.mxu0 %v6400
    %v6603 = vpop.f32.mrf.mxu0
    %v6604 = vadd.f32 %v6581, %v6603
    %6605 = vmatmul.f32.gmra.mxu0 %v6404
    %v6606 = vpop.f32.mrf.mxu0
    %v6607 = vadd.f32 %v6584, %v6606
    %6608 = vdwg.mxu0
    %6609 = vmatpush.msra.mxu0 %v6532
    %6610 = vmatpush.msra.mxu0 %v6530
    %6611 = vmatpush.msra.mxu0 %v6528
    %6612 = vmatpush.msra.mxu0 %v6526
    %6613 = vmatpush.msra.mxu0 %v6524
    %6614 = vmatpush.msra.mxu0 %v6522
    %6615 = vmatpush.msra.mxu0 %v6520
    %6616 = vmatpush.msra.mxu0 %v6518
    %6617 = vmatpush.msra.mxu0 %v6516
    %6618 = vmatpush.msra.mxu0 %v6514
    %6619 = vmatpush.msra.mxu0 %v6512
    %6620 = vmatpush.msra.mxu0 %v6510
    %6621 = vmatpush.msra.mxu0 %v6508
    %6622 = vmatpush.msra.mxu0 %v6506
    %6623 = vmatpush.msra.mxu0 %v6504
    %6624 = vmatpush.msra.mxu0 %v6502
    %6625 = vmatmul.f32.gmra.mxu0 %v6401
    %v6626 = vpop.f32.mrf.mxu0
    %v6627 = vadd.f32 %v6604, %v6626
    %6628 = vmatmul.f32.gmra.mxu0 %v6405
    %v6629 = vpop.f32.mrf.mxu0
    %v6630 = vadd.f32 %v6607, %v6629
    %6631 = vdwg.mxu0
    %6632 = vmatpush.msra.mxu0 %v6437
    %6633 = vmatpush.msra.mxu0 %v6435
    %6634 = vmatpush.msra.mxu0 %v6433
    %6635 = vmatpush.msra.mxu0 %v6431
    %6636 = vmatpush.msra.mxu0 %v6429
    %6637 = vmatpush.msra.mxu0 %v6427
    %6638 = vmatpush.msra.mxu0 %v6425
    %6639 = vmatpush.msra.mxu0 %v6423
    %6640 = vmatpush.msra.mxu0 %v6421
    %6641 = vmatpush.msra.mxu0 %v6419
    %6642 = vmatpush.msra.mxu0 %v6417
    %6643 = vmatpush.msra.mxu0 %v6415
    %6644 = vmatpush.msra.mxu0 %v6413
    %6645 = vmatpush.msra.mxu0 %v6411
    %6646 = vmatpush.msra.mxu0 %v6409
    %6647 = vmatpush.msra.mxu0 %v6407
    %6648 = vmatmul.f32.gmra.mxu0 %v6398
    %v6649 = vpop.f32.mrf.mxu0
    %v6650 = vadd.f32 %v6537, %v6649
    %6651 = vmatmul.f32.gmra.mxu0 %v6402
    %v6652 = vpop.f32.mrf.mxu0
    %v6653 = vadd.f32 %v6537, %v6652
    %6654 = vdwg.mxu0
    %6655 = vmatpush.msra.mxu0 %v6469
    %6656 = vmatpush.msra.mxu0 %v6467
    %6657 = vmatpush.msra.mxu0 %v6465
    %6658 = vmatpush.msra.mxu0 %v6463
    %6659 = vmatpush.msra.mxu0 %v6461
    %6660 = vmatpush.msra.mxu0 %v6459
    %6661 = vmatpush.msra.mxu0 %v6457
    %6662 = vmatpush.msra.mxu0 %v6455
    %6663 = vmatpush.msra.mxu0 %v6453
    %6664 = vmatpush.msra.mxu0 %v6451
    %6665 = vmatpush.msra.mxu0 %v6449
    %6666 = vmatpush.msra.mxu0 %v6447
    %6667 = vmatpush.msra.mxu0 %v6445
    %6668 = vmatpush.msra.mxu0 %v6443
    %6669 = vmatpush.msra.mxu0 %v6441
    %6670 = vmatpush.msra.mxu0 %v6439
    %6671 = vmatmul.f32.gmra.mxu0 %v6399
    %v6672 = vpop.f32.mrf.mxu0
    %v6673 = vadd.f32 %v6650, %v6672
    %6674 = vmatmul.f32.gmra.mxu0 %v6403
    %v6675 = vpop.f32.mrf.mxu0
    %v6676 = vadd.f32 %v6653, %v6675
    %6677 = vdwg.mxu0
    %6678 = vmatpush.msra.mxu0 %v6501
    %6679 = vmatpush.msra.mxu0 %v6499
    %6680 = vmatpush.msra.mxu0 %v6497
    %6681 = vmatpush.msra.mxu0 %v6495
    %6682 = vmatpush.msra.mxu0 %v6493
    %6683 = vmatpush.msra.mxu0 %v6491
    %6684 = vmatpush.msra.mxu0 %v6489
    %6685 = vmatpush.msra.mxu0 %v6487
    %6686 = vmatpush.msra.mxu0 %v6485
    %6687 = vmatpush.msra.mxu0 %v6483
    %6688 = vmatpush.msra.mxu0 %v6481
    %6689 = vmatpush.msra.mxu0 %v6479
    %6690 = vmatpush.msra.mxu0 %v6477
    %6691 = vmatpush.msra.mxu0 %v6475
    %6692 = vmatpush.msra.mxu0 %v6473
    %6693 = vmatpush.msra.mxu0 %v6471
    %6694 = vmatmul.f32.gmra.mxu0 %v6400
    %v6695 = vpop.f32.mrf.mxu0
    %v6696 = vadd.f32 %v6673, %v6695
    %6697 = vmatmul.f32.gmra.mxu0 %v6404
    %v6698 = vpop.f32.mrf.mxu0
    %v6699 = vadd.f32 %v6676, %v6698
    %6700 = vdwg.mxu0
    %6701 = vmatpush.msra.mxu0 %v6533
    %6702 = vmatpush.msra.mxu0 %v6531
    %6703 = vmatpush.msra.mxu0 %v6529
    %6704 = vmatpush.msra.mxu0 %v6527
    %6705 = vmatpush.msra.mxu0 %v6525
    %6706 = vmatpush.msra.mxu0 %v6523
    %6707 = vmatpush.msra.mxu0 %v6521
    %6708 = vmatpush.msra.mxu0 %v6519
    %6709 = vmatpush.msra.mxu0 %v6517
    %6710 = vmatpush.msra.mxu0 %v6515
    %6711 = vmatpush.msra.mxu0 %v6513
    %6712 = vmatpush.msra.mxu0 %v6511
    %6713 = vmatpush.msra.mxu0 %v6509
    %6714 = vmatpush.msra.mxu0 %v6507
    %6715 = vmatpush.msra.mxu0 %v6505
    %6716 = vmatpush.msra.mxu0 %v6503
    %6717 = vmatmul.f32.gmra.mxu0 %v6401
    %v6718 = vpop.f32.mrf.mxu0
    %v6719 = vadd.f32 %v6696, %v6718
    %6720 = vmatmul.f32.gmra.mxu0 %v6405
    %v6721 = vpop.f32.mrf.mxu0
    %v6722 = vadd.f32 %v6699, %v6721
    %6723 = vdwg.mxu0
    %v6724 = vmax.f32 %v6627, 0.0
    %v6725 = vmax.f32 %v6719, 0.0
    %v6726 = vmax.f32 %v6630, 0.0
    %v6727 = vmax.f32 %v6722, 0.0
    %v6728 = vld [vmem:[%s9] sm:$0x3]
    %v6729 = vld [vmem:[%s10] sm:$0x3]
    %v6730 = vmul.f32 %v6724, %v2218
    %v6731 = vmul.f32 %v6725, %v2218
    %v6732 = vmul.f32 %v6726, %v2219
    %v6733 = vmul.f32 %v6727, %v2219
    %v6734 = vadd.f32 %v6730, %v6732
    %v6735 = vrot.slane %v6734, 4
    %v6736 = vadd.f32 %v6734, %v6735
    %v6737 = vrot.slane %v6736, 2
    %v6738 = vadd.f32 %v6736, %v6737
    %v6739 = vrot.slane %v6738, 1
    %v6740 = vadd.f32 %v6738, %v6739
    %v6741 = vadd.f32 %v6731, %v6733
    %v6742 = vrot.slane %v6741, 4
    %v6743 = vadd.f32 %v6741, %v6742
    %v6744 = vrot.slane %v6743, 2
    %v6745 = vadd.f32 %v6743, %v6744
    %v6746 = vrot.slane %v6745, 1
    %v6747 = vadd.f32 %v6745, %v6746
    %v6748 = vmul.f32 %v6740, 0.5
    %v6749 = vmul.f32 %v6747, 0.5
    %v6750 = vsub.f32 %v6724, %v6748
    %v6751 = vsub.f32 %v6725, %v6749
    %v6752 = vsub.f32 %v6726, %v6748
    %v6753 = vsub.f32 %v6727, %v6749
    %v6754 = vmul.f32 %v6750, %v2218
    %v6755 = vmul.f32 %v6751, %v2218
    %v6756 = vmul.f32 %v6752, %v2219
    %v6757 = vmul.f32 %v6753, %v2219
    %v6758 = vmul.f32 %v6754, %v6754
    %v6759 = vmul.f32 %v6755, %v6755
    %v6760 = vmul.f32 %v6756, %v6756
    %v6761 = vmul.f32 %v6757, %v6757
    %v6762 = vadd.f32 %v6758, %v6760
    %v6763 = vrot.slane %v6762, 4
    %v6764 = vadd.f32 %v6762, %v6763
    %v6765 = vrot.slane %v6764, 2
    %v6766 = vadd.f32 %v6764, %v6765
    %v6767 = vrot.slane %v6766, 1
    %v6768 = vadd.f32 %v6766, %v6767
    %v6769 = vadd.f32 %v6759, %v6761
    %v6770 = vrot.slane %v6769, 4
    %v6771 = vadd.f32 %v6769, %v6770
    %v6772 = vrot.slane %v6771, 2
    %v6773 = vadd.f32 %v6771, %v6772
    %v6774 = vrot.slane %v6773, 1
    %v6775 = vadd.f32 %v6773, %v6774
    %v6776 = vmul.f32 %v6768, 0.5
    %v6777 = vmul.f32 %v6775, 0.5
    %v6778 = vadd.f32 %v6776, 1e-05
    %v6779 = vadd.f32 %v6777, 1e-05
    %v6780 = vrsqrt.pop %v6778
    %v6781 = vmul.f32 %v6780, %v6778
    %v6782 = vmul.f32 %v6781, %v6780
    %v6783 = vmul.f32 0.5, %v6782
    %v6784 = vsub.f32 1.5, %v6783
    %v6785 = vmul.f32 %v6780, %v6784
    %vm6786 = vweird.f32 %v6778
    %vm6787 = vweird.f32 %v6780
    %vm6788 = vmor %vm6786, %vm6787
    %v6789 = vsel %vm6788, %v6780, %v6785
    %v6790 = vrsqrt.pop %v6779
    %v6791 = vmul.f32 %v6790, %v6779
    %v6792 = vmul.f32 %v6791, %v6790
    %v6793 = vmul.f32 0.5, %v6792
    %v6794 = vsub.f32 1.5, %v6793
    %v6795 = vmul.f32 %v6790, %v6794
    %vm6796 = vweird.f32 %v6779
    %vm6797 = vweird.f32 %v6790
    %vm6798 = vmor %vm6796, %vm6797
    %v6799 = vsel %vm6798, %v6790, %v6795
    %v6800 = vmul.f32 %v6750, %v6789
    %v6801 = vmul.f32 %v6751, %v6799
    %v6802 = vmul.f32 %v6752, %v6789
    %v6803 = vmul.f32 %v6753, %v6799
    %v6805 = vperm.slane %v6728, 0
    %v6806 = vperm.slane %v6728, 1
    %v6809 = vmul.f32 %v6800, %v6805
    %v6810 = vmul.f32 %v6801, %v6806
    %v6811 = vmul.f32 %v6802, %v6805
    %v6812 = vmul.f32 %v6803, %v6806
    %v6814 = vperm.slane %v6729, 0
    %v6815 = vperm.slane %v6729, 1
    %v6818 = vadd.f32 %v6809, %v6814
    %v6819 = vadd.f32 %v6810, %v6815
    %v6820 = vadd.f32 %v6811, %v6814
    %v6821 = vadd.f32 %v6812, %v6815
    %v6822 = vld [vmem:[#allocation13] sm:$0x3]
    %v6824 = vperm.slane %v6822, 0
    %v6825 = vperm.slane %v6822, 1
    %v6828 = vmul.f32 %v6818, %v6824
    %v6829 = vmul.f32 %v6819, %v6825
    %v6830 = vmul.f32 %v6820, %v6824
    %v6831 = vmul.f32 %v6821, %v6825
    %v6832 = vadd.f32 %v6828, %v6829
    %6833 = vadd.xlane.f32.xlu0 %v6832
    %v6834 = vpop.xlane.xlu0 %6833
    %v6835 = vadd.f32 %v6830, %v6831
    %6836 = vadd.xlane.f32.xlu0 %v6835
    %v6837 = vpop.xlane.xlu0 %6836
    %v6838 = vld [vmem:[#allocation2] sm:$0x1]
    %v6840 = vperm.slane %v6838, 0
    %v6842 = vadd.f32 %v6834, %v6840
    %v6843 = vadd.f32 %v6837, %v6840
    %vm6844 = vcmask 7168
    %6845 = vst.msk [vmem:[%s13] sm:$0xff] %vm6844, %v6842
    %6846 = vst.msk [vmem:[%s13 + $0x8] sm:$0xff] %vm6844, %v6843
    // Predicated region
    $region82: #{_lambda_.1} parent=1 // pred_check
      _
    $region83: #{_lambda_.1} parent=1 // pred_check_branch
      %6848 = sbr.rel (0) target = $region85
    $region84: #{_lambda_.1} parent=1 // pred_region
      _
    $region85: #{_lambda_.1} parent=1 // pred_fallthru
      _
    // Predicated region
    $region86: #{_lambda_.1} parent=1 // pred_check
      _
    $region87: #{_lambda_.1} parent=1 // pred_check_branch
      %6850 = sbr.rel (0) target = $region89
    $region88: #{_lambda_.1} parent=1 // pred_region
      _
    $region89: #{_lambda_.1} parent=1 // pred_fallthru
      _
    %6851 = vsyncpa [#allocation4], 1
    %6852 = vsyncpa [#allocation6], 1
    %6853 = vsyncpa [#allocation9], 1
    %6854 = vsyncpa [#allocation12], 1

</llo_original>
